<compile_context>
chip_gen: v5e
topology: v5e:2x2
jax: 0.10.0
libtpu: 0.0.40
codegen_flags: <defaults>
</compile_context>

<pallas_src>
import jax
import jax.numpy as jnp
from jax.experimental import pallas as pl
from jax.experimental.pallas import tpu as pltpu

# ----------------------------- configuration --------------------------------
N_JOINTS = 16
INPUT_SIZE = N_JOINTS * 3          # 48
NOISE_CH = 48
LINEAR_SIZE = 256
NUM_STAGE = 2
NUM_INNER = NUM_STAGE * 2          # each Linear stage = two (linear+BN+relu)
BN_EPS = 1e-5
LEAKY_SLOPE = 0.01                 # nn.LeakyReLU default
PI_CONST = 3.1415                  # matches the PyTorch module literal


# ------------------------------ Pallas kernel --------------------------------
def _rt_generator_kernel(x_ref, noise_ref, ax_ref,
                         w_in_x_ref, w_in_n_ref, b_in_ref, g_in_ref, be_in_ref,
                         w_st_ref, b_st_ref, g_st_ref, be_st_ref,
                         w_out_ref, b_out_ref,
                         o_pose_ref, o_rt_ref):
    """Fused RTGenerator forward.

    x_ref:     (N, 48)  root-centered flattened inputs_3d
    noise_ref: (2, N, 48)  per-branch Gaussian noise
    ax_ref:    (N, 48)  root-centered augx, flat in (3, J) order
    weights:   stacked [R-branch, T-branch] along leading dim 2 (bf16 matmuls)
    outputs:   o_pose_ref (N, 48) flat (3, J) pose; o_rt_ref (N, 6) = [r | t]
    """
    x_bf = x_ref[...].astype(jnp.bfloat16)

    def bn_lrelu(y, g, be):
        # BatchNorm1d (training-mode batch stats) folded into one affine pass.
        mu = jnp.mean(y, axis=0, keepdims=True)
        var = jnp.maximum(jnp.mean(y * y, axis=0, keepdims=True) - mu * mu, 0.0)
        s = g * jax.lax.rsqrt(var + BN_EPS)
        sh = be - mu * s
        z = y * s + sh
        return jnp.maximum(z, LEAKY_SLOPE * z)       # LeakyReLU as a single vmax

    def branch(b):
        # First layer: split matmul instead of concatenating x and noise.
        nz_bf = noise_ref[b].astype(jnp.bfloat16)
        y = (jnp.dot(x_bf, w_in_x_ref[b], preferred_element_type=jnp.float32)
             + jnp.dot(nz_bf, w_in_n_ref[b], preferred_element_type=jnp.float32)
             + b_in_ref[b])
        y = bn_lrelu(y, g_in_ref[b], be_in_ref[b])
        for i in range(NUM_INNER):                   # static unroll over stages
            y = (jnp.dot(y.astype(jnp.bfloat16), w_st_ref[b, i],
                         preferred_element_type=jnp.float32) + b_st_ref[b, i])
            y = bn_lrelu(y, g_st_ref[b, i], be_st_ref[b, i])
        return (jnp.dot(y.astype(jnp.bfloat16), w_out_ref[b],
                        preferred_element_type=jnp.float32) + b_out_ref[b])

    r_raw = branch(0)                                # (N, 3)
    t_raw = branch(1)                                # (N, 3)

    # ---- epilogue (never leaves VMEM) ----
    r = jnp.tanh(r_raw) * PI_CONST                   # angle-axis
    tz = t_raw[:, 2:3]
    t = jnp.concatenate([t_raw[:, 0:2], tz * tz], axis=1)   # t_z <- t_z^2

    # ---- Rodrigues (tgm.angle_axis_to_rotation_matrix semantics) ----
    rx = r[:, 0:1]
    ry = r[:, 1:2]
    rz = r[:, 2:3]
    theta2 = rx * rx + ry * ry + rz * rz
    theta = jnp.sqrt(theta2)
    inv = 1.0 / (theta + 1e-6)
    wx, wy, wz = rx * inv, ry * inv, rz * inv
    c = jnp.cos(theta)
    s = jnp.sin(theta)
    oc = 1.0 - c

    r00 = c + wx * wx * oc
    r01 = wx * wy * oc - wz * s
    r02 = wy * s + wx * wz * oc
    r10 = wz * s + wx * wy * oc
    r11 = c + wy * wy * oc
    r12 = -wx * s + wy * wz * oc
    r20 = -wy * s + wx * wz * oc
    r21 = wx * s + wy * wz * oc
    r22 = c + wz * wz * oc

    one = jnp.ones_like(rx)
    m = theta2 > 1e-6                                # Taylor branch (tiny angles)
    R = [[jnp.where(m, r00, one), jnp.where(m, r01, -rz), jnp.where(m, r02, ry)],
         [jnp.where(m, r10, rz),  jnp.where(m, r11, one), jnp.where(m, r12, -rx)],
         [jnp.where(m, r20, -ry), jnp.where(m, r21, rx),  jnp.where(m, r22, one)]]

    # ---- rotate + translate, lane-dense single store ----
    a0 = ax_ref[:, 0:N_JOINTS]
    a1 = ax_ref[:, N_JOINTS:2 * N_JOINTS]
    a2 = ax_ref[:, 2 * N_JOINTS:3 * N_JOINTS]
    rows = [R[e][0] * a0 + R[e][1] * a1 + R[e][2] * a2 + t[:, e:e + 1]
            for e in range(3)]
    o_pose_ref[...] = jnp.concatenate(rows, axis=1)  # (N, 48), one store
    o_rt_ref[...] = jnp.concatenate([r, t], axis=1)  # (N, 6), one store


# ------------------------------ wrappers -------------------------------------
def _full_spec(shape):
    nd = len(shape)
    return pl.BlockSpec(shape, lambda i, _nd=nd: (0,) * _nd)


def rt_generator_forward(params, inputs_3d, augx, key):
    n = inputs_3d.shape[0]

    # root-center + flatten (glue)
    x = (inputs_3d - inputs_3d[:, :1, :]).reshape(n, INPUT_SIZE)          # (N,48)
    noise = jax.random.normal(key, (2, n, NOISE_CH), dtype=jnp.float32)   # both branches

    # root-center augx and lay it out flat as (N, 3*J) = [x0..15, y0..15, z0..15]
    augx_c = augx - augx[:, :1, :]
    ax_flat = jnp.transpose(augx_c, (0, 2, 1)).reshape(n, 3 * N_JOINTS)   # (N,48)

    args = (x, noise, ax_flat,
            params["w_in_x"], params["w_in_n"], params["b_in"],
            params["g_in"], params["be_in"],
            params["w_st"], params["b_st"], params["g_st"], params["be_st"],
            params["w_out"], params["b_out"])

    o_pose, o_rt = pl.pallas_call(
        _rt_generator_kernel,
        out_shape=(jax.ShapeDtypeStruct((n, 3 * N_JOINTS), jnp.float32),
                   jax.ShapeDtypeStruct((n, 6), jnp.float32)),
        grid=(1,),
        in_specs=[_full_spec(a.shape) for a in args],
        out_specs=(_full_spec((n, 3 * N_JOINTS)), _full_spec((n, 6))),
        compiler_params=pltpu.CompilerParams(
            dimension_semantics=("arbitrary",)),
    )(*args)

    augx_rt = jnp.transpose(o_pose.reshape(n, 3, N_JOINTS), (0, 2, 1))    # (N,J,3)
    r = o_rt[:, :3]
    t = o_rt[:, 3:].reshape(n, 1, 3)
    return augx_rt, (r, t)


# ------------------------- deterministic parameters --------------------------
def _init_branch(key, hidden, n_inner):
    ks = jax.random.split(key, 10)

    def lin_w(k, fi, fo):
        w = (jax.random.normal(k, (fi, fo), dtype=jnp.float32)
             / jnp.sqrt(jnp.float32(fi)))
        return w.astype(jnp.bfloat16)          # matmul weights stored bf16

    return dict(
        w_in_x=lin_w(ks[0], INPUT_SIZE, hidden),
        w_in_n=lin_w(ks[1], NOISE_CH, hidden),
        b_in=0.01 * jax.random.normal(ks[2], (1, hidden), dtype=jnp.float32),
        g_in=1.0 + 0.01 * jax.random.normal(ks[3], (1, hidden), dtype=jnp.float32),
        be_in=0.01 * jax.random.normal(ks[4], (1, hidden), dtype=jnp.float32),
        w_st=(jax.random.normal(ks[5], (n_inner, hidden, hidden),
                                dtype=jnp.float32)
              / jnp.sqrt(jnp.float32(hidden))).astype(jnp.bfloat16),
        b_st=0.01 * jax.random.normal(ks[6], (n_inner, 1, hidden), dtype=jnp.float32),
        g_st=1.0 + 0.01 * jax.random.normal(ks[7], (n_inner, 1, hidden),
                                            dtype=jnp.float32),
        be_st=0.01 * jax.random.normal(ks[8], (n_inner, 1, hidden), dtype=jnp.float32),
        w_out=lin_w(ks[9], hidden, 3),
        b_out=0.01 * jax.random.normal(jax.random.fold_in(key, 99), (1, 3),
                                       dtype=jnp.float32),
    )


def init_params(key):
    k_r, k_t = jax.random.split(key)
    p_r = _init_branch(k_r, LINEAR_SIZE, NUM_INNER)
    p_t = _init_branch(k_t, LINEAR_SIZE, NUM_INNER)
    # stack R and T branches along a leading dim of 2 (b=0: R, b=1: T)
    return {k: jnp.stack([p_r[k], p_t[k]], axis=0) for k in p_r}


# ----------------------------------- main -------------------------------------
if __name__ == "__main__":
    root = jax.random.PRNGKey(0)
    k_in, k_aug, k_par, k_noise = jax.random.split(root, 4)

    n = 8
    inputs_3d = jax.random.normal(k_in, (n, N_JOINTS, 3), dtype=jnp.float32)
    augx = jax.random.normal(k_aug, (n, N_JOINTS, 3), dtype=jnp.float32)
    params = init_params(k_par)

    augx_rt, (r, t) = rt_generator_forward(params, inputs_3d, augx, k_noise)
    jax.block_until_ready((augx_rt, r, t))

    assert augx_rt.shape == (n, N_JOINTS, 3)
    assert r.shape == (n, 3)
    assert t.shape == (n, 1, 3)
    assert bool(jnp.all(jnp.isfinite(augx_rt)))
    print("KERNEL_OK")
</pallas_src>

<mosaic_0001>
module attributes {stable_mosaic.version = 11 : i64} {
  func.func @_rt_generator_kernel(%arg0: i32, %arg1: memref<8x48xf32, #tpu.memory_space<vmem>>, %arg2: memref<2x8x48xf32, #tpu.memory_space<vmem>>, %arg3: memref<8x48xf32, #tpu.memory_space<vmem>>, %arg4: memref<2x48x256xbf16, #tpu.memory_space<vmem>>, %arg5: memref<2x48x256xbf16, #tpu.memory_space<vmem>>, %arg6: memref<2x1x256xf32, #tpu.memory_space<vmem>>, %arg7: memref<2x1x256xf32, #tpu.memory_space<vmem>>, %arg8: memref<2x1x256xf32, #tpu.memory_space<vmem>>, %arg9: memref<2x4x256x256xbf16, #tpu.memory_space<vmem>>, %arg10: memref<2x4x1x256xf32, #tpu.memory_space<vmem>>, %arg11: memref<2x4x1x256xf32, #tpu.memory_space<vmem>>, %arg12: memref<2x4x1x256xf32, #tpu.memory_space<vmem>>, %arg13: memref<2x256x3xbf16, #tpu.memory_space<vmem>>, %arg14: memref<2x1x3xf32, #tpu.memory_space<vmem>>, %arg15: memref<8x48xf32, #tpu.memory_space<vmem>>, %arg16: memref<8x6xf32, #tpu.memory_space<vmem>>) attributes {dimension_semantics = [#tpu.dimension_semantics<arbitrary>], iteration_bounds = array<i64: 1>, scalar_prefetch = 0 : i64, scratch_operands = 0 : i64, tpu.core_type = #tpu.core_type<tc>, window_params = [{pipeline_mode = #tpu.pipeline_mode<synchronous>, transform_indices = @transform_0, window_bounds = array<i64: 8, 48>}, {pipeline_mode = #tpu.pipeline_mode<synchronous>, transform_indices = @transform_1, window_bounds = array<i64: 2, 8, 48>}, {pipeline_mode = #tpu.pipeline_mode<synchronous>, transform_indices = @transform_2, window_bounds = array<i64: 8, 48>}, {pipeline_mode = #tpu.pipeline_mode<synchronous>, transform_indices = @transform_3, window_bounds = array<i64: 2, 48, 256>}, {pipeline_mode = #tpu.pipeline_mode<synchronous>, transform_indices = @transform_4, window_bounds = array<i64: 2, 48, 256>}, {pipeline_mode = #tpu.pipeline_mode<synchronous>, transform_indices = @transform_5, window_bounds = array<i64: 2, 1, 256>}, {pipeline_mode = #tpu.pipeline_mode<synchronous>, transform_indices = @transform_6, window_bounds = array<i64: 2, 1, 256>}, {pipeline_mode = #tpu.pipeline_mode<synchronous>, transform_indices = @transform_7, window_bounds = array<i64: 2, 1, 256>}, {pipeline_mode = #tpu.pipeline_mode<synchronous>, transform_indices = @transform_8, window_bounds = array<i64: 2, 4, 256, 256>}, {pipeline_mode = #tpu.pipeline_mode<synchronous>, transform_indices = @transform_9, window_bounds = array<i64: 2, 4, 1, 256>}, {pipeline_mode = #tpu.pipeline_mode<synchronous>, transform_indices = @transform_10, window_bounds = array<i64: 2, 4, 1, 256>}, {pipeline_mode = #tpu.pipeline_mode<synchronous>, transform_indices = @transform_11, window_bounds = array<i64: 2, 4, 1, 256>}, {pipeline_mode = #tpu.pipeline_mode<synchronous>, transform_indices = @transform_12, window_bounds = array<i64: 2, 256, 3>}, {pipeline_mode = #tpu.pipeline_mode<synchronous>, transform_indices = @transform_13, window_bounds = array<i64: 2, 1, 3>}, {pipeline_mode = #tpu.pipeline_mode<synchronous>, transform_indices = @transform_14, window_bounds = array<i64: 8, 48>}, {pipeline_mode = #tpu.pipeline_mode<synchronous>, transform_indices = @transform_15, window_bounds = array<i64: 8, 6>}]} {
    %c0 = arith.constant 0 : index
    %c0_0 = arith.constant 0 : index
    %0 = vector.load %arg1[%c0, %c0_0] : memref<8x48xf32, #tpu.memory_space<vmem>>, vector<8x48xf32>
    %1 = arith.truncf %0 : vector<8x48xf32> to vector<8x48xbf16>
    %c0_1 = arith.constant 0 : index
    %c0_2 = arith.constant 0 : index
    %c0_3 = arith.constant 0 : index
    %2 = vector.load %arg2[%c0_1, %c0_2, %c0_3] : memref<2x8x48xf32, #tpu.memory_space<vmem>>, vector<1x8x48xf32>
    %3 = vector.shape_cast %2 : vector<1x8x48xf32> to vector<8x48xf32>
    %4 = arith.truncf %3 : vector<8x48xf32> to vector<8x48xbf16>
    %c0_4 = arith.constant 0 : index
    %c0_5 = arith.constant 0 : index
    %c0_6 = arith.constant 0 : index
    %5 = vector.load %arg4[%c0_4, %c0_5, %c0_6] : memref<2x48x256xbf16, #tpu.memory_space<vmem>>, vector<1x48x256xbf16>
    %6 = vector.shape_cast %5 : vector<1x48x256xbf16> to vector<48x256xbf16>
    %cst = arith.constant dense<0.000000e+00> : vector<8x256xf32>
    %7 = tpu.matmul %1, %6, %cst {dimension_numbers = #tpu.dot_dimension_numbers<[1], [0], [0], [1], [0, 0, 1, 1], [], []>} : vector<8x48xbf16>, vector<48x256xbf16>, vector<8x256xf32> -> vector<8x256xf32>
    %c0_7 = arith.constant 0 : index
    %c0_8 = arith.constant 0 : index
    %c0_9 = arith.constant 0 : index
    %8 = vector.load %arg5[%c0_7, %c0_8, %c0_9] : memref<2x48x256xbf16, #tpu.memory_space<vmem>>, vector<1x48x256xbf16>
    %9 = vector.shape_cast %8 : vector<1x48x256xbf16> to vector<48x256xbf16>
    %cst_10 = arith.constant dense<0.000000e+00> : vector<8x256xf32>
    %10 = tpu.matmul %4, %9, %cst_10 {dimension_numbers = #tpu.dot_dimension_numbers<[1], [0], [0], [1], [0, 0, 1, 1], [], []>} : vector<8x48xbf16>, vector<48x256xbf16>, vector<8x256xf32> -> vector<8x256xf32>
    %11 = arith.addf %7, %10 : vector<8x256xf32>
    %c0_11 = arith.constant 0 : index
    %c0_12 = arith.constant 0 : index
    %c0_13 = arith.constant 0 : index
    %12 = vector.load %arg6[%c0_11, %c0_12, %c0_13] : memref<2x1x256xf32, #tpu.memory_space<vmem>>, vector<1x1x256xf32>
    %13 = vector.shape_cast %12 : vector<1x1x256xf32> to vector<1x256xf32>
    %14 = vector.broadcast %13 : vector<1x256xf32> to vector<8x256xf32>
    %15 = arith.addf %11, %14 : vector<8x256xf32>
    %c0_14 = arith.constant 0 : index
    %c0_15 = arith.constant 0 : index
    %c0_16 = arith.constant 0 : index
    %16 = vector.load %arg7[%c0_14, %c0_15, %c0_16] : memref<2x1x256xf32, #tpu.memory_space<vmem>>, vector<1x1x256xf32>
    %17 = vector.shape_cast %16 : vector<1x1x256xf32> to vector<1x256xf32>
    %c0_17 = arith.constant 0 : index
    %c0_18 = arith.constant 0 : index
    %c0_19 = arith.constant 0 : index
    %18 = vector.load %arg8[%c0_17, %c0_18, %c0_19] : memref<2x1x256xf32, #tpu.memory_space<vmem>>, vector<1x1x256xf32>
    %19 = vector.shape_cast %18 : vector<1x1x256xf32> to vector<1x256xf32>
    %cst_20 = arith.constant dense<0.000000e+00> : vector<256xf32>
    %20 = vector.multi_reduction <add>, %15, %cst_20 [0] : vector<8x256xf32> to vector<256xf32>
    %21 = vector.shape_cast %20 : vector<256xf32> to vector<1x256xf32>
    %cst_21 = arith.constant 8.000000e+00 : f32
    %22 = vector.broadcast %cst_21 : f32 to vector<1x256xf32>
    %23 = arith.divf %21, %22 : vector<1x256xf32>
    %24 = arith.mulf %15, %15 : vector<8x256xf32>
    %cst_22 = arith.constant dense<0.000000e+00> : vector<256xf32>
    %25 = vector.multi_reduction <add>, %24, %cst_22 [0] : vector<8x256xf32> to vector<256xf32>
    %26 = vector.shape_cast %25 : vector<256xf32> to vector<1x256xf32>
    %cst_23 = arith.constant 8.000000e+00 : f32
    %27 = vector.broadcast %cst_23 : f32 to vector<1x256xf32>
    %28 = arith.divf %26, %27 : vector<1x256xf32>
    %29 = arith.mulf %23, %23 : vector<1x256xf32>
    %30 = arith.subf %28, %29 : vector<1x256xf32>
    %cst_24 = arith.constant 0.000000e+00 : f32
    %31 = vector.broadcast %cst_24 : f32 to vector<1x256xf32>
    %32 = arith.maximumf %30, %31 : vector<1x256xf32>
    %cst_25 = arith.constant 9.99999974E-6 : f32
    %33 = vector.broadcast %cst_25 : f32 to vector<1x256xf32>
    %34 = arith.addf %32, %33 : vector<1x256xf32>
    %35 = math.rsqrt %34 : vector<1x256xf32>
    %36 = arith.mulf %17, %35 : vector<1x256xf32>
    %37 = arith.mulf %23, %36 : vector<1x256xf32>
    %38 = arith.subf %19, %37 : vector<1x256xf32>
    %39 = vector.broadcast %36 : vector<1x256xf32> to vector<8x256xf32>
    %40 = arith.mulf %15, %39 : vector<8x256xf32>
    %41 = vector.broadcast %38 : vector<1x256xf32> to vector<8x256xf32>
    %42 = arith.addf %40, %41 : vector<8x256xf32>
    %cst_26 = arith.constant 0.00999999977 : f32
    %43 = vector.broadcast %cst_26 : f32 to vector<8x256xf32>
    %44 = arith.mulf %43, %42 : vector<8x256xf32>
    %45 = arith.maximumf %42, %44 : vector<8x256xf32>
    %46 = arith.truncf %45 : vector<8x256xf32> to vector<8x256xbf16>
    %c0_27 = arith.constant 0 : index
    %c0_28 = arith.constant 0 : index
    %c0_29 = arith.constant 0 : index
    %c0_30 = arith.constant 0 : index
    %47 = vector.load %arg9[%c0_27, %c0_28, %c0_29, %c0_30] : memref<2x4x256x256xbf16, #tpu.memory_space<vmem>>, vector<1x1x256x256xbf16>
    %48 = vector.shape_cast %47 : vector<1x1x256x256xbf16> to vector<256x256xbf16>
    %cst_31 = arith.constant dense<0.000000e+00> : vector<8x256xf32>
    %49 = tpu.matmul %46, %48, %cst_31 {dimension_numbers = #tpu.dot_dimension_numbers<[1], [0], [0], [1], [0, 0, 1, 1], [], []>} : vector<8x256xbf16>, vector<256x256xbf16>, vector<8x256xf32> -> vector<8x256xf32>
    %c0_32 = arith.constant 0 : index
    %c0_33 = arith.constant 0 : index
    %c0_34 = arith.constant 0 : index
    %c0_35 = arith.constant 0 : index
    %50 = vector.load %arg10[%c0_32, %c0_33, %c0_34, %c0_35] : memref<2x4x1x256xf32, #tpu.memory_space<vmem>>, vector<1x1x1x256xf32>
    %51 = vector.shape_cast %50 : vector<1x1x1x256xf32> to vector<1x256xf32>
    %52 = vector.broadcast %51 : vector<1x256xf32> to vector<8x256xf32>
    %53 = arith.addf %49, %52 : vector<8x256xf32>
    %c0_36 = arith.constant 0 : index
    %c0_37 = arith.constant 0 : index
    %c0_38 = arith.constant 0 : index
    %c0_39 = arith.constant 0 : index
    %54 = vector.load %arg11[%c0_36, %c0_37, %c0_38, %c0_39] : memref<2x4x1x256xf32, #tpu.memory_space<vmem>>, vector<1x1x1x256xf32>
    %55 = vector.shape_cast %54 : vector<1x1x1x256xf32> to vector<1x256xf32>
    %c0_40 = arith.constant 0 : index
    %c0_41 = arith.constant 0 : index
    %c0_42 = arith.constant 0 : index
    %c0_43 = arith.constant 0 : index
    %56 = vector.load %arg12[%c0_40, %c0_41, %c0_42, %c0_43] : memref<2x4x1x256xf32, #tpu.memory_space<vmem>>, vector<1x1x1x256xf32>
    %57 = vector.shape_cast %56 : vector<1x1x1x256xf32> to vector<1x256xf32>
    %cst_44 = arith.constant dense<0.000000e+00> : vector<256xf32>
    %58 = vector.multi_reduction <add>, %53, %cst_44 [0] : vector<8x256xf32> to vector<256xf32>
    %59 = vector.shape_cast %58 : vector<256xf32> to vector<1x256xf32>
    %cst_45 = arith.constant 8.000000e+00 : f32
    %60 = vector.broadcast %cst_45 : f32 to vector<1x256xf32>
    %61 = arith.divf %59, %60 : vector<1x256xf32>
    %62 = arith.mulf %53, %53 : vector<8x256xf32>
    %cst_46 = arith.constant dense<0.000000e+00> : vector<256xf32>
    %63 = vector.multi_reduction <add>, %62, %cst_46 [0] : vector<8x256xf32> to vector<256xf32>
    %64 = vector.shape_cast %63 : vector<256xf32> to vector<1x256xf32>
    %cst_47 = arith.constant 8.000000e+00 : f32
    %65 = vector.broadcast %cst_47 : f32 to vector<1x256xf32>
    %66 = arith.divf %64, %65 : vector<1x256xf32>
    %67 = arith.mulf %61, %61 : vector<1x256xf32>
    %68 = arith.subf %66, %67 : vector<1x256xf32>
    %cst_48 = arith.constant 0.000000e+00 : f32
    %69 = vector.broadcast %cst_48 : f32 to vector<1x256xf32>
    %70 = arith.maximumf %68, %69 : vector<1x256xf32>
    %cst_49 = arith.constant 9.99999974E-6 : f32
    %71 = vector.broadcast %cst_49 : f32 to vector<1x256xf32>
    %72 = arith.addf %70, %71 : vector<1x256xf32>
    %73 = math.rsqrt %72 : vector<1x256xf32>
    %74 = arith.mulf %55, %73 : vector<1x256xf32>
    %75 = arith.mulf %61, %74 : vector<1x256xf32>
    %76 = arith.subf %57, %75 : vector<1x256xf32>
    %77 = vector.broadcast %74 : vector<1x256xf32> to vector<8x256xf32>
    %78 = arith.mulf %53, %77 : vector<8x256xf32>
    %79 = vector.broadcast %76 : vector<1x256xf32> to vector<8x256xf32>
    %80 = arith.addf %78, %79 : vector<8x256xf32>
    %cst_50 = arith.constant 0.00999999977 : f32
    %81 = vector.broadcast %cst_50 : f32 to vector<8x256xf32>
    %82 = arith.mulf %81, %80 : vector<8x256xf32>
    %83 = arith.maximumf %80, %82 : vector<8x256xf32>
    %84 = arith.truncf %83 : vector<8x256xf32> to vector<8x256xbf16>
    %c0_51 = arith.constant 0 : index
    %c1 = arith.constant 1 : index
    %c0_52 = arith.constant 0 : index
    %c0_53 = arith.constant 0 : index
    %85 = vector.load %arg9[%c0_51, %c1, %c0_52, %c0_53] : memref<2x4x256x256xbf16, #tpu.memory_space<vmem>>, vector<1x1x256x256xbf16>
    %86 = vector.shape_cast %85 : vector<1x1x256x256xbf16> to vector<256x256xbf16>
    %cst_54 = arith.constant dense<0.000000e+00> : vector<8x256xf32>
    %87 = tpu.matmul %84, %86, %cst_54 {dimension_numbers = #tpu.dot_dimension_numbers<[1], [0], [0], [1], [0, 0, 1, 1], [], []>} : vector<8x256xbf16>, vector<256x256xbf16>, vector<8x256xf32> -> vector<8x256xf32>
    %c0_55 = arith.constant 0 : index
    %c1_56 = arith.constant 1 : index
    %c0_57 = arith.constant 0 : index
    %c0_58 = arith.constant 0 : index
    %88 = vector.load %arg10[%c0_55, %c1_56, %c0_57, %c0_58] : memref<2x4x1x256xf32, #tpu.memory_space<vmem>>, vector<1x1x1x256xf32>
    %89 = vector.shape_cast %88 : vector<1x1x1x256xf32> to vector<1x256xf32>
    %90 = vector.broadcast %89 : vector<1x256xf32> to vector<8x256xf32>
    %91 = arith.addf %87, %90 : vector<8x256xf32>
    %c0_59 = arith.constant 0 : index
    %c1_60 = arith.constant 1 : index
    %c0_61 = arith.constant 0 : index
    %c0_62 = arith.constant 0 : index
    %92 = vector.load %arg11[%c0_59, %c1_60, %c0_61, %c0_62] : memref<2x4x1x256xf32, #tpu.memory_space<vmem>>, vector<1x1x1x256xf32>
    %93 = vector.shape_cast %92 : vector<1x1x1x256xf32> to vector<1x256xf32>
    %c0_63 = arith.constant 0 : index
    %c1_64 = arith.constant 1 : index
    %c0_65 = arith.constant 0 : index
    %c0_66 = arith.constant 0 : index
    %94 = vector.load %arg12[%c0_63, %c1_64, %c0_65, %c0_66] : memref<2x4x1x256xf32, #tpu.memory_space<vmem>>, vector<1x1x1x256xf32>
    %95 = vector.shape_cast %94 : vector<1x1x1x256xf32> to vector<1x256xf32>
    %cst_67 = arith.constant dense<0.000000e+00> : vector<256xf32>
    %96 = vector.multi_reduction <add>, %91, %cst_67 [0] : vector<8x256xf32> to vector<256xf32>
    %97 = vector.shape_cast %96 : vector<256xf32> to vector<1x256xf32>
    %cst_68 = arith.constant 8.000000e+00 : f32
    %98 = vector.broadcast %cst_68 : f32 to vector<1x256xf32>
    %99 = arith.divf %97, %98 : vector<1x256xf32>
    %100 = arith.mulf %91, %91 : vector<8x256xf32>
    %cst_69 = arith.constant dense<0.000000e+00> : vector<256xf32>
    %101 = vector.multi_reduction <add>, %100, %cst_69 [0] : vector<8x256xf32> to vector<256xf32>
    %102 = vector.shape_cast %101 : vector<256xf32> to vector<1x256xf32>
    %cst_70 = arith.constant 8.000000e+00 : f32
    %103 = vector.broadcast %cst_70 : f32 to vector<1x256xf32>
    %104 = arith.divf %102, %103 : vector<1x256xf32>
    %105 = arith.mulf %99, %99 : vector<1x256xf32>
    %106 = arith.subf %104, %105 : vector<1x256xf32>
    %cst_71 = arith.constant 0.000000e+00 : f32
    %107 = vector.broadcast %cst_71 : f32 to vector<1x256xf32>
    %108 = arith.maximumf %106, %107 : vector<1x256xf32>
    %cst_72 = arith.constant 9.99999974E-6 : f32
    %109 = vector.broadcast %cst_72 : f32 to vector<1x256xf32>
    %110 = arith.addf %108, %109 : vector<1x256xf32>
    %111 = math.rsqrt %110 : vector<1x256xf32>
    %112 = arith.mulf %93, %111 : vector<1x256xf32>
    %113 = arith.mulf %99, %112 : vector<1x256xf32>
    %114 = arith.subf %95, %113 : vector<1x256xf32>
    %115 = vector.broadcast %112 : vector<1x256xf32> to vector<8x256xf32>
    %116 = arith.mulf %91, %115 : vector<8x256xf32>
    %117 = vector.broadcast %114 : vector<1x256xf32> to vector<8x256xf32>
    %118 = arith.addf %116, %117 : vector<8x256xf32>
    %cst_73 = arith.constant 0.00999999977 : f32
    %119 = vector.broadcast %cst_73 : f32 to vector<8x256xf32>
    %120 = arith.mulf %119, %118 : vector<8x256xf32>
    %121 = arith.maximumf %118, %120 : vector<8x256xf32>
    %122 = arith.truncf %121 : vector<8x256xf32> to vector<8x256xbf16>
    %c0_74 = arith.constant 0 : index
    %c2 = arith.constant 2 : index
    %c0_75 = arith.constant 0 : index
    %c0_76 = arith.constant 0 : index
    %123 = vector.load %arg9[%c0_74, %c2, %c0_75, %c0_76] : memref<2x4x256x256xbf16, #tpu.memory_space<vmem>>, vector<1x1x256x256xbf16>
    %124 = vector.shape_cast %123 : vector<1x1x256x256xbf16> to vector<256x256xbf16>
    %cst_77 = arith.constant dense<0.000000e+00> : vector<8x256xf32>
    %125 = tpu.matmul %122, %124, %cst_77 {dimension_numbers = #tpu.dot_dimension_numbers<[1], [0], [0], [1], [0, 0, 1, 1], [], []>} : vector<8x256xbf16>, vector<256x256xbf16>, vector<8x256xf32> -> vector<8x256xf32>
    %c0_78 = arith.constant 0 : index
    %c2_79 = arith.constant 2 : index
    %c0_80 = arith.constant 0 : index
    %c0_81 = arith.constant 0 : index
    %126 = vector.load %arg10[%c0_78, %c2_79, %c0_80, %c0_81] : memref<2x4x1x256xf32, #tpu.memory_space<vmem>>, vector<1x1x1x256xf32>
    %127 = vector.shape_cast %126 : vector<1x1x1x256xf32> to vector<1x256xf32>
    %128 = vector.broadcast %127 : vector<1x256xf32> to vector<8x256xf32>
    %129 = arith.addf %125, %128 : vector<8x256xf32>
    %c0_82 = arith.constant 0 : index
    %c2_83 = arith.constant 2 : index
    %c0_84 = arith.constant 0 : index
    %c0_85 = arith.constant 0 : index
    %130 = vector.load %arg11[%c0_82, %c2_83, %c0_84, %c0_85] : memref<2x4x1x256xf32, #tpu.memory_space<vmem>>, vector<1x1x1x256xf32>
    %131 = vector.shape_cast %130 : vector<1x1x1x256xf32> to vector<1x256xf32>
    %c0_86 = arith.constant 0 : index
    %c2_87 = arith.constant 2 : index
    %c0_88 = arith.constant 0 : index
    %c0_89 = arith.constant 0 : index
    %132 = vector.load %arg12[%c0_86, %c2_87, %c0_88, %c0_89] : memref<2x4x1x256xf32, #tpu.memory_space<vmem>>, vector<1x1x1x256xf32>
    %133 = vector.shape_cast %132 : vector<1x1x1x256xf32> to vector<1x256xf32>
    %cst_90 = arith.constant dense<0.000000e+00> : vector<256xf32>
    %134 = vector.multi_reduction <add>, %129, %cst_90 [0] : vector<8x256xf32> to vector<256xf32>
    %135 = vector.shape_cast %134 : vector<256xf32> to vector<1x256xf32>
    %cst_91 = arith.constant 8.000000e+00 : f32
    %136 = vector.broadcast %cst_91 : f32 to vector<1x256xf32>
    %137 = arith.divf %135, %136 : vector<1x256xf32>
    %138 = arith.mulf %129, %129 : vector<8x256xf32>
    %cst_92 = arith.constant dense<0.000000e+00> : vector<256xf32>
    %139 = vector.multi_reduction <add>, %138, %cst_92 [0] : vector<8x256xf32> to vector<256xf32>
    %140 = vector.shape_cast %139 : vector<256xf32> to vector<1x256xf32>
    %cst_93 = arith.constant 8.000000e+00 : f32
    %141 = vector.broadcast %cst_93 : f32 to vector<1x256xf32>
    %142 = arith.divf %140, %141 : vector<1x256xf32>
    %143 = arith.mulf %137, %137 : vector<1x256xf32>
    %144 = arith.subf %142, %143 : vector<1x256xf32>
    %cst_94 = arith.constant 0.000000e+00 : f32
    %145 = vector.broadcast %cst_94 : f32 to vector<1x256xf32>
    %146 = arith.maximumf %144, %145 : vector<1x256xf32>
    %cst_95 = arith.constant 9.99999974E-6 : f32
    %147 = vector.broadcast %cst_95 : f32 to vector<1x256xf32>
    %148 = arith.addf %146, %147 : vector<1x256xf32>
    %149 = math.rsqrt %148 : vector<1x256xf32>
    %150 = arith.mulf %131, %149 : vector<1x256xf32>
    %151 = arith.mulf %137, %150 : vector<1x256xf32>
    %152 = arith.subf %133, %151 : vector<1x256xf32>
    %153 = vector.broadcast %150 : vector<1x256xf32> to vector<8x256xf32>
    %154 = arith.mulf %129, %153 : vector<8x256xf32>
    %155 = vector.broadcast %152 : vector<1x256xf32> to vector<8x256xf32>
    %156 = arith.addf %154, %155 : vector<8x256xf32>
    %cst_96 = arith.constant 0.00999999977 : f32
    %157 = vector.broadcast %cst_96 : f32 to vector<8x256xf32>
    %158 = arith.mulf %157, %156 : vector<8x256xf32>
    %159 = arith.maximumf %156, %158 : vector<8x256xf32>
    %160 = arith.truncf %159 : vector<8x256xf32> to vector<8x256xbf16>
    %c0_97 = arith.constant 0 : index
    %c3 = arith.constant 3 : index
    %c0_98 = arith.constant 0 : index
    %c0_99 = arith.constant 0 : index
    %161 = vector.load %arg9[%c0_97, %c3, %c0_98, %c0_99] : memref<2x4x256x256xbf16, #tpu.memory_space<vmem>>, vector<1x1x256x256xbf16>
    %162 = vector.shape_cast %161 : vector<1x1x256x256xbf16> to vector<256x256xbf16>
    %cst_100 = arith.constant dense<0.000000e+00> : vector<8x256xf32>
    %163 = tpu.matmul %160, %162, %cst_100 {dimension_numbers = #tpu.dot_dimension_numbers<[1], [0], [0], [1], [0, 0, 1, 1], [], []>} : vector<8x256xbf16>, vector<256x256xbf16>, vector<8x256xf32> -> vector<8x256xf32>
    %c0_101 = arith.constant 0 : index
    %c3_102 = arith.constant 3 : index
    %c0_103 = arith.constant 0 : index
    %c0_104 = arith.constant 0 : index
    %164 = vector.load %arg10[%c0_101, %c3_102, %c0_103, %c0_104] : memref<2x4x1x256xf32, #tpu.memory_space<vmem>>, vector<1x1x1x256xf32>
    %165 = vector.shape_cast %164 : vector<1x1x1x256xf32> to vector<1x256xf32>
    %166 = vector.broadcast %165 : vector<1x256xf32> to vector<8x256xf32>
    %167 = arith.addf %163, %166 : vector<8x256xf32>
    %c0_105 = arith.constant 0 : index
    %c3_106 = arith.constant 3 : index
    %c0_107 = arith.constant 0 : index
    %c0_108 = arith.constant 0 : index
    %168 = vector.load %arg11[%c0_105, %c3_106, %c0_107, %c0_108] : memref<2x4x1x256xf32, #tpu.memory_space<vmem>>, vector<1x1x1x256xf32>
    %169 = vector.shape_cast %168 : vector<1x1x1x256xf32> to vector<1x256xf32>
    %c0_109 = arith.constant 0 : index
    %c3_110 = arith.constant 3 : index
    %c0_111 = arith.constant 0 : index
    %c0_112 = arith.constant 0 : index
    %170 = vector.load %arg12[%c0_109, %c3_110, %c0_111, %c0_112] : memref<2x4x1x256xf32, #tpu.memory_space<vmem>>, vector<1x1x1x256xf32>
    %171 = vector.shape_cast %170 : vector<1x1x1x256xf32> to vector<1x256xf32>
    %cst_113 = arith.constant dense<0.000000e+00> : vector<256xf32>
    %172 = vector.multi_reduction <add>, %167, %cst_113 [0] : vector<8x256xf32> to vector<256xf32>
    %173 = vector.shape_cast %172 : vector<256xf32> to vector<1x256xf32>
    %cst_114 = arith.constant 8.000000e+00 : f32
    %174 = vector.broadcast %cst_114 : f32 to vector<1x256xf32>
    %175 = arith.divf %173, %174 : vector<1x256xf32>
    %176 = arith.mulf %167, %167 : vector<8x256xf32>
    %cst_115 = arith.constant dense<0.000000e+00> : vector<256xf32>
    %177 = vector.multi_reduction <add>, %176, %cst_115 [0] : vector<8x256xf32> to vector<256xf32>
    %178 = vector.shape_cast %177 : vector<256xf32> to vector<1x256xf32>
    %cst_116 = arith.constant 8.000000e+00 : f32
    %179 = vector.broadcast %cst_116 : f32 to vector<1x256xf32>
    %180 = arith.divf %178, %179 : vector<1x256xf32>
    %181 = arith.mulf %175, %175 : vector<1x256xf32>
    %182 = arith.subf %180, %181 : vector<1x256xf32>
    %cst_117 = arith.constant 0.000000e+00 : f32
    %183 = vector.broadcast %cst_117 : f32 to vector<1x256xf32>
    %184 = arith.maximumf %182, %183 : vector<1x256xf32>
    %cst_118 = arith.constant 9.99999974E-6 : f32
    %185 = vector.broadcast %cst_118 : f32 to vector<1x256xf32>
    %186 = arith.addf %184, %185 : vector<1x256xf32>
    %187 = math.rsqrt %186 : vector<1x256xf32>
    %188 = arith.mulf %169, %187 : vector<1x256xf32>
    %189 = arith.mulf %175, %188 : vector<1x256xf32>
    %190 = arith.subf %171, %189 : vector<1x256xf32>
    %191 = vector.broadcast %188 : vector<1x256xf32> to vector<8x256xf32>
    %192 = arith.mulf %167, %191 : vector<8x256xf32>
    %193 = vector.broadcast %190 : vector<1x256xf32> to vector<8x256xf32>
    %194 = arith.addf %192, %193 : vector<8x256xf32>
    %cst_119 = arith.constant 0.00999999977 : f32
    %195 = vector.broadcast %cst_119 : f32 to vector<8x256xf32>
    %196 = arith.mulf %195, %194 : vector<8x256xf32>
    %197 = arith.maximumf %194, %196 : vector<8x256xf32>
    %198 = arith.truncf %197 : vector<8x256xf32> to vector<8x256xbf16>
    %c0_120 = arith.constant 0 : index
    %c0_121 = arith.constant 0 : index
    %c0_122 = arith.constant 0 : index
    %199 = vector.load %arg13[%c0_120, %c0_121, %c0_122] : memref<2x256x3xbf16, #tpu.memory_space<vmem>>, vector<1x256x3xbf16>
    %200 = vector.shape_cast %199 : vector<1x256x3xbf16> to vector<256x3xbf16>
    %cst_123 = arith.constant dense<0.000000e+00> : vector<8x3xf32>
    %201 = tpu.matmul %198, %200, %cst_123 {dimension_numbers = #tpu.dot_dimension_numbers<[1], [0], [0], [1], [0, 0, 1, 1], [], []>} : vector<8x256xbf16>, vector<256x3xbf16>, vector<8x3xf32> -> vector<8x3xf32>
    %c0_124 = arith.constant 0 : index
    %c0_125 = arith.constant 0 : index
    %c0_126 = arith.constant 0 : index
    %202 = vector.load %arg14[%c0_124, %c0_125, %c0_126] : memref<2x1x3xf32, #tpu.memory_space<vmem>>, vector<1x1x3xf32>
    %203 = vector.shape_cast %202 : vector<1x1x3xf32> to vector<1x3xf32>
    %204 = vector.broadcast %203 : vector<1x3xf32> to vector<8x3xf32>
    %205 = arith.addf %201, %204 : vector<8x3xf32>
    %c1_127 = arith.constant 1 : index
    %c0_128 = arith.constant 0 : index
    %c0_129 = arith.constant 0 : index
    %206 = vector.load %arg2[%c1_127, %c0_128, %c0_129] : memref<2x8x48xf32, #tpu.memory_space<vmem>>, vector<1x8x48xf32>
    %207 = vector.shape_cast %206 : vector<1x8x48xf32> to vector<8x48xf32>
    %208 = arith.truncf %207 : vector<8x48xf32> to vector<8x48xbf16>
    %c1_130 = arith.constant 1 : index
    %c0_131 = arith.constant 0 : index
    %c0_132 = arith.constant 0 : index
    %209 = vector.load %arg4[%c1_130, %c0_131, %c0_132] : memref<2x48x256xbf16, #tpu.memory_space<vmem>>, vector<1x48x256xbf16>
    %210 = vector.shape_cast %209 : vector<1x48x256xbf16> to vector<48x256xbf16>
    %cst_133 = arith.constant dense<0.000000e+00> : vector<8x256xf32>
    %211 = tpu.matmul %1, %210, %cst_133 {dimension_numbers = #tpu.dot_dimension_numbers<[1], [0], [0], [1], [0, 0, 1, 1], [], []>} : vector<8x48xbf16>, vector<48x256xbf16>, vector<8x256xf32> -> vector<8x256xf32>
    %c1_134 = arith.constant 1 : index
    %c0_135 = arith.constant 0 : index
    %c0_136 = arith.constant 0 : index
    %212 = vector.load %arg5[%c1_134, %c0_135, %c0_136] : memref<2x48x256xbf16, #tpu.memory_space<vmem>>, vector<1x48x256xbf16>
    %213 = vector.shape_cast %212 : vector<1x48x256xbf16> to vector<48x256xbf16>
    %cst_137 = arith.constant dense<0.000000e+00> : vector<8x256xf32>
    %214 = tpu.matmul %208, %213, %cst_137 {dimension_numbers = #tpu.dot_dimension_numbers<[1], [0], [0], [1], [0, 0, 1, 1], [], []>} : vector<8x48xbf16>, vector<48x256xbf16>, vector<8x256xf32> -> vector<8x256xf32>
    %215 = arith.addf %211, %214 : vector<8x256xf32>
    %c1_138 = arith.constant 1 : index
    %c0_139 = arith.constant 0 : index
    %c0_140 = arith.constant 0 : index
    %216 = vector.load %arg6[%c1_138, %c0_139, %c0_140] : memref<2x1x256xf32, #tpu.memory_space<vmem>>, vector<1x1x256xf32>
    %217 = vector.shape_cast %216 : vector<1x1x256xf32> to vector<1x256xf32>
    %218 = vector.broadcast %217 : vector<1x256xf32> to vector<8x256xf32>
    %219 = arith.addf %215, %218 : vector<8x256xf32>
    %c1_141 = arith.constant 1 : index
    %c0_142 = arith.constant 0 : index
    %c0_143 = arith.constant 0 : index
    %220 = vector.load %arg7[%c1_141, %c0_142, %c0_143] : memref<2x1x256xf32, #tpu.memory_space<vmem>>, vector<1x1x256xf32>
    %221 = vector.shape_cast %220 : vector<1x1x256xf32> to vector<1x256xf32>
    %c1_144 = arith.constant 1 : index
    %c0_145 = arith.constant 0 : index
    %c0_146 = arith.constant 0 : index
    %222 = vector.load %arg8[%c1_144, %c0_145, %c0_146] : memref<2x1x256xf32, #tpu.memory_space<vmem>>, vector<1x1x256xf32>
    %223 = vector.shape_cast %222 : vector<1x1x256xf32> to vector<1x256xf32>
    %cst_147 = arith.constant dense<0.000000e+00> : vector<256xf32>
    %224 = vector.multi_reduction <add>, %219, %cst_147 [0] : vector<8x256xf32> to vector<256xf32>
    %225 = vector.shape_cast %224 : vector<256xf32> to vector<1x256xf32>
    %cst_148 = arith.constant 8.000000e+00 : f32
    %226 = vector.broadcast %cst_148 : f32 to vector<1x256xf32>
    %227 = arith.divf %225, %226 : vector<1x256xf32>
    %228 = arith.mulf %219, %219 : vector<8x256xf32>
    %cst_149 = arith.constant dense<0.000000e+00> : vector<256xf32>
    %229 = vector.multi_reduction <add>, %228, %cst_149 [0] : vector<8x256xf32> to vector<256xf32>
    %230 = vector.shape_cast %229 : vector<256xf32> to vector<1x256xf32>
    %cst_150 = arith.constant 8.000000e+00 : f32
    %231 = vector.broadcast %cst_150 : f32 to vector<1x256xf32>
    %232 = arith.divf %230, %231 : vector<1x256xf32>
    %233 = arith.mulf %227, %227 : vector<1x256xf32>
    %234 = arith.subf %232, %233 : vector<1x256xf32>
    %cst_151 = arith.constant 0.000000e+00 : f32
    %235 = vector.broadcast %cst_151 : f32 to vector<1x256xf32>
    %236 = arith.maximumf %234, %235 : vector<1x256xf32>
    %cst_152 = arith.constant 9.99999974E-6 : f32
    %237 = vector.broadcast %cst_152 : f32 to vector<1x256xf32>
    %238 = arith.addf %236, %237 : vector<1x256xf32>
    %239 = math.rsqrt %238 : vector<1x256xf32>
    %240 = arith.mulf %221, %239 : vector<1x256xf32>
    %241 = arith.mulf %227, %240 : vector<1x256xf32>
    %242 = arith.subf %223, %241 : vector<1x256xf32>
    %243 = vector.broadcast %240 : vector<1x256xf32> to vector<8x256xf32>
    %244 = arith.mulf %219, %243 : vector<8x256xf32>
    %245 = vector.broadcast %242 : vector<1x256xf32> to vector<8x256xf32>
    %246 = arith.addf %244, %245 : vector<8x256xf32>
    %cst_153 = arith.constant 0.00999999977 : f32
    %247 = vector.broadcast %cst_153 : f32 to vector<8x256xf32>
    %248 = arith.mulf %247, %246 : vector<8x256xf32>
    %249 = arith.maximumf %246, %248 : vector<8x256xf32>
    %250 = arith.truncf %249 : vector<8x256xf32> to vector<8x256xbf16>
    %c1_154 = arith.constant 1 : index
    %c0_155 = arith.constant 0 : index
    %c0_156 = arith.constant 0 : index
    %c0_157 = arith.constant 0 : index
    %251 = vector.load %arg9[%c1_154, %c0_155, %c0_156, %c0_157] : memref<2x4x256x256xbf16, #tpu.memory_space<vmem>>, vector<1x1x256x256xbf16>
    %252 = vector.shape_cast %251 : vector<1x1x256x256xbf16> to vector<256x256xbf16>
    %cst_158 = arith.constant dense<0.000000e+00> : vector<8x256xf32>
    %253 = tpu.matmul %250, %252, %cst_158 {dimension_numbers = #tpu.dot_dimension_numbers<[1], [0], [0], [1], [0, 0, 1, 1], [], []>} : vector<8x256xbf16>, vector<256x256xbf16>, vector<8x256xf32> -> vector<8x256xf32>
    %c1_159 = arith.constant 1 : index
    %c0_160 = arith.constant 0 : index
    %c0_161 = arith.constant 0 : index
    %c0_162 = arith.constant 0 : index
    %254 = vector.load %arg10[%c1_159, %c0_160, %c0_161, %c0_162] : memref<2x4x1x256xf32, #tpu.memory_space<vmem>>, vector<1x1x1x256xf32>
    %255 = vector.shape_cast %254 : vector<1x1x1x256xf32> to vector<1x256xf32>
    %256 = vector.broadcast %255 : vector<1x256xf32> to vector<8x256xf32>
    %257 = arith.addf %253, %256 : vector<8x256xf32>
    %c1_163 = arith.constant 1 : index
    %c0_164 = arith.constant 0 : index
    %c0_165 = arith.constant 0 : index
    %c0_166 = arith.constant 0 : index
    %258 = vector.load %arg11[%c1_163, %c0_164, %c0_165, %c0_166] : memref<2x4x1x256xf32, #tpu.memory_space<vmem>>, vector<1x1x1x256xf32>
    %259 = vector.shape_cast %258 : vector<1x1x1x256xf32> to vector<1x256xf32>
    %c1_167 = arith.constant 1 : index
    %c0_168 = arith.constant 0 : index
    %c0_169 = arith.constant 0 : index
    %c0_170 = arith.constant 0 : index
    %260 = vector.load %arg12[%c1_167, %c0_168, %c0_169, %c0_170] : memref<2x4x1x256xf32, #tpu.memory_space<vmem>>, vector<1x1x1x256xf32>
    %261 = vector.shape_cast %260 : vector<1x1x1x256xf32> to vector<1x256xf32>
    %cst_171 = arith.constant dense<0.000000e+00> : vector<256xf32>
    %262 = vector.multi_reduction <add>, %257, %cst_171 [0] : vector<8x256xf32> to vector<256xf32>
    %263 = vector.shape_cast %262 : vector<256xf32> to vector<1x256xf32>
    %cst_172 = arith.constant 8.000000e+00 : f32
    %264 = vector.broadcast %cst_172 : f32 to vector<1x256xf32>
    %265 = arith.divf %263, %264 : vector<1x256xf32>
    %266 = arith.mulf %257, %257 : vector<8x256xf32>
    %cst_173 = arith.constant dense<0.000000e+00> : vector<256xf32>
    %267 = vector.multi_reduction <add>, %266, %cst_173 [0] : vector<8x256xf32> to vector<256xf32>
    %268 = vector.shape_cast %267 : vector<256xf32> to vector<1x256xf32>
    %cst_174 = arith.constant 8.000000e+00 : f32
    %269 = vector.broadcast %cst_174 : f32 to vector<1x256xf32>
    %270 = arith.divf %268, %269 : vector<1x256xf32>
    %271 = arith.mulf %265, %265 : vector<1x256xf32>
    %272 = arith.subf %270, %271 : vector<1x256xf32>
    %cst_175 = arith.constant 0.000000e+00 : f32
    %273 = vector.broadcast %cst_175 : f32 to vector<1x256xf32>
    %274 = arith.maximumf %272, %273 : vector<1x256xf32>
    %cst_176 = arith.constant 9.99999974E-6 : f32
    %275 = vector.broadcast %cst_176 : f32 to vector<1x256xf32>
    %276 = arith.addf %274, %275 : vector<1x256xf32>
    %277 = math.rsqrt %276 : vector<1x256xf32>
    %278 = arith.mulf %259, %277 : vector<1x256xf32>
    %279 = arith.mulf %265, %278 : vector<1x256xf32>
    %280 = arith.subf %261, %279 : vector<1x256xf32>
    %281 = vector.broadcast %278 : vector<1x256xf32> to vector<8x256xf32>
    %282 = arith.mulf %257, %281 : vector<8x256xf32>
    %283 = vector.broadcast %280 : vector<1x256xf32> to vector<8x256xf32>
    %284 = arith.addf %282, %283 : vector<8x256xf32>
    %cst_177 = arith.constant 0.00999999977 : f32
    %285 = vector.broadcast %cst_177 : f32 to vector<8x256xf32>
    %286 = arith.mulf %285, %284 : vector<8x256xf32>
    %287 = arith.maximumf %284, %286 : vector<8x256xf32>
    %288 = arith.truncf %287 : vector<8x256xf32> to vector<8x256xbf16>
    %c1_178 = arith.constant 1 : index
    %c1_179 = arith.constant 1 : index
    %c0_180 = arith.constant 0 : index
    %c0_181 = arith.constant 0 : index
    %289 = vector.load %arg9[%c1_178, %c1_179, %c0_180, %c0_181] : memref<2x4x256x256xbf16, #tpu.memory_space<vmem>>, vector<1x1x256x256xbf16>
    %290 = vector.shape_cast %289 : vector<1x1x256x256xbf16> to vector<256x256xbf16>
    %cst_182 = arith.constant dense<0.000000e+00> : vector<8x256xf32>
    %291 = tpu.matmul %288, %290, %cst_182 {dimension_numbers = #tpu.dot_dimension_numbers<[1], [0], [0], [1], [0, 0, 1, 1], [], []>} : vector<8x256xbf16>, vector<256x256xbf16>, vector<8x256xf32> -> vector<8x256xf32>
    %c1_183 = arith.constant 1 : index
    %c1_184 = arith.constant 1 : index
    %c0_185 = arith.constant 0 : index
    %c0_186 = arith.constant 0 : index
    %292 = vector.load %arg10[%c1_183, %c1_184, %c0_185, %c0_186] : memref<2x4x1x256xf32, #tpu.memory_space<vmem>>, vector<1x1x1x256xf32>
    %293 = vector.shape_cast %292 : vector<1x1x1x256xf32> to vector<1x256xf32>
    %294 = vector.broadcast %293 : vector<1x256xf32> to vector<8x256xf32>
    %295 = arith.addf %291, %294 : vector<8x256xf32>
    %c1_187 = arith.constant 1 : index
    %c1_188 = arith.constant 1 : index
    %c0_189 = arith.constant 0 : index
    %c0_190 = arith.constant 0 : index
    %296 = vector.load %arg11[%c1_187, %c1_188, %c0_189, %c0_190] : memref<2x4x1x256xf32, #tpu.memory_space<vmem>>, vector<1x1x1x256xf32>
    %297 = vector.shape_cast %296 : vector<1x1x1x256xf32> to vector<1x256xf32>
    %c1_191 = arith.constant 1 : index
    %c1_192 = arith.constant 1 : index
    %c0_193 = arith.constant 0 : index
    %c0_194 = arith.constant 0 : index
    %298 = vector.load %arg12[%c1_191, %c1_192, %c0_193, %c0_194] : memref<2x4x1x256xf32, #tpu.memory_space<vmem>>, vector<1x1x1x256xf32>
    %299 = vector.shape_cast %298 : vector<1x1x1x256xf32> to vector<1x256xf32>
    %cst_195 = arith.constant dense<0.000000e+00> : vector<256xf32>
    %300 = vector.multi_reduction <add>, %295, %cst_195 [0] : vector<8x256xf32> to vector<256xf32>
    %301 = vector.shape_cast %300 : vector<256xf32> to vector<1x256xf32>
    %cst_196 = arith.constant 8.000000e+00 : f32
    %302 = vector.broadcast %cst_196 : f32 to vector<1x256xf32>
    %303 = arith.divf %301, %302 : vector<1x256xf32>
    %304 = arith.mulf %295, %295 : vector<8x256xf32>
    %cst_197 = arith.constant dense<0.000000e+00> : vector<256xf32>
    %305 = vector.multi_reduction <add>, %304, %cst_197 [0] : vector<8x256xf32> to vector<256xf32>
    %306 = vector.shape_cast %305 : vector<256xf32> to vector<1x256xf32>
    %cst_198 = arith.constant 8.000000e+00 : f32
    %307 = vector.broadcast %cst_198 : f32 to vector<1x256xf32>
    %308 = arith.divf %306, %307 : vector<1x256xf32>
    %309 = arith.mulf %303, %303 : vector<1x256xf32>
    %310 = arith.subf %308, %309 : vector<1x256xf32>
    %cst_199 = arith.constant 0.000000e+00 : f32
    %311 = vector.broadcast %cst_199 : f32 to vector<1x256xf32>
    %312 = arith.maximumf %310, %311 : vector<1x256xf32>
    %cst_200 = arith.constant 9.99999974E-6 : f32
    %313 = vector.broadcast %cst_200 : f32 to vector<1x256xf32>
    %314 = arith.addf %312, %313 : vector<1x256xf32>
    %315 = math.rsqrt %314 : vector<1x256xf32>
    %316 = arith.mulf %297, %315 : vector<1x256xf32>
    %317 = arith.mulf %303, %316 : vector<1x256xf32>
    %318 = arith.subf %299, %317 : vector<1x256xf32>
    %319 = vector.broadcast %316 : vector<1x256xf32> to vector<8x256xf32>
    %320 = arith.mulf %295, %319 : vector<8x256xf32>
    %321 = vector.broadcast %318 : vector<1x256xf32> to vector<8x256xf32>
    %322 = arith.addf %320, %321 : vector<8x256xf32>
    %cst_201 = arith.constant 0.00999999977 : f32
    %323 = vector.broadcast %cst_201 : f32 to vector<8x256xf32>
    %324 = arith.mulf %323, %322 : vector<8x256xf32>
    %325 = arith.maximumf %322, %324 : vector<8x256xf32>
    %326 = arith.truncf %325 : vector<8x256xf32> to vector<8x256xbf16>
    %c1_202 = arith.constant 1 : index
    %c2_203 = arith.constant 2 : index
    %c0_204 = arith.constant 0 : index
    %c0_205 = arith.constant 0 : index
    %327 = vector.load %arg9[%c1_202, %c2_203, %c0_204, %c0_205] : memref<2x4x256x256xbf16, #tpu.memory_space<vmem>>, vector<1x1x256x256xbf16>
    %328 = vector.shape_cast %327 : vector<1x1x256x256xbf16> to vector<256x256xbf16>
    %cst_206 = arith.constant dense<0.000000e+00> : vector<8x256xf32>
    %329 = tpu.matmul %326, %328, %cst_206 {dimension_numbers = #tpu.dot_dimension_numbers<[1], [0], [0], [1], [0, 0, 1, 1], [], []>} : vector<8x256xbf16>, vector<256x256xbf16>, vector<8x256xf32> -> vector<8x256xf32>
    %c1_207 = arith.constant 1 : index
    %c2_208 = arith.constant 2 : index
    %c0_209 = arith.constant 0 : index
    %c0_210 = arith.constant 0 : index
    %330 = vector.load %arg10[%c1_207, %c2_208, %c0_209, %c0_210] : memref<2x4x1x256xf32, #tpu.memory_space<vmem>>, vector<1x1x1x256xf32>
    %331 = vector.shape_cast %330 : vector<1x1x1x256xf32> to vector<1x256xf32>
    %332 = vector.broadcast %331 : vector<1x256xf32> to vector<8x256xf32>
    %333 = arith.addf %329, %332 : vector<8x256xf32>
    %c1_211 = arith.constant 1 : index
    %c2_212 = arith.constant 2 : index
    %c0_213 = arith.constant 0 : index
    %c0_214 = arith.constant 0 : index
    %334 = vector.load %arg11[%c1_211, %c2_212, %c0_213, %c0_214] : memref<2x4x1x256xf32, #tpu.memory_space<vmem>>, vector<1x1x1x256xf32>
    %335 = vector.shape_cast %334 : vector<1x1x1x256xf32> to vector<1x256xf32>
    %c1_215 = arith.constant 1 : index
    %c2_216 = arith.constant 2 : index
    %c0_217 = arith.constant 0 : index
    %c0_218 = arith.constant 0 : index
    %336 = vector.load %arg12[%c1_215, %c2_216, %c0_217, %c0_218] : memref<2x4x1x256xf32, #tpu.memory_space<vmem>>, vector<1x1x1x256xf32>
    %337 = vector.shape_cast %336 : vector<1x1x1x256xf32> to vector<1x256xf32>
    %cst_219 = arith.constant dense<0.000000e+00> : vector<256xf32>
    %338 = vector.multi_reduction <add>, %333, %cst_219 [0] : vector<8x256xf32> to vector<256xf32>
    %339 = vector.shape_cast %338 : vector<256xf32> to vector<1x256xf32>
    %cst_220 = arith.constant 8.000000e+00 : f32
    %340 = vector.broadcast %cst_220 : f32 to vector<1x256xf32>
    %341 = arith.divf %339, %340 : vector<1x256xf32>
    %342 = arith.mulf %333, %333 : vector<8x256xf32>
    %cst_221 = arith.constant dense<0.000000e+00> : vector<256xf32>
    %343 = vector.multi_reduction <add>, %342, %cst_221 [0] : vector<8x256xf32> to vector<256xf32>
    %344 = vector.shape_cast %343 : vector<256xf32> to vector<1x256xf32>
    %cst_222 = arith.constant 8.000000e+00 : f32
    %345 = vector.broadcast %cst_222 : f32 to vector<1x256xf32>
    %346 = arith.divf %344, %345 : vector<1x256xf32>
    %347 = arith.mulf %341, %341 : vector<1x256xf32>
    %348 = arith.subf %346, %347 : vector<1x256xf32>
    %cst_223 = arith.constant 0.000000e+00 : f32
    %349 = vector.broadcast %cst_223 : f32 to vector<1x256xf32>
    %350 = arith.maximumf %348, %349 : vector<1x256xf32>
    %cst_224 = arith.constant 9.99999974E-6 : f32
    %351 = vector.broadcast %cst_224 : f32 to vector<1x256xf32>
    %352 = arith.addf %350, %351 : vector<1x256xf32>
    %353 = math.rsqrt %352 : vector<1x256xf32>
    %354 = arith.mulf %335, %353 : vector<1x256xf32>
    %355 = arith.mulf %341, %354 : vector<1x256xf32>
    %356 = arith.subf %337, %355 : vector<1x256xf32>
    %357 = vector.broadcast %354 : vector<1x256xf32> to vector<8x256xf32>
    %358 = arith.mulf %333, %357 : vector<8x256xf32>
    %359 = vector.broadcast %356 : vector<1x256xf32> to vector<8x256xf32>
    %360 = arith.addf %358, %359 : vector<8x256xf32>
    %cst_225 = arith.constant 0.00999999977 : f32
    %361 = vector.broadcast %cst_225 : f32 to vector<8x256xf32>
    %362 = arith.mulf %361, %360 : vector<8x256xf32>
    %363 = arith.maximumf %360, %362 : vector<8x256xf32>
    %364 = arith.truncf %363 : vector<8x256xf32> to vector<8x256xbf16>
    %c1_226 = arith.constant 1 : index
    %c3_227 = arith.constant 3 : index
    %c0_228 = arith.constant 0 : index
    %c0_229 = arith.constant 0 : index
    %365 = vector.load %arg9[%c1_226, %c3_227, %c0_228, %c0_229] : memref<2x4x256x256xbf16, #tpu.memory_space<vmem>>, vector<1x1x256x256xbf16>
    %366 = vector.shape_cast %365 : vector<1x1x256x256xbf16> to vector<256x256xbf16>
    %cst_230 = arith.constant dense<0.000000e+00> : vector<8x256xf32>
    %367 = tpu.matmul %364, %366, %cst_230 {dimension_numbers = #tpu.dot_dimension_numbers<[1], [0], [0], [1], [0, 0, 1, 1], [], []>} : vector<8x256xbf16>, vector<256x256xbf16>, vector<8x256xf32> -> vector<8x256xf32>
    %c1_231 = arith.constant 1 : index
    %c3_232 = arith.constant 3 : index
    %c0_233 = arith.constant 0 : index
    %c0_234 = arith.constant 0 : index
    %368 = vector.load %arg10[%c1_231, %c3_232, %c0_233, %c0_234] : memref<2x4x1x256xf32, #tpu.memory_space<vmem>>, vector<1x1x1x256xf32>
    %369 = vector.shape_cast %368 : vector<1x1x1x256xf32> to vector<1x256xf32>
    %370 = vector.broadcast %369 : vector<1x256xf32> to vector<8x256xf32>
    %371 = arith.addf %367, %370 : vector<8x256xf32>
    %c1_235 = arith.constant 1 : index
    %c3_236 = arith.constant 3 : index
    %c0_237 = arith.constant 0 : index
    %c0_238 = arith.constant 0 : index
    %372 = vector.load %arg11[%c1_235, %c3_236, %c0_237, %c0_238] : memref<2x4x1x256xf32, #tpu.memory_space<vmem>>, vector<1x1x1x256xf32>
    %373 = vector.shape_cast %372 : vector<1x1x1x256xf32> to vector<1x256xf32>
    %c1_239 = arith.constant 1 : index
    %c3_240 = arith.constant 3 : index
    %c0_241 = arith.constant 0 : index
    %c0_242 = arith.constant 0 : index
    %374 = vector.load %arg12[%c1_239, %c3_240, %c0_241, %c0_242] : memref<2x4x1x256xf32, #tpu.memory_space<vmem>>, vector<1x1x1x256xf32>
    %375 = vector.shape_cast %374 : vector<1x1x1x256xf32> to vector<1x256xf32>
    %cst_243 = arith.constant dense<0.000000e+00> : vector<256xf32>
    %376 = vector.multi_reduction <add>, %371, %cst_243 [0] : vector<8x256xf32> to vector<256xf32>
    %377 = vector.shape_cast %376 : vector<256xf32> to vector<1x256xf32>
    %cst_244 = arith.constant 8.000000e+00 : f32
    %378 = vector.broadcast %cst_244 : f32 to vector<1x256xf32>
    %379 = arith.divf %377, %378 : vector<1x256xf32>
    %380 = arith.mulf %371, %371 : vector<8x256xf32>
    %cst_245 = arith.constant dense<0.000000e+00> : vector<256xf32>
    %381 = vector.multi_reduction <add>, %380, %cst_245 [0] : vector<8x256xf32> to vector<256xf32>
    %382 = vector.shape_cast %381 : vector<256xf32> to vector<1x256xf32>
    %cst_246 = arith.constant 8.000000e+00 : f32
    %383 = vector.broadcast %cst_246 : f32 to vector<1x256xf32>
    %384 = arith.divf %382, %383 : vector<1x256xf32>
    %385 = arith.mulf %379, %379 : vector<1x256xf32>
    %386 = arith.subf %384, %385 : vector<1x256xf32>
    %cst_247 = arith.constant 0.000000e+00 : f32
    %387 = vector.broadcast %cst_247 : f32 to vector<1x256xf32>
    %388 = arith.maximumf %386, %387 : vector<1x256xf32>
    %cst_248 = arith.constant 9.99999974E-6 : f32
    %389 = vector.broadcast %cst_248 : f32 to vector<1x256xf32>
    %390 = arith.addf %388, %389 : vector<1x256xf32>
    %391 = math.rsqrt %390 : vector<1x256xf32>
    %392 = arith.mulf %373, %391 : vector<1x256xf32>
    %393 = arith.mulf %379, %392 : vector<1x256xf32>
    %394 = arith.subf %375, %393 : vector<1x256xf32>
    %395 = vector.broadcast %392 : vector<1x256xf32> to vector<8x256xf32>
    %396 = arith.mulf %371, %395 : vector<8x256xf32>
    %397 = vector.broadcast %394 : vector<1x256xf32> to vector<8x256xf32>
    %398 = arith.addf %396, %397 : vector<8x256xf32>
    %cst_249 = arith.constant 0.00999999977 : f32
    %399 = vector.broadcast %cst_249 : f32 to vector<8x256xf32>
    %400 = arith.mulf %399, %398 : vector<8x256xf32>
    %401 = arith.maximumf %398, %400 : vector<8x256xf32>
    %402 = arith.truncf %401 : vector<8x256xf32> to vector<8x256xbf16>
    %c1_250 = arith.constant 1 : index
    %c0_251 = arith.constant 0 : index
    %c0_252 = arith.constant 0 : index
    %403 = vector.load %arg13[%c1_250, %c0_251, %c0_252] : memref<2x256x3xbf16, #tpu.memory_space<vmem>>, vector<1x256x3xbf16>
    %404 = vector.shape_cast %403 : vector<1x256x3xbf16> to vector<256x3xbf16>
    %cst_253 = arith.constant dense<0.000000e+00> : vector<8x3xf32>
    %405 = tpu.matmul %402, %404, %cst_253 {dimension_numbers = #tpu.dot_dimension_numbers<[1], [0], [0], [1], [0, 0, 1, 1], [], []>} : vector<8x256xbf16>, vector<256x3xbf16>, vector<8x3xf32> -> vector<8x3xf32>
    %c1_254 = arith.constant 1 : index
    %c0_255 = arith.constant 0 : index
    %c0_256 = arith.constant 0 : index
    %406 = vector.load %arg14[%c1_254, %c0_255, %c0_256] : memref<2x1x3xf32, #tpu.memory_space<vmem>>, vector<1x1x3xf32>
    %407 = vector.shape_cast %406 : vector<1x1x3xf32> to vector<1x3xf32>
    %408 = vector.broadcast %407 : vector<1x3xf32> to vector<8x3xf32>
    %409 = arith.addf %405, %408 : vector<8x3xf32>
    %410 = math.tanh %205 : vector<8x3xf32>
    %cst_257 = arith.constant 3.141500e+00 : f32
    %411 = vector.broadcast %cst_257 : f32 to vector<8x3xf32>
    %412 = arith.mulf %410, %411 : vector<8x3xf32>
    %413 = vector.extract_strided_slice %409 {offsets = [0, 2], sizes = [8, 1], strides = [1, 1]} : vector<8x3xf32> to vector<8x1xf32>
    %414 = vector.extract_strided_slice %409 {offsets = [0, 0], sizes = [8, 2], strides = [1, 1]} : vector<8x3xf32> to vector<8x2xf32>
    %415 = arith.mulf %413, %413 : vector<8x1xf32>
    %416 = tpu.concatenate %414, %415 in 1 : vector<8x2xf32>, vector<8x1xf32> -> vector<8x3xf32>
    %417 = vector.extract_strided_slice %412 {offsets = [0, 0], sizes = [8, 1], strides = [1, 1]} : vector<8x3xf32> to vector<8x1xf32>
    %418 = vector.extract_strided_slice %412 {offsets = [0, 1], sizes = [8, 1], strides = [1, 1]} : vector<8x3xf32> to vector<8x1xf32>
    %419 = vector.extract_strided_slice %412 {offsets = [0, 2], sizes = [8, 1], strides = [1, 1]} : vector<8x3xf32> to vector<8x1xf32>
    %420 = arith.mulf %417, %417 : vector<8x1xf32>
    %421 = arith.mulf %418, %418 : vector<8x1xf32>
    %422 = arith.addf %420, %421 : vector<8x1xf32>
    %423 = arith.mulf %419, %419 : vector<8x1xf32>
    %424 = arith.addf %422, %423 : vector<8x1xf32>
    %425 = math.sqrt %424 : vector<8x1xf32>
    %cst_258 = arith.constant 9.99999997E-7 : f32
    %426 = vector.broadcast %cst_258 : f32 to vector<8x1xf32>
    %427 = arith.addf %425, %426 : vector<8x1xf32>
    %cst_259 = arith.constant 1.000000e+00 : f32
    %428 = vector.broadcast %cst_259 : f32 to vector<8x1xf32>
    %429 = arith.divf %428, %427 : vector<8x1xf32>
    %430 = arith.mulf %417, %429 : vector<8x1xf32>
    %431 = arith.mulf %418, %429 : vector<8x1xf32>
    %432 = arith.mulf %419, %429 : vector<8x1xf32>
    %433 = math.cos %425 : vector<8x1xf32>
    %434 = math.sin %425 : vector<8x1xf32>
    %cst_260 = arith.constant 1.000000e+00 : f32
    %435 = vector.broadcast %cst_260 : f32 to vector<8x1xf32>
    %436 = arith.subf %435, %433 : vector<8x1xf32>
    %437 = arith.mulf %430, %430 : vector<8x1xf32>
    %438 = arith.mulf %437, %436 : vector<8x1xf32>
    %439 = arith.addf %433, %438 : vector<8x1xf32>
    %440 = arith.mulf %430, %431 : vector<8x1xf32>
    %441 = arith.mulf %440, %436 : vector<8x1xf32>
    %442 = arith.mulf %432, %434 : vector<8x1xf32>
    %443 = arith.subf %441, %442 : vector<8x1xf32>
    %444 = arith.mulf %431, %434 : vector<8x1xf32>
    %445 = arith.mulf %430, %432 : vector<8x1xf32>
    %446 = arith.mulf %445, %436 : vector<8x1xf32>
    %447 = arith.addf %444, %446 : vector<8x1xf32>
    %448 = arith.mulf %432, %434 : vector<8x1xf32>
    %449 = arith.mulf %430, %431 : vector<8x1xf32>
    %450 = arith.mulf %449, %436 : vector<8x1xf32>
    %451 = arith.addf %448, %450 : vector<8x1xf32>
    %452 = arith.mulf %431, %431 : vector<8x1xf32>
    %453 = arith.mulf %452, %436 : vector<8x1xf32>
    %454 = arith.addf %433, %453 : vector<8x1xf32>
    %cst_261 = arith.constant 0.000000e+00 : f32
    %455 = vector.broadcast %cst_261 : f32 to vector<8x1xf32>
    %456 = arith.subf %455, %430 : vector<8x1xf32>
    %457 = arith.mulf %456, %434 : vector<8x1xf32>
    %458 = arith.mulf %431, %432 : vector<8x1xf32>
    %459 = arith.mulf %458, %436 : vector<8x1xf32>
    %460 = arith.addf %457, %459 : vector<8x1xf32>
    %cst_262 = arith.constant 0.000000e+00 : f32
    %461 = vector.broadcast %cst_262 : f32 to vector<8x1xf32>
    %462 = arith.subf %461, %431 : vector<8x1xf32>
    %463 = arith.mulf %462, %434 : vector<8x1xf32>
    %464 = arith.mulf %430, %432 : vector<8x1xf32>
    %465 = arith.mulf %464, %436 : vector<8x1xf32>
    %466 = arith.addf %463, %465 : vector<8x1xf32>
    %467 = arith.mulf %430, %434 : vector<8x1xf32>
    %468 = arith.mulf %431, %432 : vector<8x1xf32>
    %469 = arith.mulf %468, %436 : vector<8x1xf32>
    %470 = arith.addf %467, %469 : vector<8x1xf32>
    %471 = arith.mulf %432, %432 : vector<8x1xf32>
    %472 = arith.mulf %471, %436 : vector<8x1xf32>
    %473 = arith.addf %433, %472 : vector<8x1xf32>
    %cst_263 = arith.constant 1.000000e+00 : f32
    %474 = vector.broadcast %cst_263 : f32 to vector<8x1xf32>
    %cst_264 = arith.constant 9.99999997E-7 : f32
    %475 = vector.broadcast %cst_264 : f32 to vector<8x1xf32>
    %476 = arith.cmpf ogt, %424, %475 : vector<8x1xf32>
    %477 = arith.select %476, %439, %474 : vector<8x1xi1>, vector<8x1xf32>
    %cst_265 = arith.constant 0.000000e+00 : f32
    %478 = vector.broadcast %cst_265 : f32 to vector<8x1xf32>
    %479 = arith.subf %478, %419 : vector<8x1xf32>
    %480 = arith.select %476, %443, %479 : vector<8x1xi1>, vector<8x1xf32>
    %481 = arith.select %476, %447, %418 : vector<8x1xi1>, vector<8x1xf32>
    %482 = arith.select %476, %451, %419 : vector<8x1xi1>, vector<8x1xf32>
    %483 = arith.select %476, %454, %474 : vector<8x1xi1>, vector<8x1xf32>
    %cst_266 = arith.constant 0.000000e+00 : f32
    %484 = vector.broadcast %cst_266 : f32 to vector<8x1xf32>
    %485 = arith.subf %484, %417 : vector<8x1xf32>
    %486 = arith.select %476, %460, %485 : vector<8x1xi1>, vector<8x1xf32>
    %cst_267 = arith.constant 0.000000e+00 : f32
    %487 = vector.broadcast %cst_267 : f32 to vector<8x1xf32>
    %488 = arith.subf %487, %418 : vector<8x1xf32>
    %489 = arith.select %476, %466, %488 : vector<8x1xi1>, vector<8x1xf32>
    %490 = arith.select %476, %470, %417 : vector<8x1xi1>, vector<8x1xf32>
    %491 = arith.select %476, %473, %474 : vector<8x1xi1>, vector<8x1xf32>
    %c0_268 = arith.constant 0 : index
    %c0_269 = arith.constant 0 : index
    %492 = vector.load %arg3[%c0_268, %c0_269] : memref<8x48xf32, #tpu.memory_space<vmem>>, vector<8x16xf32>
    %c0_270 = arith.constant 0 : index
    %c16 = arith.constant 16 : index
    %493 = vector.load %arg3[%c0_270, %c16] : memref<8x48xf32, #tpu.memory_space<vmem>>, vector<8x16xf32>
    %c0_271 = arith.constant 0 : index
    %c32 = arith.constant 32 : index
    %494 = vector.load %arg3[%c0_271, %c32] : memref<8x48xf32, #tpu.memory_space<vmem>>, vector<8x16xf32>
    %495 = vector.broadcast %477 : vector<8x1xf32> to vector<8x16xf32>
    %496 = arith.mulf %495, %492 : vector<8x16xf32>
    %497 = vector.broadcast %480 : vector<8x1xf32> to vector<8x16xf32>
    %498 = arith.mulf %497, %493 : vector<8x16xf32>
    %499 = arith.addf %496, %498 : vector<8x16xf32>
    %500 = vector.broadcast %481 : vector<8x1xf32> to vector<8x16xf32>
    %501 = arith.mulf %500, %494 : vector<8x16xf32>
    %502 = arith.addf %499, %501 : vector<8x16xf32>
    %503 = vector.extract_strided_slice %416 {offsets = [0, 0], sizes = [8, 1], strides = [1, 1]} : vector<8x3xf32> to vector<8x1xf32>
    %504 = vector.broadcast %503 : vector<8x1xf32> to vector<8x16xf32>
    %505 = arith.addf %502, %504 : vector<8x16xf32>
    %506 = vector.broadcast %482 : vector<8x1xf32> to vector<8x16xf32>
    %507 = arith.mulf %506, %492 : vector<8x16xf32>
    %508 = vector.broadcast %483 : vector<8x1xf32> to vector<8x16xf32>
    %509 = arith.mulf %508, %493 : vector<8x16xf32>
    %510 = arith.addf %507, %509 : vector<8x16xf32>
    %511 = vector.broadcast %486 : vector<8x1xf32> to vector<8x16xf32>
    %512 = arith.mulf %511, %494 : vector<8x16xf32>
    %513 = arith.addf %510, %512 : vector<8x16xf32>
    %514 = vector.extract_strided_slice %416 {offsets = [0, 1], sizes = [8, 1], strides = [1, 1]} : vector<8x3xf32> to vector<8x1xf32>
    %515 = vector.broadcast %514 : vector<8x1xf32> to vector<8x16xf32>
    %516 = arith.addf %513, %515 : vector<8x16xf32>
    %517 = vector.broadcast %489 : vector<8x1xf32> to vector<8x16xf32>
    %518 = arith.mulf %517, %492 : vector<8x16xf32>
    %519 = vector.broadcast %490 : vector<8x1xf32> to vector<8x16xf32>
    %520 = arith.mulf %519, %493 : vector<8x16xf32>
    %521 = arith.addf %518, %520 : vector<8x16xf32>
    %522 = vector.broadcast %491 : vector<8x1xf32> to vector<8x16xf32>
    %523 = arith.mulf %522, %494 : vector<8x16xf32>
    %524 = arith.addf %521, %523 : vector<8x16xf32>
    %525 = vector.extract_strided_slice %416 {offsets = [0, 2], sizes = [8, 1], strides = [1, 1]} : vector<8x3xf32> to vector<8x1xf32>
    %526 = vector.broadcast %525 : vector<8x1xf32> to vector<8x16xf32>
    %527 = arith.addf %524, %526 : vector<8x16xf32>
    %528 = tpu.concatenate %505, %516, %527 in 1 : vector<8x16xf32>, vector<8x16xf32>, vector<8x16xf32> -> vector<8x48xf32>
    %c0_272 = arith.constant 0 : index
    %c0_273 = arith.constant 0 : index
    %529 = vector.load %arg15[%c0_272, %c0_273] : memref<8x48xf32, #tpu.memory_space<vmem>>, vector<8x48xf32>
    tpu.vector_store %arg15[%c0_272, %c0_273], %528 {strides = array<i32>} : memref<8x48xf32, #tpu.memory_space<vmem>>, vector<8x48xf32>,
    %530 = tpu.concatenate %412, %416 in 1 : vector<8x3xf32>, vector<8x3xf32> -> vector<8x6xf32>
    %c0_274 = arith.constant 0 : index
    %c0_275 = arith.constant 0 : index
    %531 = vector.load %arg16[%c0_274, %c0_275] : memref<8x6xf32, #tpu.memory_space<vmem>>, vector<8x6xf32>
    tpu.vector_store %arg16[%c0_274, %c0_275], %530 {strides = array<i32>} : memref<8x6xf32, #tpu.memory_space<vmem>>, vector<8x6xf32>,
    return
  }
  func.func @transform_0(%arg0: i32) -> (i32, i32) {
    %c0_i32 = arith.constant 0 : i32
    %c0_i32_0 = arith.constant 0 : i32
    %c0_i32_1 = arith.constant 0 : i32
    return %c0_i32, %c0_i32_0 : i32, i32
  }
  func.func @transform_1(%arg0: i32) -> (i32, i32, i32) {
    %c0_i32 = arith.constant 0 : i32
    %c0_i32_0 = arith.constant 0 : i32
    %c0_i32_1 = arith.constant 0 : i32
    %c0_i32_2 = arith.constant 0 : i32
    return %c0_i32, %c0_i32_0, %c0_i32_1 : i32, i32, i32
  }
  func.func @transform_2(%arg0: i32) -> (i32, i32) {
    %c0_i32 = arith.constant 0 : i32
    %c0_i32_0 = arith.constant 0 : i32
    %c0_i32_1 = arith.constant 0 : i32
    return %c0_i32, %c0_i32_0 : i32, i32
  }
  func.func @transform_3(%arg0: i32) -> (i32, i32, i32) {
    %c0_i32 = arith.constant 0 : i32
    %c0_i32_0 = arith.constant 0 : i32
    %c0_i32_1 = arith.constant 0 : i32
    %c0_i32_2 = arith.constant 0 : i32
    return %c0_i32, %c0_i32_0, %c0_i32_1 : i32, i32, i32
  }
  func.func @transform_4(%arg0: i32) -> (i32, i32, i32) {
    %c0_i32 = arith.constant 0 : i32
    %c0_i32_0 = arith.constant 0 : i32
    %c0_i32_1 = arith.constant 0 : i32
    %c0_i32_2 = arith.constant 0 : i32
    return %c0_i32, %c0_i32_0, %c0_i32_1 : i32, i32, i32
  }
  func.func @transform_5(%arg0: i32) -> (i32, i32, i32) {
    %c0_i32 = arith.constant 0 : i32
    %c0_i32_0 = arith.constant 0 : i32
    %c0_i32_1 = arith.constant 0 : i32
    %c0_i32_2 = arith.constant 0 : i32
    return %c0_i32, %c0_i32_0, %c0_i32_1 : i32, i32, i32
  }
  func.func @transform_6(%arg0: i32) -> (i32, i32, i32) {
    %c0_i32 = arith.constant 0 : i32
    %c0_i32_0 = arith.constant 0 : i32
    %c0_i32_1 = arith.constant 0 : i32
    %c0_i32_2 = arith.constant 0 : i32
    return %c0_i32, %c0_i32_0, %c0_i32_1 : i32, i32, i32
  }
  func.func @transform_7(%arg0: i32) -> (i32, i32, i32) {
    %c0_i32 = arith.constant 0 : i32
    %c0_i32_0 = arith.constant 0 : i32
    %c0_i32_1 = arith.constant 0 : i32
    %c0_i32_2 = arith.constant 0 : i32
    return %c0_i32, %c0_i32_0, %c0_i32_1 : i32, i32, i32
  }
  func.func @transform_8(%arg0: i32) -> (i32, i32, i32, i32) {
    %c0_i32 = arith.constant 0 : i32
    %c0_i32_0 = arith.constant 0 : i32
    %c0_i32_1 = arith.constant 0 : i32
    %c0_i32_2 = arith.constant 0 : i32
    %c0_i32_3 = arith.constant 0 : i32
    return %c0_i32, %c0_i32_0, %c0_i32_1, %c0_i32_2 : i32, i32, i32, i32
  }
  func.func @transform_9(%arg0: i32) -> (i32, i32, i32, i32) {
    %c0_i32 = arith.constant 0 : i32
    %c0_i32_0 = arith.constant 0 : i32
    %c0_i32_1 = arith.constant 0 : i32
    %c0_i32_2 = arith.constant 0 : i32
    %c0_i32_3 = arith.constant 0 : i32
    return %c0_i32, %c0_i32_0, %c0_i32_1, %c0_i32_2 : i32, i32, i32, i32
  }
  func.func @transform_10(%arg0: i32) -> (i32, i32, i32, i32) {
    %c0_i32 = arith.constant 0 : i32
    %c0_i32_0 = arith.constant 0 : i32
    %c0_i32_1 = arith.constant 0 : i32
    %c0_i32_2 = arith.constant 0 : i32
    %c0_i32_3 = arith.constant 0 : i32
    return %c0_i32, %c0_i32_0, %c0_i32_1, %c0_i32_2 : i32, i32, i32, i32
  }
  func.func @transform_11(%arg0: i32) -> (i32, i32, i32, i32) {
    %c0_i32 = arith.constant 0 : i32
    %c0_i32_0 = arith.constant 0 : i32
    %c0_i32_1 = arith.constant 0 : i32
    %c0_i32_2 = arith.constant 0 : i32
    %c0_i32_3 = arith.constant 0 : i32
    return %c0_i32, %c0_i32_0, %c0_i32_1, %c0_i32_2 : i32, i32, i32, i32
  }
  func.func @transform_12(%arg0: i32) -> (i32, i32, i32) {
    %c0_i32 = arith.constant 0 : i32
    %c0_i32_0 = arith.constant 0 : i32
    %c0_i32_1 = arith.constant 0 : i32
    %c0_i32_2 = arith.constant 0 : i32
    return %c0_i32, %c0_i32_0, %c0_i32_1 : i32, i32, i32
  }
  func.func @transform_13(%arg0: i32) -> (i32, i32, i32) {
    %c0_i32 = arith.constant 0 : i32
    %c0_i32_0 = arith.constant 0 : i32
    %c0_i32_1 = arith.constant 0 : i32
    %c0_i32_2 = arith.constant 0 : i32
    return %c0_i32, %c0_i32_0, %c0_i32_1 : i32, i32, i32
  }
  func.func @transform_14(%arg0: i32) -> (i32, i32) {
    %c0_i32 = arith.constant 0 : i32
    %c0_i32_0 = arith.constant 0 : i32
    %c0_i32_1 = arith.constant 0 : i32
    return %c0_i32, %c0_i32_0 : i32, i32
  }
  func.func @transform_15(%arg0: i32) -> (i32, i32) {
    %c0_i32 = arith.constant 0 : i32
    %c0_i32_0 = arith.constant 0 : i32
    %c0_i32_1 = arith.constant 0 : i32
    return %c0_i32, %c0_i32_0 : i32, i32
  }
}

</mosaic_0001>

<llo_original>
// kernel: tpu_custom_call.1
$region0: #{tpu_custom_call.1}
  #allocation0 [shape = 'u32[]', space=smem, size = 0x4, offset = 0x4, fixed_abs, tag = 'smem constant byte address 0x4 - core index']
  #allocation1 [shape = 'u32[72,128]{1,0:T(1,128)}', space=vmem, size = 0x9000, scoped, tag = 'internal scratch']
  %s0 = inlined_call_operand.hbm [shape: f32[8,48], index: 0, kind: input, shape index: {}]
  %s1 = inlined_call_operand.vmem [shape: f32[2,8,48], index: 1, kind: input, shape index: {}]
  %s2 = inlined_call_operand.hbm [shape: f32[8,48], index: 2, kind: input, shape index: {}]
  %s3 = inlined_call_operand.vmem [shape: bf16[2,48,256], index: 3, kind: input, shape index: {}]
  %s4 = inlined_call_operand.vmem [shape: bf16[2,48,256], index: 4, kind: input, shape index: {}]
  %s5 = inlined_call_operand.vmem [shape: f32[2,1,256], index: 5, kind: input, shape index: {}]
  %s6 = inlined_call_operand.vmem [shape: f32[2,1,256], index: 6, kind: input, shape index: {}]
  %s7 = inlined_call_operand.hbm [shape: f32[2,1,256], index: 7, kind: input, shape index: {}]
  %s8 = inlined_call_operand.hbm [shape: bf16[2,4,256,256], index: 8, kind: input, shape index: {}]
  %s9 = inlined_call_operand.vmem [shape: f32[2,4,1,256], index: 9, kind: input, shape index: {}]
  %s10 = inlined_call_operand.vmem [shape: f32[2,4,1,256], index: 10, kind: input, shape index: {}]
  %s11 = inlined_call_operand.vmem [shape: f32[2,4,1,256], index: 11, kind: input, shape index: {}]
  %s12 = inlined_call_operand.vmem [shape: bf16[2,256,3], index: 12, kind: input, shape index: {}]
  %s13 = inlined_call_operand.vmem [shape: f32[2,1,3], index: 13, kind: input, shape index: {}]
  %s14 = inlined_call_operand.hbm [shape: f32[8,48], index: 14, kind: output, shape index: {0}]
  %s15 = inlined_call_operand.hbm [shape: f32[8,6], index: 15, kind: output, shape index: {1}]
  %16 = xla_tuple %s14, %s15
  %s17 = sld [smem:[#allocation0]]
  $region90: #{tpu_custom_call.1} parent=0
    _
  %s19 = ssub.s32 1, %s17
  %s20 = scalar_select 0, %s19, %s17
  $region1: #{tpu_custom_call.1} parent=0
    #allocation2 [shape = 'u8[4096]{0}', space=vmem, size = 0x1000, scoped, tag = 'input window, operand 0, single buffered']
    #allocation3 [shape = 's32[1]{0}', space=sflag, size = 0x4, scoped, tag = 'scoped memory for tpu_custom_call.1']
    #allocation4 [shape = 's32[1]{0}', space=sflag, size = 0x4, scoped, tag = 'scoped memory for tpu_custom_call.1']
    #allocation5 [shape = 'u8[4096]{0}', space=vmem, size = 0x1000, scoped, tag = 'input window, operand 2, single buffered']
    #allocation6 [shape = 's32[1]{0}', space=sflag, size = 0x4, scoped, tag = 'scoped memory for tpu_custom_call.1']
    #allocation7 [shape = 'u8[2048]{0}', space=vmem, size = 0x800, scoped, tag = 'input window, operand 7, single buffered']
    #allocation8 [shape = 'u8[1048576]{0}', space=vmem, size = 0x100000, scoped, tag = 'input window, operand 8, single buffered']
    #allocation9 [shape = 's32[1]{0}', space=sflag, size = 0x4, scoped, tag = 'scoped memory for tpu_custom_call.1']
    #allocation10 [shape = 'u8[4096]{0}', space=vmem, size = 0x1000, scoped, tag = 'output window, operand 0, single buffered']
    #allocation11 [shape = 'u8[4096]{0}', space=vmem, size = 0x1000, scoped, tag = 'output window, operand 1, single buffered']
    #allocation12 [shape = 's32[1]{0}', space=sflag, size = 0x4, scoped, tag = 'scoped memory for tpu_custom_call.1']
    %21 = vsyncpa [#allocation3], 0
    %22 = vsyncpa [#allocation6], 0
    %23 = vsyncpa [#allocation9], 0
    %24 = vsyncpa [#allocation4], 0
    %25 = vsyncpa [#allocation12], 0
    // Predicated region
    $region2: #{tpu_custom_call.1} parent=1 // pred_check
      _
    $region3: #{tpu_custom_call.1} parent=1 // pred_check_branch
      %27 = sbr.rel (0) target = $region5
    $region4: #{tpu_custom_call.1} parent=1 // pred_region
      %29 = vsyncadd [#allocation3], 0
      %s31 = sshll.u32 %s0, 4
      %s32 = int_to_ptr.hbm [resolvable:$true] %s31
      %s33 = sshll.u32 [#allocation2], 4
      %s34 = int_to_ptr.vmem [resolvable:$true] %s33
      %36 = dma.hbm_to_vmem [thread:$0]  %s32, 128, %s34, [#allocation3]
    $region5: #{tpu_custom_call.1} parent=1 // pred_fallthru
      _
    // Predicated region
    $region6: #{tpu_custom_call.1} parent=1 // pred_check
      _
    $region7: #{tpu_custom_call.1} parent=1 // pred_check_branch
      %38 = sbr.rel (0) target = $region9
    $region8: #{tpu_custom_call.1} parent=1 // pred_region
      _
    $region9: #{tpu_custom_call.1} parent=1 // pred_fallthru
      _
    // Predicated region
    $region10: #{tpu_custom_call.1} parent=1 // pred_check
      _
    $region11: #{tpu_custom_call.1} parent=1 // pred_check_branch
      %40 = sbr.rel (0) target = $region13
    $region12: #{tpu_custom_call.1} parent=1 // pred_region
      %42 = vsyncadd [#allocation6], 0
      %s44 = sshll.u32 %s2, 4
      %s45 = int_to_ptr.hbm [resolvable:$true] %s44
      %s46 = sshll.u32 [#allocation5], 4
      %s47 = int_to_ptr.vmem [resolvable:$true] %s46
      %49 = dma.hbm_to_vmem [thread:$0]  %s45, 128, %s47, [#allocation6]
    $region13: #{tpu_custom_call.1} parent=1 // pred_fallthru
      _
    // Predicated region
    $region14: #{tpu_custom_call.1} parent=1 // pred_check
      _
    $region15: #{tpu_custom_call.1} parent=1 // pred_check_branch
      %51 = sbr.rel (0) target = $region17
    $region16: #{tpu_custom_call.1} parent=1 // pred_region
      _
    $region17: #{tpu_custom_call.1} parent=1 // pred_fallthru
      _
    // Predicated region
    $region18: #{tpu_custom_call.1} parent=1 // pred_check
      _
    $region19: #{tpu_custom_call.1} parent=1 // pred_check_branch
      %53 = sbr.rel (0) target = $region21
    $region20: #{tpu_custom_call.1} parent=1 // pred_region
      _
    $region21: #{tpu_custom_call.1} parent=1 // pred_fallthru
      _
    // Predicated region
    $region22: #{tpu_custom_call.1} parent=1 // pred_check
      _
    $region23: #{tpu_custom_call.1} parent=1 // pred_check_branch
      %55 = sbr.rel (0) target = $region25
    $region24: #{tpu_custom_call.1} parent=1 // pred_region
      _
    $region25: #{tpu_custom_call.1} parent=1 // pred_fallthru
      _
    // Predicated region
    $region26: #{tpu_custom_call.1} parent=1 // pred_check
      _
    $region27: #{tpu_custom_call.1} parent=1 // pred_check_branch
      %57 = sbr.rel (0) target = $region29
    $region28: #{tpu_custom_call.1} parent=1 // pred_region
      _
    $region29: #{tpu_custom_call.1} parent=1 // pred_fallthru
      _
    // Predicated region
    $region30: #{tpu_custom_call.1} parent=1 // pred_check
      _
    $region31: #{tpu_custom_call.1} parent=1 // pred_check_branch
      %59 = sbr.rel (0) target = $region33
    $region32: #{tpu_custom_call.1} parent=1 // pred_region
      %61 = vsyncadd [#allocation6], 0
      %s62 = sshll.u32 %s7, 4
      %s63 = int_to_ptr.hbm [resolvable:$true] %s62
      %s64 = sshll.u32 [#allocation7], 4
      %s65 = int_to_ptr.vmem [resolvable:$true] %s64
      %70 = dma.hbm_to_vmem [thread:$0]  %s63, 64, %s65, [#allocation6], 32, 32, 2
    $region33: #{tpu_custom_call.1} parent=1 // pred_fallthru
      _
    // Predicated region
    $region34: #{tpu_custom_call.1} parent=1 // pred_check
      _
    $region35: #{tpu_custom_call.1} parent=1 // pred_check_branch
      %72 = sbr.rel (0) target = $region37
    $region36: #{tpu_custom_call.1} parent=1 // pred_region
      %74 = vsyncadd [#allocation9], 0
      %s75 = sshll.u32 %s8, 4
      %s76 = int_to_ptr.hbm [resolvable:$true] %s75
      %s77 = sshll.u32 [#allocation8], 4
      %s78 = int_to_ptr.vmem [resolvable:$true] %s77
      %83 = dma.hbm_to_vmem [thread:$0]  %s76, 32768, %s78, [#allocation9], 128, 128, 8
    $region37: #{tpu_custom_call.1} parent=1 // pred_fallthru
      _
    // Predicated region
    $region38: #{tpu_custom_call.1} parent=1 // pred_check
      _
    $region39: #{tpu_custom_call.1} parent=1 // pred_check_branch
      %85 = sbr.rel (0) target = $region41
    $region40: #{tpu_custom_call.1} parent=1 // pred_region
      _
    $region41: #{tpu_custom_call.1} parent=1 // pred_fallthru
      _
    // Predicated region
    $region42: #{tpu_custom_call.1} parent=1 // pred_check
      _
    $region43: #{tpu_custom_call.1} parent=1 // pred_check_branch
      %87 = sbr.rel (0) target = $region45
    $region44: #{tpu_custom_call.1} parent=1 // pred_region
      _
    $region45: #{tpu_custom_call.1} parent=1 // pred_fallthru
      _
    // Predicated region
    $region46: #{tpu_custom_call.1} parent=1 // pred_check
      _
    $region47: #{tpu_custom_call.1} parent=1 // pred_check_branch
      %89 = sbr.rel (0) target = $region49
    $region48: #{tpu_custom_call.1} parent=1 // pred_region
      _
    $region49: #{tpu_custom_call.1} parent=1 // pred_fallthru
      _
    // Predicated region
    $region50: #{tpu_custom_call.1} parent=1 // pred_check
      _
    $region51: #{tpu_custom_call.1} parent=1 // pred_check_branch
      %91 = sbr.rel (0) target = $region53
    $region52: #{tpu_custom_call.1} parent=1 // pred_region
      _
    $region53: #{tpu_custom_call.1} parent=1 // pred_fallthru
      _
    // Predicated region
    $region54: #{tpu_custom_call.1} parent=1 // pred_check
      _
    $region55: #{tpu_custom_call.1} parent=1 // pred_check_branch
      %93 = sbr.rel (0) target = $region57
    $region56: #{tpu_custom_call.1} parent=1 // pred_region
      _
    $region57: #{tpu_custom_call.1} parent=1 // pred_fallthru
      _
    // Predicated region
    $region58: #{tpu_custom_call.1} parent=1 // pred_check
      _
    $region59: #{tpu_custom_call.1} parent=1 // pred_check_branch
      %95 = sbr.rel (0) target = $region61
    $region60: #{tpu_custom_call.1} parent=1 // pred_region
      %97 = dma.done [#allocation3], 128
    $region61: #{tpu_custom_call.1} parent=1 // pred_fallthru
      _
    // Predicated region
    $region62: #{tpu_custom_call.1} parent=1 // pred_check
      _
    $region63: #{tpu_custom_call.1} parent=1 // pred_check_branch
      %99 = sbr.rel (0) target = $region65
    $region64: #{tpu_custom_call.1} parent=1 // pred_region
      %101 = dma.done [#allocation6], 128
    $region65: #{tpu_custom_call.1} parent=1 // pred_fallthru
      _
    // Predicated region
    $region66: #{tpu_custom_call.1} parent=1 // pred_check
      _
    $region67: #{tpu_custom_call.1} parent=1 // pred_check_branch
      %103 = sbr.rel (0) target = $region69
    $region68: #{tpu_custom_call.1} parent=1 // pred_region
      %105 = dma.done [#allocation6], 64
    $region69: #{tpu_custom_call.1} parent=1 // pred_fallthru
      _
    // Predicated region
    $region70: #{tpu_custom_call.1} parent=1 // pred_check
      _
    $region71: #{tpu_custom_call.1} parent=1 // pred_check_branch
      %107 = sbr.rel (0) target = $region73
    $region72: #{tpu_custom_call.1} parent=1 // pred_region
      %109 = dma.done [#allocation9], 32768
    $region73: #{tpu_custom_call.1} parent=1 // pred_fallthru
      _
    %v111 = vld [vmem:[#allocation2] sm:$0xff]
    %v112 = vpack.c.bf16 %v111, %v111
    %v113 = vld [vmem:[%s1] sm:$0xff]
    %v114 = vpack.c.bf16 %v113, %v113
    %v115 = vld [vmem:[%s3] sm:$0xff]
    %v116 = vld [vmem:[%s3 + $0x8] sm:$0xff]
    %v117 = vld [vmem:[%s3 + $0x10] sm:$0xff]
    %v118 = vld [vmem:[%s3 + $0x18] sm:$0xff]
    %v119 = vld [vmem:[%s3 + $0x20] sm:$0xff]
    %v120 = vld [vmem:[%s3 + $0x28] sm:$0xff]
    %v121 = vld [vmem:[%s4] sm:$0xff]
    %v122 = vld [vmem:[%s4 + $0x8] sm:$0xff]
    %v123 = vld [vmem:[%s4 + $0x10] sm:$0xff]
    %v124 = vld [vmem:[%s4 + $0x18] sm:$0xff]
    %v125 = vld [vmem:[%s4 + $0x20] sm:$0xff]
    %v126 = vld [vmem:[%s4 + $0x28] sm:$0xff]
    %v133 = vunpack.c.l.b16 %v121
    %v134 = vunpack.c.h.b16 %v121
    %v135 = vunpack.c.l.b16 %v122
    %v136 = vunpack.c.h.b16 %v122
    %v137 = vunpack.c.l.b16 %v123
    %v138 = vunpack.c.h.b16 %v123
    %v139 = vunpack.c.l.b16 %v124
    %v140 = vunpack.c.h.b16 %v124
    %v141 = vunpack.c.l.b16 %v125
    %v142 = vunpack.c.h.b16 %v125
    %v143 = vunpack.c.l.b16 %v126
    %v144 = vunpack.c.h.b16 %v126
    %v145 = vpack.c.b16 %v135, %v133
    %v146 = vpack.c.b16 %v136, %v134
    %v147 = vpack.c.b16 %v139, %v137
    %v148 = vpack.c.b16 %v140, %v138
    %v149 = vpack.c.b16 %v143, %v141
    %v150 = vpack.c.b16 %v144, %v142
    %vm157 = vcmask 392192
    %v159 = vsel %vm157, %v114, 0
    %161 = vmatpush.bf16.msra.mxu0 0
    %162 = vmatpush.bf16.msra.mxu0 0
    %163 = vmatpush.bf16.msra.mxu0 0
    %164 = vmatpush.bf16.msra.mxu0 0
    %165 = vmatpush.bf16.msra.mxu0 0
    %166 = vmatpush.bf16.msra.mxu0 %v149
    %167 = vmatpush.bf16.msra.mxu0 %v147
    %168 = vmatpush.bf16.msra.mxu0 %v145
    %169 = vmatmul.bf16.gmra.mxu0 %v159
    %v170 = vpop.f32.mrf.mxu0
    %v171 = vadd.f32 0.0, %v170
    %v172 = vpop.f32.mrf.mxu0
    %173 = vdwg.mxu0
    %174 = vmatpush.bf16.msra.mxu0 0
    %175 = vmatpush.bf16.msra.mxu0 0
    %176 = vmatpush.bf16.msra.mxu0 0
    %177 = vmatpush.bf16.msra.mxu0 0
    %178 = vmatpush.bf16.msra.mxu0 0
    %179 = vmatpush.bf16.msra.mxu0 %v150
    %180 = vmatpush.bf16.msra.mxu0 %v148
    %181 = vmatpush.bf16.msra.mxu0 %v146
    %182 = vmatmul.bf16.gmra.mxu0 %v159
    %v183 = vpop.f32.mrf.mxu0
    %v184 = vadd.f32 0.0, %v183
    %v185 = vpop.f32.mrf.mxu0
    %186 = vdwg.mxu0
    %v193 = vunpack.c.l.b16 %v115
    %v194 = vunpack.c.h.b16 %v115
    %v195 = vunpack.c.l.b16 %v116
    %v196 = vunpack.c.h.b16 %v116
    %v197 = vunpack.c.l.b16 %v117
    %v198 = vunpack.c.h.b16 %v117
    %v199 = vunpack.c.l.b16 %v118
    %v200 = vunpack.c.h.b16 %v118
    %v201 = vunpack.c.l.b16 %v119
    %v202 = vunpack.c.h.b16 %v119
    %v203 = vunpack.c.l.b16 %v120
    %v204 = vunpack.c.h.b16 %v120
    %v205 = vpack.c.b16 %v195, %v193
    %v206 = vpack.c.b16 %v196, %v194
    %v207 = vpack.c.b16 %v199, %v197
    %v208 = vpack.c.b16 %v200, %v198
    %v209 = vpack.c.b16 %v203, %v201
    %v210 = vpack.c.b16 %v204, %v202
    %v218 = vsel %vm157, %v112, 0
    %220 = vmatpush.bf16.msra.mxu0 0
    %221 = vmatpush.bf16.msra.mxu0 0
    %222 = vmatpush.bf16.msra.mxu0 0
    %223 = vmatpush.bf16.msra.mxu0 0
    %224 = vmatpush.bf16.msra.mxu0 0
    %225 = vmatpush.bf16.msra.mxu0 %v209
    %226 = vmatpush.bf16.msra.mxu0 %v207
    %227 = vmatpush.bf16.msra.mxu0 %v205
    %228 = vmatmul.bf16.gmra.mxu0 %v218
    %v229 = vpop.f32.mrf.mxu0
    %v230 = vadd.f32 %v171, %v229
    %v231 = vpop.f32.mrf.mxu0
    %232 = vdwg.mxu0
    %233 = vmatpush.bf16.msra.mxu0 0
    %234 = vmatpush.bf16.msra.mxu0 0
    %235 = vmatpush.bf16.msra.mxu0 0
    %236 = vmatpush.bf16.msra.mxu0 0
    %237 = vmatpush.bf16.msra.mxu0 0
    %238 = vmatpush.bf16.msra.mxu0 %v210
    %239 = vmatpush.bf16.msra.mxu0 %v208
    %240 = vmatpush.bf16.msra.mxu0 %v206
    %241 = vmatmul.bf16.gmra.mxu0 %v218
    %v242 = vpop.f32.mrf.mxu0
    %v243 = vadd.f32 %v184, %v242
    %v244 = vpop.f32.mrf.mxu0
    %245 = vdwg.mxu0
    %v246 = vld [vmem:[%s5] sm:$0x3]
    %v248 = vperm.slane %v246, 0
    %v249 = vperm.slane %v246, 1
    %v252 = vadd.f32 %v230, %v248
    %v253 = vadd.f32 %v243, %v249
    %v254 = vld [vmem:[%s6] sm:$0x3]
    %v255 = vld [vmem:[#allocation7] sm:$0x3]
    %v256 = vrot.slane %v252, 4
    %v257 = vadd.f32 %v252, %v256
    %v258 = vrot.slane %v257, 2
    %v259 = vadd.f32 %v257, %v258
    %v260 = vrot.slane %v259, 1
    %v261 = vadd.f32 %v259, %v260
    %v262 = vrot.slane %v253, 4
    %v263 = vadd.f32 %v253, %v262
    %v264 = vrot.slane %v263, 2
    %v265 = vadd.f32 %v263, %v264
    %v266 = vrot.slane %v265, 1
    %v267 = vadd.f32 %v265, %v266
    %v268 = vrcp.pop 8.0
    %v269 = vmul.f32 8.0, %v268
    %v270 = vsub.f32 1.0, %v269
    %v271 = vmul.f32 %v268, %v270
    %v272 = vadd.f32 %v268, %v271
    %vm273 = vweird.f32 %v268
    %v274 = vsel %vm273, %v268, %v272
    %v275 = vmul.f32 %v261, %v274
    %v276 = vmul.f32 %v267, %v274
    %v277 = vmul.f32 %v252, %v252
    %v278 = vmul.f32 %v253, %v253
    %v279 = vrot.slane %v277, 4
    %v280 = vadd.f32 %v277, %v279
    %v281 = vrot.slane %v280, 2
    %v282 = vadd.f32 %v280, %v281
    %v283 = vrot.slane %v282, 1
    %v284 = vadd.f32 %v282, %v283
    %v285 = vrot.slane %v278, 4
    %v286 = vadd.f32 %v278, %v285
    %v287 = vrot.slane %v286, 2
    %v288 = vadd.f32 %v286, %v287
    %v289 = vrot.slane %v288, 1
    %v290 = vadd.f32 %v288, %v289
    %v291 = vmul.f32 %v284, %v274
    %v292 = vmul.f32 %v290, %v274
    %v293 = vmul.f32 %v275, %v275
    %v294 = vmul.f32 %v276, %v276
    %v295 = vsub.f32 %v291, %v293
    %v296 = vsub.f32 %v292, %v294
    %v297 = vmax.f32 %v295, 0.0
    %v298 = vmax.f32 %v296, 0.0
    %v299 = vadd.f32 %v297, 1e-05
    %v300 = vadd.f32 %v298, 1e-05
    %v301 = vrsqrt.pop %v299
    %v302 = vmul.f32 %v301, %v299
    %v303 = vmul.f32 %v302, %v301
    %v304 = vmul.f32 0.5, %v303
    %v305 = vsub.f32 1.5, %v304
    %v306 = vmul.f32 %v301, %v305
    %vm307 = vweird.f32 %v299
    %vm308 = vweird.f32 %v301
    %vm309 = vmor %vm307, %vm308
    %v310 = vsel %vm309, %v301, %v306
    %v311 = vrsqrt.pop %v300
    %v312 = vmul.f32 %v311, %v300
    %v313 = vmul.f32 %v312, %v311
    %v314 = vmul.f32 0.5, %v313
    %v315 = vsub.f32 1.5, %v314
    %v316 = vmul.f32 %v311, %v315
    %vm317 = vweird.f32 %v300
    %vm318 = vweird.f32 %v311
    %vm319 = vmor %vm317, %vm318
    %v320 = vsel %vm319, %v311, %v316
    %v323 = vrot.slane %v320, 7
    %vm324 = vcmask 1040384
    %v325 = vsel %vm324, %v310, %v323
    %v327 = vmul.f32 %v254, %v325
    %v329 = vperm.slane %v327, 0
    %v330 = vperm.slane %v327, 1
    %v333 = vmul.f32 %v275, %v329
    %v334 = vmul.f32 %v276, %v330
    %v337 = vrot.slane %v334, 7
    %v338 = vsel %vm324, %v333, %v337
    %v340 = vsub.f32 %v255, %v338
    %v341 = vmul.f32 %v252, %v329
    %v342 = vmul.f32 %v253, %v330
    %v344 = vperm.slane %v340, 0
    %v345 = vperm.slane %v340, 1
    %v348 = vadd.f32 %v341, %v344
    %v349 = vadd.f32 %v342, %v345
    %v350 = vmul.f32 %v348, 0.01
    %v351 = vmul.f32 %v349, 0.01
    %v352 = vmax.f32 %v348, %v350
    %v353 = vmax.f32 %v349, %v351
    %v354 = vpack.c.bf16 %v352, %v352
    %v355 = vpack.c.bf16 %v353, %v353
    %v356 = vld [vmem:[#allocation8] sm:$0xff]
    %v357 = vld [vmem:[#allocation8 + $0x8] sm:$0xff]
    %v358 = vld [vmem:[#allocation8 + $0x10] sm:$0xff]
    %v359 = vld [vmem:[#allocation8 + $0x18] sm:$0xff]
    %v360 = vld [vmem:[#allocation8 + $0x20] sm:$0xff]
    %v361 = vld [vmem:[#allocation8 + $0x28] sm:$0xff]
    %v362 = vld [vmem:[#allocation8 + $0x30] sm:$0xff]
    %v363 = vld [vmem:[#allocation8 + $0x38] sm:$0xff]
    %v364 = vld [vmem:[#allocation8 + $0x40] sm:$0xff]
    %v365 = vld [vmem:[#allocation8 + $0x48] sm:$0xff]
    %v366 = vld [vmem:[#allocation8 + $0x50] sm:$0xff]
    %v367 = vld [vmem:[#allocation8 + $0x58] sm:$0xff]
    %v368 = vld [vmem:[#allocation8 + $0x60] sm:$0xff]
    %v369 = vld [vmem:[#allocation8 + $0x68] sm:$0xff]
    %v370 = vld [vmem:[#allocation8 + $0x70] sm:$0xff]
    %v371 = vld [vmem:[#allocation8 + $0x78] sm:$0xff]
    %v372 = vld [vmem:[#allocation8 + $0x80] sm:$0xff]
    %v373 = vld [vmem:[#allocation8 + $0x88] sm:$0xff]
    %v374 = vld [vmem:[#allocation8 + $0x90] sm:$0xff]
    %v375 = vld [vmem:[#allocation8 + $0x98] sm:$0xff]
    %v376 = vld [vmem:[#allocation8 + $0xa0] sm:$0xff]
    %v377 = vld [vmem:[#allocation8 + $0xa8] sm:$0xff]
    %v378 = vld [vmem:[#allocation8 + $0xb0] sm:$0xff]
    %v379 = vld [vmem:[#allocation8 + $0xb8] sm:$0xff]
    %v380 = vld [vmem:[#allocation8 + $0xc0] sm:$0xff]
    %v381 = vld [vmem:[#allocation8 + $0xc8] sm:$0xff]
    %v382 = vld [vmem:[#allocation8 + $0xd0] sm:$0xff]
    %v383 = vld [vmem:[#allocation8 + $0xd8] sm:$0xff]
    %v384 = vld [vmem:[#allocation8 + $0xe0] sm:$0xff]
    %v385 = vld [vmem:[#allocation8 + $0xe8] sm:$0xff]
    %v386 = vld [vmem:[#allocation8 + $0xf0] sm:$0xff]
    %v387 = vld [vmem:[#allocation8 + $0xf8] sm:$0xff]
    %v388 = vld [vmem:[%s9] sm:$0x3]
    %v390 = vperm.slane %v388, 0
    %v391 = vperm.slane %v388, 1
    %v426 = vunpack.c.l.b16 %v356
    %v427 = vunpack.c.h.b16 %v356
    %v428 = vunpack.c.l.b16 %v357
    %v429 = vunpack.c.h.b16 %v357
    %v430 = vunpack.c.l.b16 %v358
    %v431 = vunpack.c.h.b16 %v358
    %v432 = vunpack.c.l.b16 %v359
    %v433 = vunpack.c.h.b16 %v359
    %v434 = vunpack.c.l.b16 %v360
    %v435 = vunpack.c.h.b16 %v360
    %v436 = vunpack.c.l.b16 %v361
    %v437 = vunpack.c.h.b16 %v361
    %v438 = vunpack.c.l.b16 %v362
    %v439 = vunpack.c.h.b16 %v362
    %v440 = vunpack.c.l.b16 %v363
    %v441 = vunpack.c.h.b16 %v363
    %v442 = vunpack.c.l.b16 %v364
    %v443 = vunpack.c.h.b16 %v364
    %v444 = vunpack.c.l.b16 %v365
    %v445 = vunpack.c.h.b16 %v365
    %v446 = vunpack.c.l.b16 %v366
    %v447 = vunpack.c.h.b16 %v366
    %v448 = vunpack.c.l.b16 %v367
    %v449 = vunpack.c.h.b16 %v367
    %v450 = vunpack.c.l.b16 %v368
    %v451 = vunpack.c.h.b16 %v368
    %v452 = vunpack.c.l.b16 %v369
    %v453 = vunpack.c.h.b16 %v369
    %v454 = vunpack.c.l.b16 %v370
    %v455 = vunpack.c.h.b16 %v370
    %v456 = vunpack.c.l.b16 %v371
    %v457 = vunpack.c.h.b16 %v371
    %v458 = vunpack.c.l.b16 %v372
    %v459 = vunpack.c.h.b16 %v372
    %v460 = vunpack.c.l.b16 %v373
    %v461 = vunpack.c.h.b16 %v373
    %v462 = vunpack.c.l.b16 %v374
    %v463 = vunpack.c.h.b16 %v374
    %v464 = vunpack.c.l.b16 %v375
    %v465 = vunpack.c.h.b16 %v375
    %v466 = vunpack.c.l.b16 %v376
    %v467 = vunpack.c.h.b16 %v376
    %v468 = vunpack.c.l.b16 %v377
    %v469 = vunpack.c.h.b16 %v377
    %v470 = vunpack.c.l.b16 %v378
    %v471 = vunpack.c.h.b16 %v378
    %v472 = vunpack.c.l.b16 %v379
    %v473 = vunpack.c.h.b16 %v379
    %v474 = vunpack.c.l.b16 %v380
    %v475 = vunpack.c.h.b16 %v380
    %v476 = vunpack.c.l.b16 %v381
    %v477 = vunpack.c.h.b16 %v381
    %v478 = vunpack.c.l.b16 %v382
    %v479 = vunpack.c.h.b16 %v382
    %v480 = vunpack.c.l.b16 %v383
    %v481 = vunpack.c.h.b16 %v383
    %v482 = vunpack.c.l.b16 %v384
    %v483 = vunpack.c.h.b16 %v384
    %v484 = vunpack.c.l.b16 %v385
    %v485 = vunpack.c.h.b16 %v385
    %v486 = vunpack.c.l.b16 %v386
    %v487 = vunpack.c.h.b16 %v386
    %v488 = vunpack.c.l.b16 %v387
    %v489 = vunpack.c.h.b16 %v387
    %v490 = vpack.c.b16 %v428, %v426
    %v491 = vpack.c.b16 %v429, %v427
    %v492 = vpack.c.b16 %v432, %v430
    %v493 = vpack.c.b16 %v433, %v431
    %v494 = vpack.c.b16 %v436, %v434
    %v495 = vpack.c.b16 %v437, %v435
    %v496 = vpack.c.b16 %v440, %v438
    %v497 = vpack.c.b16 %v441, %v439
    %v498 = vpack.c.b16 %v444, %v442
    %v499 = vpack.c.b16 %v445, %v443
    %v500 = vpack.c.b16 %v448, %v446
    %v501 = vpack.c.b16 %v449, %v447
    %v502 = vpack.c.b16 %v452, %v450
    %v503 = vpack.c.b16 %v453, %v451
    %v504 = vpack.c.b16 %v456, %v454
    %v505 = vpack.c.b16 %v457, %v455
    %v506 = vpack.c.b16 %v460, %v458
    %v507 = vpack.c.b16 %v461, %v459
    %v508 = vpack.c.b16 %v464, %v462
    %v509 = vpack.c.b16 %v465, %v463
    %v510 = vpack.c.b16 %v468, %v466
    %v511 = vpack.c.b16 %v469, %v467
    %v512 = vpack.c.b16 %v472, %v470
    %v513 = vpack.c.b16 %v473, %v471
    %v514 = vpack.c.b16 %v476, %v474
    %v515 = vpack.c.b16 %v477, %v475
    %v516 = vpack.c.b16 %v480, %v478
    %v517 = vpack.c.b16 %v481, %v479
    %v518 = vpack.c.b16 %v484, %v482
    %v519 = vpack.c.b16 %v485, %v483
    %v520 = vpack.c.b16 %v488, %v486
    %v521 = vpack.c.b16 %v489, %v487
    %554 = vmatpush.bf16.msra.mxu0 %v504
    %555 = vmatpush.bf16.msra.mxu0 %v502
    %556 = vmatpush.bf16.msra.mxu0 %v500
    %557 = vmatpush.bf16.msra.mxu0 %v498
    %558 = vmatpush.bf16.msra.mxu0 %v496
    %559 = vmatpush.bf16.msra.mxu0 %v494
    %560 = vmatpush.bf16.msra.mxu0 %v492
    %561 = vmatpush.bf16.msra.mxu0 %v490
    %562 = vmatmul.bf16.gmra.mxu0 %v354
    %v563 = vpop.f32.mrf.mxu0
    %v564 = vadd.f32 %v390, %v563
    %v565 = vpop.f32.mrf.mxu0
    %566 = vdwg.mxu0
    %567 = vmatpush.bf16.msra.mxu0 %v520
    %568 = vmatpush.bf16.msra.mxu0 %v518
    %569 = vmatpush.bf16.msra.mxu0 %v516
    %570 = vmatpush.bf16.msra.mxu0 %v514
    %571 = vmatpush.bf16.msra.mxu0 %v512
    %572 = vmatpush.bf16.msra.mxu0 %v510
    %573 = vmatpush.bf16.msra.mxu0 %v508
    %574 = vmatpush.bf16.msra.mxu0 %v506
    %575 = vmatmul.bf16.gmra.mxu0 %v355
    %v576 = vpop.f32.mrf.mxu0
    %v577 = vadd.f32 %v564, %v576
    %v578 = vpop.f32.mrf.mxu0
    %579 = vdwg.mxu0
    %580 = vmatpush.bf16.msra.mxu0 %v505
    %581 = vmatpush.bf16.msra.mxu0 %v503
    %582 = vmatpush.bf16.msra.mxu0 %v501
    %583 = vmatpush.bf16.msra.mxu0 %v499
    %584 = vmatpush.bf16.msra.mxu0 %v497
    %585 = vmatpush.bf16.msra.mxu0 %v495
    %586 = vmatpush.bf16.msra.mxu0 %v493
    %587 = vmatpush.bf16.msra.mxu0 %v491
    %588 = vmatmul.bf16.gmra.mxu0 %v354
    %v589 = vpop.f32.mrf.mxu0
    %v590 = vadd.f32 %v391, %v589
    %v591 = vpop.f32.mrf.mxu0
    %592 = vdwg.mxu0
    %593 = vmatpush.bf16.msra.mxu0 %v521
    %594 = vmatpush.bf16.msra.mxu0 %v519
    %595 = vmatpush.bf16.msra.mxu0 %v517
    %596 = vmatpush.bf16.msra.mxu0 %v515
    %597 = vmatpush.bf16.msra.mxu0 %v513
    %598 = vmatpush.bf16.msra.mxu0 %v511
    %599 = vmatpush.bf16.msra.mxu0 %v509
    %600 = vmatpush.bf16.msra.mxu0 %v507
    %601 = vmatmul.bf16.gmra.mxu0 %v355
    %v602 = vpop.f32.mrf.mxu0
    %v603 = vadd.f32 %v590, %v602
    %v604 = vpop.f32.mrf.mxu0
    %605 = vdwg.mxu0
    %v606 = vld [vmem:[%s10] sm:$0x3]
    %v607 = vld [vmem:[%s11] sm:$0x3]
    %v608 = vrot.slane %v577, 4
    %v609 = vadd.f32 %v577, %v608
    %v610 = vrot.slane %v609, 2
    %v611 = vadd.f32 %v609, %v610
    %v612 = vrot.slane %v611, 1
    %v613 = vadd.f32 %v611, %v612
    %v614 = vrot.slane %v603, 4
    %v615 = vadd.f32 %v603, %v614
    %v616 = vrot.slane %v615, 2
    %v617 = vadd.f32 %v615, %v616
    %v618 = vrot.slane %v617, 1
    %v619 = vadd.f32 %v617, %v618
    %v620 = vmul.f32 %v613, %v274
    %v621 = vmul.f32 %v619, %v274
    %v622 = vmul.f32 %v577, %v577
    %v623 = vmul.f32 %v603, %v603
    %v624 = vrot.slane %v622, 4
    %v625 = vadd.f32 %v622, %v624
    %v626 = vrot.slane %v625, 2
    %v627 = vadd.f32 %v625, %v626
    %v628 = vrot.slane %v627, 1
    %v629 = vadd.f32 %v627, %v628
    %v630 = vrot.slane %v623, 4
    %v631 = vadd.f32 %v623, %v630
    %v632 = vrot.slane %v631, 2
    %v633 = vadd.f32 %v631, %v632
    %v634 = vrot.slane %v633, 1
    %v635 = vadd.f32 %v633, %v634
    %v636 = vmul.f32 %v629, %v274
    %v637 = vmul.f32 %v635, %v274
    %v638 = vmul.f32 %v620, %v620
    %v639 = vmul.f32 %v621, %v621
    %v640 = vsub.f32 %v636, %v638
    %v641 = vsub.f32 %v637, %v639
    %v642 = vmax.f32 %v640, 0.0
    %v643 = vmax.f32 %v641, 0.0
    %v644 = vadd.f32 %v642, 1e-05
    %v645 = vadd.f32 %v643, 1e-05
    %v646 = vrsqrt.pop %v644
    %v647 = vmul.f32 %v646, %v644
    %v648 = vmul.f32 %v647, %v646
    %v649 = vmul.f32 0.5, %v648
    %v650 = vsub.f32 1.5, %v649
    %v651 = vmul.f32 %v646, %v650
    %vm652 = vweird.f32 %v644
    %vm653 = vweird.f32 %v646
    %vm654 = vmor %vm652, %vm653
    %v655 = vsel %vm654, %v646, %v651
    %v656 = vrsqrt.pop %v645
    %v657 = vmul.f32 %v656, %v645
    %v658 = vmul.f32 %v657, %v656
    %v659 = vmul.f32 0.5, %v658
    %v660 = vsub.f32 1.5, %v659
    %v661 = vmul.f32 %v656, %v660
    %vm662 = vweird.f32 %v645
    %vm663 = vweird.f32 %v656
    %vm664 = vmor %vm662, %vm663
    %v665 = vsel %vm664, %v656, %v661
    %v668 = vrot.slane %v665, 7
    %v669 = vsel %vm324, %v655, %v668
    %v671 = vmul.f32 %v606, %v669
    %v673 = vperm.slane %v671, 0
    %v674 = vperm.slane %v671, 1
    %v677 = vmul.f32 %v620, %v673
    %v678 = vmul.f32 %v621, %v674
    %v681 = vrot.slane %v678, 7
    %v682 = vsel %vm324, %v677, %v681
    %v684 = vsub.f32 %v607, %v682
    %v685 = vmul.f32 %v577, %v673
    %v686 = vmul.f32 %v603, %v674
    %v688 = vperm.slane %v684, 0
    %v689 = vperm.slane %v684, 1
    %v692 = vadd.f32 %v685, %v688
    %v693 = vadd.f32 %v686, %v689
    %v694 = vmul.f32 %v692, 0.01
    %v695 = vmul.f32 %v693, 0.01
    %v696 = vmax.f32 %v692, %v694
    %v697 = vmax.f32 %v693, %v695
    %v698 = vpack.c.bf16 %v696, %v696
    %v699 = vpack.c.bf16 %v697, %v697
    %s700 = scalar_lea.vmem [#allocation8], 256
    %v701 = vld [vmem:[%s700] sm:$0xff]
    %v702 = vld [vmem:[%s700 + $0x8] sm:$0xff]
    %v703 = vld [vmem:[%s700 + $0x10] sm:$0xff]
    %v704 = vld [vmem:[%s700 + $0x18] sm:$0xff]
    %v705 = vld [vmem:[%s700 + $0x20] sm:$0xff]
    %v706 = vld [vmem:[%s700 + $0x28] sm:$0xff]
    %v707 = vld [vmem:[%s700 + $0x30] sm:$0xff]
    %v708 = vld [vmem:[%s700 + $0x38] sm:$0xff]
    %v709 = vld [vmem:[%s700 + $0x40] sm:$0xff]
    %v710 = vld [vmem:[%s700 + $0x48] sm:$0xff]
    %v711 = vld [vmem:[%s700 + $0x50] sm:$0xff]
    %v712 = vld [vmem:[%s700 + $0x58] sm:$0xff]
    %v713 = vld [vmem:[%s700 + $0x60] sm:$0xff]
    %v714 = vld [vmem:[%s700 + $0x68] sm:$0xff]
    %v715 = vld [vmem:[%s700 + $0x70] sm:$0xff]
    %v716 = vld [vmem:[%s700 + $0x78] sm:$0xff]
    %v717 = vld [vmem:[%s700 + $0x80] sm:$0xff]
    %v718 = vld [vmem:[%s700 + $0x88] sm:$0xff]
    %v719 = vld [vmem:[%s700 + $0x90] sm:$0xff]
    %v720 = vld [vmem:[%s700 + $0x98] sm:$0xff]
    %v721 = vld [vmem:[%s700 + $0xa0] sm:$0xff]
    %v722 = vld [vmem:[%s700 + $0xa8] sm:$0xff]
    %v723 = vld [vmem:[%s700 + $0xb0] sm:$0xff]
    %v724 = vld [vmem:[%s700 + $0xb8] sm:$0xff]
    %v725 = vld [vmem:[%s700 + $0xc0] sm:$0xff]
    %v726 = vld [vmem:[%s700 + $0xc8] sm:$0xff]
    %v727 = vld [vmem:[%s700 + $0xd0] sm:$0xff]
    %v728 = vld [vmem:[%s700 + $0xd8] sm:$0xff]
    %v729 = vld [vmem:[%s700 + $0xe0] sm:$0xff]
    %v730 = vld [vmem:[%s700 + $0xe8] sm:$0xff]
    %v731 = vld [vmem:[%s700 + $0xf0] sm:$0xff]
    %v732 = vld [vmem:[%s700 + $0xf8] sm:$0xff]
    %s733 = scalar_lea.vmem %s9, 2
    %v734 = vld [vmem:[%s733] sm:$0x3]
    %v736 = vperm.slane %v734, 0
    %v737 = vperm.slane %v734, 1
    %v772 = vunpack.c.l.b16 %v701
    %v773 = vunpack.c.h.b16 %v701
    %v774 = vunpack.c.l.b16 %v702
    %v775 = vunpack.c.h.b16 %v702
    %v776 = vunpack.c.l.b16 %v703
    %v777 = vunpack.c.h.b16 %v703
    %v778 = vunpack.c.l.b16 %v704
    %v779 = vunpack.c.h.b16 %v704
    %v780 = vunpack.c.l.b16 %v705
    %v781 = vunpack.c.h.b16 %v705
    %v782 = vunpack.c.l.b16 %v706
    %v783 = vunpack.c.h.b16 %v706
    %v784 = vunpack.c.l.b16 %v707
    %v785 = vunpack.c.h.b16 %v707
    %v786 = vunpack.c.l.b16 %v708
    %v787 = vunpack.c.h.b16 %v708
    %v788 = vunpack.c.l.b16 %v709
    %v789 = vunpack.c.h.b16 %v709
    %v790 = vunpack.c.l.b16 %v710
    %v791 = vunpack.c.h.b16 %v710
    %v792 = vunpack.c.l.b16 %v711
    %v793 = vunpack.c.h.b16 %v711
    %v794 = vunpack.c.l.b16 %v712
    %v795 = vunpack.c.h.b16 %v712
    %v796 = vunpack.c.l.b16 %v713
    %v797 = vunpack.c.h.b16 %v713
    %v798 = vunpack.c.l.b16 %v714
    %v799 = vunpack.c.h.b16 %v714
    %v800 = vunpack.c.l.b16 %v715
    %v801 = vunpack.c.h.b16 %v715
    %v802 = vunpack.c.l.b16 %v716
    %v803 = vunpack.c.h.b16 %v716
    %v804 = vunpack.c.l.b16 %v717
    %v805 = vunpack.c.h.b16 %v717
    %v806 = vunpack.c.l.b16 %v718
    %v807 = vunpack.c.h.b16 %v718
    %v808 = vunpack.c.l.b16 %v719
    %v809 = vunpack.c.h.b16 %v719
    %v810 = vunpack.c.l.b16 %v720
    %v811 = vunpack.c.h.b16 %v720
    %v812 = vunpack.c.l.b16 %v721
    %v813 = vunpack.c.h.b16 %v721
    %v814 = vunpack.c.l.b16 %v722
    %v815 = vunpack.c.h.b16 %v722
    %v816 = vunpack.c.l.b16 %v723
    %v817 = vunpack.c.h.b16 %v723
    %v818 = vunpack.c.l.b16 %v724
    %v819 = vunpack.c.h.b16 %v724
    %v820 = vunpack.c.l.b16 %v725
    %v821 = vunpack.c.h.b16 %v725
    %v822 = vunpack.c.l.b16 %v726
    %v823 = vunpack.c.h.b16 %v726
    %v824 = vunpack.c.l.b16 %v727
    %v825 = vunpack.c.h.b16 %v727
    %v826 = vunpack.c.l.b16 %v728
    %v827 = vunpack.c.h.b16 %v728
    %v828 = vunpack.c.l.b16 %v729
    %v829 = vunpack.c.h.b16 %v729
    %v830 = vunpack.c.l.b16 %v730
    %v831 = vunpack.c.h.b16 %v730
    %v832 = vunpack.c.l.b16 %v731
    %v833 = vunpack.c.h.b16 %v731
    %v834 = vunpack.c.l.b16 %v732
    %v835 = vunpack.c.h.b16 %v732
    %v836 = vpack.c.b16 %v774, %v772
    %v837 = vpack.c.b16 %v775, %v773
    %v838 = vpack.c.b16 %v778, %v776
    %v839 = vpack.c.b16 %v779, %v777
    %v840 = vpack.c.b16 %v782, %v780
    %v841 = vpack.c.b16 %v783, %v781
    %v842 = vpack.c.b16 %v786, %v784
    %v843 = vpack.c.b16 %v787, %v785
    %v844 = vpack.c.b16 %v790, %v788
    %v845 = vpack.c.b16 %v791, %v789
    %v846 = vpack.c.b16 %v794, %v792
    %v847 = vpack.c.b16 %v795, %v793
    %v848 = vpack.c.b16 %v798, %v796
    %v849 = vpack.c.b16 %v799, %v797
    %v850 = vpack.c.b16 %v802, %v800
    %v851 = vpack.c.b16 %v803, %v801
    %v852 = vpack.c.b16 %v806, %v804
    %v853 = vpack.c.b16 %v807, %v805
    %v854 = vpack.c.b16 %v810, %v808
    %v855 = vpack.c.b16 %v811, %v809
    %v856 = vpack.c.b16 %v814, %v812
    %v857 = vpack.c.b16 %v815, %v813
    %v858 = vpack.c.b16 %v818, %v816
    %v859 = vpack.c.b16 %v819, %v817
    %v860 = vpack.c.b16 %v822, %v820
    %v861 = vpack.c.b16 %v823, %v821
    %v862 = vpack.c.b16 %v826, %v824
    %v863 = vpack.c.b16 %v827, %v825
    %v864 = vpack.c.b16 %v830, %v828
    %v865 = vpack.c.b16 %v831, %v829
    %v866 = vpack.c.b16 %v834, %v832
    %v867 = vpack.c.b16 %v835, %v833
    %900 = vmatpush.bf16.msra.mxu0 %v850
    %901 = vmatpush.bf16.msra.mxu0 %v848
    %902 = vmatpush.bf16.msra.mxu0 %v846
    %903 = vmatpush.bf16.msra.mxu0 %v844
    %904 = vmatpush.bf16.msra.mxu0 %v842
    %905 = vmatpush.bf16.msra.mxu0 %v840
    %906 = vmatpush.bf16.msra.mxu0 %v838
    %907 = vmatpush.bf16.msra.mxu0 %v836
    %908 = vmatmul.bf16.gmra.mxu0 %v698
    %v909 = vpop.f32.mrf.mxu0
    %v910 = vadd.f32 %v736, %v909
    %v911 = vpop.f32.mrf.mxu0
    %912 = vdwg.mxu0
    %913 = vmatpush.bf16.msra.mxu0 %v866
    %914 = vmatpush.bf16.msra.mxu0 %v864
    %915 = vmatpush.bf16.msra.mxu0 %v862
    %916 = vmatpush.bf16.msra.mxu0 %v860
    %917 = vmatpush.bf16.msra.mxu0 %v858
    %918 = vmatpush.bf16.msra.mxu0 %v856
    %919 = vmatpush.bf16.msra.mxu0 %v854
    %920 = vmatpush.bf16.msra.mxu0 %v852
    %921 = vmatmul.bf16.gmra.mxu0 %v699
    %v922 = vpop.f32.mrf.mxu0
    %v923 = vadd.f32 %v910, %v922
    %v924 = vpop.f32.mrf.mxu0
    %925 = vdwg.mxu0
    %926 = vmatpush.bf16.msra.mxu0 %v851
    %927 = vmatpush.bf16.msra.mxu0 %v849
    %928 = vmatpush.bf16.msra.mxu0 %v847
    %929 = vmatpush.bf16.msra.mxu0 %v845
    %930 = vmatpush.bf16.msra.mxu0 %v843
    %931 = vmatpush.bf16.msra.mxu0 %v841
    %932 = vmatpush.bf16.msra.mxu0 %v839
    %933 = vmatpush.bf16.msra.mxu0 %v837
    %934 = vmatmul.bf16.gmra.mxu0 %v698
    %v935 = vpop.f32.mrf.mxu0
    %v936 = vadd.f32 %v737, %v935
    %v937 = vpop.f32.mrf.mxu0
    %938 = vdwg.mxu0
    %939 = vmatpush.bf16.msra.mxu0 %v867
    %940 = vmatpush.bf16.msra.mxu0 %v865
    %941 = vmatpush.bf16.msra.mxu0 %v863
    %942 = vmatpush.bf16.msra.mxu0 %v861
    %943 = vmatpush.bf16.msra.mxu0 %v859
    %944 = vmatpush.bf16.msra.mxu0 %v857
    %945 = vmatpush.bf16.msra.mxu0 %v855
    %946 = vmatpush.bf16.msra.mxu0 %v853
    %947 = vmatmul.bf16.gmra.mxu0 %v699
    %v948 = vpop.f32.mrf.mxu0
    %v949 = vadd.f32 %v936, %v948
    %v950 = vpop.f32.mrf.mxu0
    %951 = vdwg.mxu0
    %s952 = scalar_lea.vmem %s10, 2
    %v953 = vld [vmem:[%s952] sm:$0x3]
    %s954 = scalar_lea.vmem %s11, 2
    %v955 = vld [vmem:[%s954] sm:$0x3]
    %v956 = vrot.slane %v923, 4
    %v957 = vadd.f32 %v923, %v956
    %v958 = vrot.slane %v957, 2
    %v959 = vadd.f32 %v957, %v958
    %v960 = vrot.slane %v959, 1
    %v961 = vadd.f32 %v959, %v960
    %v962 = vrot.slane %v949, 4
    %v963 = vadd.f32 %v949, %v962
    %v964 = vrot.slane %v963, 2
    %v965 = vadd.f32 %v963, %v964
    %v966 = vrot.slane %v965, 1
    %v967 = vadd.f32 %v965, %v966
    %v968 = vmul.f32 %v961, %v274
    %v969 = vmul.f32 %v967, %v274
    %v970 = vmul.f32 %v923, %v923
    %v971 = vmul.f32 %v949, %v949
    %v972 = vrot.slane %v970, 4
    %v973 = vadd.f32 %v970, %v972
    %v974 = vrot.slane %v973, 2
    %v975 = vadd.f32 %v973, %v974
    %v976 = vrot.slane %v975, 1
    %v977 = vadd.f32 %v975, %v976
    %v978 = vrot.slane %v971, 4
    %v979 = vadd.f32 %v971, %v978
    %v980 = vrot.slane %v979, 2
    %v981 = vadd.f32 %v979, %v980
    %v982 = vrot.slane %v981, 1
    %v983 = vadd.f32 %v981, %v982
    %v984 = vmul.f32 %v977, %v274
    %v985 = vmul.f32 %v983, %v274
    %v986 = vmul.f32 %v968, %v968
    %v987 = vmul.f32 %v969, %v969
    %v988 = vsub.f32 %v984, %v986
    %v989 = vsub.f32 %v985, %v987
    %v990 = vmax.f32 %v988, 0.0
    %v991 = vmax.f32 %v989, 0.0
    %v992 = vadd.f32 %v990, 1e-05
    %v993 = vadd.f32 %v991, 1e-05
    %v994 = vrsqrt.pop %v992
    %v995 = vmul.f32 %v994, %v992
    %v996 = vmul.f32 %v995, %v994
    %v997 = vmul.f32 0.5, %v996
    %v998 = vsub.f32 1.5, %v997
    %v999 = vmul.f32 %v994, %v998
    %vm1000 = vweird.f32 %v992
    %vm1001 = vweird.f32 %v994
    %vm1002 = vmor %vm1000, %vm1001
    %v1003 = vsel %vm1002, %v994, %v999
    %v1004 = vrsqrt.pop %v993
    %v1005 = vmul.f32 %v1004, %v993
    %v1006 = vmul.f32 %v1005, %v1004
    %v1007 = vmul.f32 0.5, %v1006
    %v1008 = vsub.f32 1.5, %v1007
    %v1009 = vmul.f32 %v1004, %v1008
    %vm1010 = vweird.f32 %v993
    %vm1011 = vweird.f32 %v1004
    %vm1012 = vmor %vm1010, %vm1011
    %v1013 = vsel %vm1012, %v1004, %v1009
    %v1016 = vrot.slane %v1013, 7
    %v1017 = vsel %vm324, %v1003, %v1016
    %v1019 = vmul.f32 %v953, %v1017
    %v1021 = vperm.slane %v1019, 0
    %v1022 = vperm.slane %v1019, 1
    %v1025 = vmul.f32 %v968, %v1021
    %v1026 = vmul.f32 %v969, %v1022
    %v1029 = vrot.slane %v1026, 7
    %v1030 = vsel %vm324, %v1025, %v1029
    %v1032 = vsub.f32 %v955, %v1030
    %v1033 = vmul.f32 %v923, %v1021
    %v1034 = vmul.f32 %v949, %v1022
    %v1036 = vperm.slane %v1032, 0
    %v1037 = vperm.slane %v1032, 1
    %v1040 = vadd.f32 %v1033, %v1036
    %v1041 = vadd.f32 %v1034, %v1037
    %v1042 = vmul.f32 %v1040, 0.01
    %v1043 = vmul.f32 %v1041, 0.01
    %v1044 = vmax.f32 %v1040, %v1042
    %v1045 = vmax.f32 %v1041, %v1043
    %v1046 = vpack.c.bf16 %v1044, %v1044
    %v1047 = vpack.c.bf16 %v1045, %v1045
    %s1048 = scalar_lea.vmem [#allocation8], 512
    %v1049 = vld [vmem:[%s1048] sm:$0xff]
    %v1050 = vld [vmem:[%s1048 + $0x8] sm:$0xff]
    %v1051 = vld [vmem:[%s1048 + $0x10] sm:$0xff]
    %v1052 = vld [vmem:[%s1048 + $0x18] sm:$0xff]
    %v1053 = vld [vmem:[%s1048 + $0x20] sm:$0xff]
    %v1054 = vld [vmem:[%s1048 + $0x28] sm:$0xff]
    %v1055 = vld [vmem:[%s1048 + $0x30] sm:$0xff]
    %v1056 = vld [vmem:[%s1048 + $0x38] sm:$0xff]
    %v1057 = vld [vmem:[%s1048 + $0x40] sm:$0xff]
    %v1058 = vld [vmem:[%s1048 + $0x48] sm:$0xff]
    %v1059 = vld [vmem:[%s1048 + $0x50] sm:$0xff]
    %v1060 = vld [vmem:[%s1048 + $0x58] sm:$0xff]
    %v1061 = vld [vmem:[%s1048 + $0x60] sm:$0xff]
    %v1062 = vld [vmem:[%s1048 + $0x68] sm:$0xff]
    %v1063 = vld [vmem:[%s1048 + $0x70] sm:$0xff]
    %v1064 = vld [vmem:[%s1048 + $0x78] sm:$0xff]
    %v1065 = vld [vmem:[%s1048 + $0x80] sm:$0xff]
    %v1066 = vld [vmem:[%s1048 + $0x88] sm:$0xff]
    %v1067 = vld [vmem:[%s1048 + $0x90] sm:$0xff]
    %v1068 = vld [vmem:[%s1048 + $0x98] sm:$0xff]
    %v1069 = vld [vmem:[%s1048 + $0xa0] sm:$0xff]
    %v1070 = vld [vmem:[%s1048 + $0xa8] sm:$0xff]
    %v1071 = vld [vmem:[%s1048 + $0xb0] sm:$0xff]
    %v1072 = vld [vmem:[%s1048 + $0xb8] sm:$0xff]
    %v1073 = vld [vmem:[%s1048 + $0xc0] sm:$0xff]
    %v1074 = vld [vmem:[%s1048 + $0xc8] sm:$0xff]
    %v1075 = vld [vmem:[%s1048 + $0xd0] sm:$0xff]
    %v1076 = vld [vmem:[%s1048 + $0xd8] sm:$0xff]
    %v1077 = vld [vmem:[%s1048 + $0xe0] sm:$0xff]
    %v1078 = vld [vmem:[%s1048 + $0xe8] sm:$0xff]
    %v1079 = vld [vmem:[%s1048 + $0xf0] sm:$0xff]
    %v1080 = vld [vmem:[%s1048 + $0xf8] sm:$0xff]
    %s1081 = scalar_lea.vmem %s9, 4
    %v1082 = vld [vmem:[%s1081] sm:$0x3]
    %v1084 = vperm.slane %v1082, 0
    %v1085 = vperm.slane %v1082, 1
    %v1120 = vunpack.c.l.b16 %v1049
    %v1121 = vunpack.c.h.b16 %v1049
    %v1122 = vunpack.c.l.b16 %v1050
    %v1123 = vunpack.c.h.b16 %v1050
    %v1124 = vunpack.c.l.b16 %v1051
    %v1125 = vunpack.c.h.b16 %v1051
    %v1126 = vunpack.c.l.b16 %v1052
    %v1127 = vunpack.c.h.b16 %v1052
    %v1128 = vunpack.c.l.b16 %v1053
    %v1129 = vunpack.c.h.b16 %v1053
    %v1130 = vunpack.c.l.b16 %v1054
    %v1131 = vunpack.c.h.b16 %v1054
    %v1132 = vunpack.c.l.b16 %v1055
    %v1133 = vunpack.c.h.b16 %v1055
    %v1134 = vunpack.c.l.b16 %v1056
    %v1135 = vunpack.c.h.b16 %v1056
    %v1136 = vunpack.c.l.b16 %v1057
    %v1137 = vunpack.c.h.b16 %v1057
    %v1138 = vunpack.c.l.b16 %v1058
    %v1139 = vunpack.c.h.b16 %v1058
    %v1140 = vunpack.c.l.b16 %v1059
    %v1141 = vunpack.c.h.b16 %v1059
    %v1142 = vunpack.c.l.b16 %v1060
    %v1143 = vunpack.c.h.b16 %v1060
    %v1144 = vunpack.c.l.b16 %v1061
    %v1145 = vunpack.c.h.b16 %v1061
    %v1146 = vunpack.c.l.b16 %v1062
    %v1147 = vunpack.c.h.b16 %v1062
    %v1148 = vunpack.c.l.b16 %v1063
    %v1149 = vunpack.c.h.b16 %v1063
    %v1150 = vunpack.c.l.b16 %v1064
    %v1151 = vunpack.c.h.b16 %v1064
    %v1152 = vunpack.c.l.b16 %v1065
    %v1153 = vunpack.c.h.b16 %v1065
    %v1154 = vunpack.c.l.b16 %v1066
    %v1155 = vunpack.c.h.b16 %v1066
    %v1156 = vunpack.c.l.b16 %v1067
    %v1157 = vunpack.c.h.b16 %v1067
    %v1158 = vunpack.c.l.b16 %v1068
    %v1159 = vunpack.c.h.b16 %v1068
    %v1160 = vunpack.c.l.b16 %v1069
    %v1161 = vunpack.c.h.b16 %v1069
    %v1162 = vunpack.c.l.b16 %v1070
    %v1163 = vunpack.c.h.b16 %v1070
    %v1164 = vunpack.c.l.b16 %v1071
    %v1165 = vunpack.c.h.b16 %v1071
    %v1166 = vunpack.c.l.b16 %v1072
    %v1167 = vunpack.c.h.b16 %v1072
    %v1168 = vunpack.c.l.b16 %v1073
    %v1169 = vunpack.c.h.b16 %v1073
    %v1170 = vunpack.c.l.b16 %v1074
    %v1171 = vunpack.c.h.b16 %v1074
    %v1172 = vunpack.c.l.b16 %v1075
    %v1173 = vunpack.c.h.b16 %v1075
    %v1174 = vunpack.c.l.b16 %v1076
    %v1175 = vunpack.c.h.b16 %v1076
    %v1176 = vunpack.c.l.b16 %v1077
    %v1177 = vunpack.c.h.b16 %v1077
    %v1178 = vunpack.c.l.b16 %v1078
    %v1179 = vunpack.c.h.b16 %v1078
    %v1180 = vunpack.c.l.b16 %v1079
    %v1181 = vunpack.c.h.b16 %v1079
    %v1182 = vunpack.c.l.b16 %v1080
    %v1183 = vunpack.c.h.b16 %v1080
    %v1184 = vpack.c.b16 %v1122, %v1120
    %v1185 = vpack.c.b16 %v1123, %v1121
    %v1186 = vpack.c.b16 %v1126, %v1124
    %v1187 = vpack.c.b16 %v1127, %v1125
    %v1188 = vpack.c.b16 %v1130, %v1128
    %v1189 = vpack.c.b16 %v1131, %v1129
    %v1190 = vpack.c.b16 %v1134, %v1132
    %v1191 = vpack.c.b16 %v1135, %v1133
    %v1192 = vpack.c.b16 %v1138, %v1136
    %v1193 = vpack.c.b16 %v1139, %v1137
    %v1194 = vpack.c.b16 %v1142, %v1140
    %v1195 = vpack.c.b16 %v1143, %v1141
    %v1196 = vpack.c.b16 %v1146, %v1144
    %v1197 = vpack.c.b16 %v1147, %v1145
    %v1198 = vpack.c.b16 %v1150, %v1148
    %v1199 = vpack.c.b16 %v1151, %v1149
    %v1200 = vpack.c.b16 %v1154, %v1152
    %v1201 = vpack.c.b16 %v1155, %v1153
    %v1202 = vpack.c.b16 %v1158, %v1156
    %v1203 = vpack.c.b16 %v1159, %v1157
    %v1204 = vpack.c.b16 %v1162, %v1160
    %v1205 = vpack.c.b16 %v1163, %v1161
    %v1206 = vpack.c.b16 %v1166, %v1164
    %v1207 = vpack.c.b16 %v1167, %v1165
    %v1208 = vpack.c.b16 %v1170, %v1168
    %v1209 = vpack.c.b16 %v1171, %v1169
    %v1210 = vpack.c.b16 %v1174, %v1172
    %v1211 = vpack.c.b16 %v1175, %v1173
    %v1212 = vpack.c.b16 %v1178, %v1176
    %v1213 = vpack.c.b16 %v1179, %v1177
    %v1214 = vpack.c.b16 %v1182, %v1180
    %v1215 = vpack.c.b16 %v1183, %v1181
    %1248 = vmatpush.bf16.msra.mxu0 %v1198
    %1249 = vmatpush.bf16.msra.mxu0 %v1196
    %1250 = vmatpush.bf16.msra.mxu0 %v1194
    %1251 = vmatpush.bf16.msra.mxu0 %v1192
    %1252 = vmatpush.bf16.msra.mxu0 %v1190
    %1253 = vmatpush.bf16.msra.mxu0 %v1188
    %1254 = vmatpush.bf16.msra.mxu0 %v1186
    %1255 = vmatpush.bf16.msra.mxu0 %v1184
    %1256 = vmatmul.bf16.gmra.mxu0 %v1046
    %v1257 = vpop.f32.mrf.mxu0
    %v1258 = vadd.f32 %v1084, %v1257
    %v1259 = vpop.f32.mrf.mxu0
    %1260 = vdwg.mxu0
    %1261 = vmatpush.bf16.msra.mxu0 %v1214
    %1262 = vmatpush.bf16.msra.mxu0 %v1212
    %1263 = vmatpush.bf16.msra.mxu0 %v1210
    %1264 = vmatpush.bf16.msra.mxu0 %v1208
    %1265 = vmatpush.bf16.msra.mxu0 %v1206
    %1266 = vmatpush.bf16.msra.mxu0 %v1204
    %1267 = vmatpush.bf16.msra.mxu0 %v1202
    %1268 = vmatpush.bf16.msra.mxu0 %v1200
    %1269 = vmatmul.bf16.gmra.mxu0 %v1047
    %v1270 = vpop.f32.mrf.mxu0
    %v1271 = vadd.f32 %v1258, %v1270
    %v1272 = vpop.f32.mrf.mxu0
    %1273 = vdwg.mxu0
    %1274 = vmatpush.bf16.msra.mxu0 %v1199
    %1275 = vmatpush.bf16.msra.mxu0 %v1197
    %1276 = vmatpush.bf16.msra.mxu0 %v1195
    %1277 = vmatpush.bf16.msra.mxu0 %v1193
    %1278 = vmatpush.bf16.msra.mxu0 %v1191
    %1279 = vmatpush.bf16.msra.mxu0 %v1189
    %1280 = vmatpush.bf16.msra.mxu0 %v1187
    %1281 = vmatpush.bf16.msra.mxu0 %v1185
    %1282 = vmatmul.bf16.gmra.mxu0 %v1046
    %v1283 = vpop.f32.mrf.mxu0
    %v1284 = vadd.f32 %v1085, %v1283
    %v1285 = vpop.f32.mrf.mxu0
    %1286 = vdwg.mxu0
    %1287 = vmatpush.bf16.msra.mxu0 %v1215
    %1288 = vmatpush.bf16.msra.mxu0 %v1213
    %1289 = vmatpush.bf16.msra.mxu0 %v1211
    %1290 = vmatpush.bf16.msra.mxu0 %v1209
    %1291 = vmatpush.bf16.msra.mxu0 %v1207
    %1292 = vmatpush.bf16.msra.mxu0 %v1205
    %1293 = vmatpush.bf16.msra.mxu0 %v1203
    %1294 = vmatpush.bf16.msra.mxu0 %v1201
    %1295 = vmatmul.bf16.gmra.mxu0 %v1047
    %v1296 = vpop.f32.mrf.mxu0
    %v1297 = vadd.f32 %v1284, %v1296
    %v1298 = vpop.f32.mrf.mxu0
    %1299 = vdwg.mxu0
    %s1300 = scalar_lea.vmem %s10, 4
    %v1301 = vld [vmem:[%s1300] sm:$0x3]
    %s1302 = scalar_lea.vmem %s11, 4
    %v1303 = vld [vmem:[%s1302] sm:$0x3]
    %v1304 = vrot.slane %v1271, 4
    %v1305 = vadd.f32 %v1271, %v1304
    %v1306 = vrot.slane %v1305, 2
    %v1307 = vadd.f32 %v1305, %v1306
    %v1308 = vrot.slane %v1307, 1
    %v1309 = vadd.f32 %v1307, %v1308
    %v1310 = vrot.slane %v1297, 4
    %v1311 = vadd.f32 %v1297, %v1310
    %v1312 = vrot.slane %v1311, 2
    %v1313 = vadd.f32 %v1311, %v1312
    %v1314 = vrot.slane %v1313, 1
    %v1315 = vadd.f32 %v1313, %v1314
    %v1316 = vmul.f32 %v1309, %v274
    %v1317 = vmul.f32 %v1315, %v274
    %v1318 = vmul.f32 %v1271, %v1271
    %v1319 = vmul.f32 %v1297, %v1297
    %v1320 = vrot.slane %v1318, 4
    %v1321 = vadd.f32 %v1318, %v1320
    %v1322 = vrot.slane %v1321, 2
    %v1323 = vadd.f32 %v1321, %v1322
    %v1324 = vrot.slane %v1323, 1
    %v1325 = vadd.f32 %v1323, %v1324
    %v1326 = vrot.slane %v1319, 4
    %v1327 = vadd.f32 %v1319, %v1326
    %v1328 = vrot.slane %v1327, 2
    %v1329 = vadd.f32 %v1327, %v1328
    %v1330 = vrot.slane %v1329, 1
    %v1331 = vadd.f32 %v1329, %v1330
    %v1332 = vmul.f32 %v1325, %v274
    %v1333 = vmul.f32 %v1331, %v274
    %v1334 = vmul.f32 %v1316, %v1316
    %v1335 = vmul.f32 %v1317, %v1317
    %v1336 = vsub.f32 %v1332, %v1334
    %v1337 = vsub.f32 %v1333, %v1335
    %v1338 = vmax.f32 %v1336, 0.0
    %v1339 = vmax.f32 %v1337, 0.0
    %v1340 = vadd.f32 %v1338, 1e-05
    %v1341 = vadd.f32 %v1339, 1e-05
    %v1342 = vrsqrt.pop %v1340
    %v1343 = vmul.f32 %v1342, %v1340
    %v1344 = vmul.f32 %v1343, %v1342
    %v1345 = vmul.f32 0.5, %v1344
    %v1346 = vsub.f32 1.5, %v1345
    %v1347 = vmul.f32 %v1342, %v1346
    %vm1348 = vweird.f32 %v1340
    %vm1349 = vweird.f32 %v1342
    %vm1350 = vmor %vm1348, %vm1349
    %v1351 = vsel %vm1350, %v1342, %v1347
    %v1352 = vrsqrt.pop %v1341
    %v1353 = vmul.f32 %v1352, %v1341
    %v1354 = vmul.f32 %v1353, %v1352
    %v1355 = vmul.f32 0.5, %v1354
    %v1356 = vsub.f32 1.5, %v1355
    %v1357 = vmul.f32 %v1352, %v1356
    %vm1358 = vweird.f32 %v1341
    %vm1359 = vweird.f32 %v1352
    %vm1360 = vmor %vm1358, %vm1359
    %v1361 = vsel %vm1360, %v1352, %v1357
    %v1364 = vrot.slane %v1361, 7
    %v1365 = vsel %vm324, %v1351, %v1364
    %v1367 = vmul.f32 %v1301, %v1365
    %v1369 = vperm.slane %v1367, 0
    %v1370 = vperm.slane %v1367, 1
    %v1373 = vmul.f32 %v1316, %v1369
    %v1374 = vmul.f32 %v1317, %v1370
    %v1377 = vrot.slane %v1374, 7
    %v1378 = vsel %vm324, %v1373, %v1377
    %v1380 = vsub.f32 %v1303, %v1378
    %v1381 = vmul.f32 %v1271, %v1369
    %v1382 = vmul.f32 %v1297, %v1370
    %v1384 = vperm.slane %v1380, 0
    %v1385 = vperm.slane %v1380, 1
    %v1388 = vadd.f32 %v1381, %v1384
    %v1389 = vadd.f32 %v1382, %v1385
    %v1390 = vmul.f32 %v1388, 0.01
    %v1391 = vmul.f32 %v1389, 0.01
    %v1392 = vmax.f32 %v1388, %v1390
    %v1393 = vmax.f32 %v1389, %v1391
    %v1394 = vpack.c.bf16 %v1392, %v1392
    %v1395 = vpack.c.bf16 %v1393, %v1393
    %s1396 = scalar_lea.vmem [#allocation8], 768
    %v1397 = vld [vmem:[%s1396] sm:$0xff]
    %v1398 = vld [vmem:[%s1396 + $0x8] sm:$0xff]
    %v1399 = vld [vmem:[%s1396 + $0x10] sm:$0xff]
    %v1400 = vld [vmem:[%s1396 + $0x18] sm:$0xff]
    %v1401 = vld [vmem:[%s1396 + $0x20] sm:$0xff]
    %v1402 = vld [vmem:[%s1396 + $0x28] sm:$0xff]
    %v1403 = vld [vmem:[%s1396 + $0x30] sm:$0xff]
    %v1404 = vld [vmem:[%s1396 + $0x38] sm:$0xff]
    %v1405 = vld [vmem:[%s1396 + $0x40] sm:$0xff]
    %v1406 = vld [vmem:[%s1396 + $0x48] sm:$0xff]
    %v1407 = vld [vmem:[%s1396 + $0x50] sm:$0xff]
    %v1408 = vld [vmem:[%s1396 + $0x58] sm:$0xff]
    %v1409 = vld [vmem:[%s1396 + $0x60] sm:$0xff]
    %v1410 = vld [vmem:[%s1396 + $0x68] sm:$0xff]
    %v1411 = vld [vmem:[%s1396 + $0x70] sm:$0xff]
    %v1412 = vld [vmem:[%s1396 + $0x78] sm:$0xff]
    %v1413 = vld [vmem:[%s1396 + $0x80] sm:$0xff]
    %v1414 = vld [vmem:[%s1396 + $0x88] sm:$0xff]
    %v1415 = vld [vmem:[%s1396 + $0x90] sm:$0xff]
    %v1416 = vld [vmem:[%s1396 + $0x98] sm:$0xff]
    %v1417 = vld [vmem:[%s1396 + $0xa0] sm:$0xff]
    %v1418 = vld [vmem:[%s1396 + $0xa8] sm:$0xff]
    %v1419 = vld [vmem:[%s1396 + $0xb0] sm:$0xff]
    %v1420 = vld [vmem:[%s1396 + $0xb8] sm:$0xff]
    %v1421 = vld [vmem:[%s1396 + $0xc0] sm:$0xff]
    %v1422 = vld [vmem:[%s1396 + $0xc8] sm:$0xff]
    %v1423 = vld [vmem:[%s1396 + $0xd0] sm:$0xff]
    %v1424 = vld [vmem:[%s1396 + $0xd8] sm:$0xff]
    %v1425 = vld [vmem:[%s1396 + $0xe0] sm:$0xff]
    %v1426 = vld [vmem:[%s1396 + $0xe8] sm:$0xff]
    %v1427 = vld [vmem:[%s1396 + $0xf0] sm:$0xff]
    %v1428 = vld [vmem:[%s1396 + $0xf8] sm:$0xff]
    %s1429 = scalar_lea.vmem %s9, 6
    %v1430 = vld [vmem:[%s1429] sm:$0x3]
    %v1432 = vperm.slane %v1430, 0
    %v1433 = vperm.slane %v1430, 1
    %v1468 = vunpack.c.l.b16 %v1397
    %v1469 = vunpack.c.h.b16 %v1397
    %v1470 = vunpack.c.l.b16 %v1398
    %v1471 = vunpack.c.h.b16 %v1398
    %v1472 = vunpack.c.l.b16 %v1399
    %v1473 = vunpack.c.h.b16 %v1399
    %v1474 = vunpack.c.l.b16 %v1400
    %v1475 = vunpack.c.h.b16 %v1400
    %v1476 = vunpack.c.l.b16 %v1401
    %v1477 = vunpack.c.h.b16 %v1401
    %v1478 = vunpack.c.l.b16 %v1402
    %v1479 = vunpack.c.h.b16 %v1402
    %v1480 = vunpack.c.l.b16 %v1403
    %v1481 = vunpack.c.h.b16 %v1403
    %v1482 = vunpack.c.l.b16 %v1404
    %v1483 = vunpack.c.h.b16 %v1404
    %v1484 = vunpack.c.l.b16 %v1405
    %v1485 = vunpack.c.h.b16 %v1405
    %v1486 = vunpack.c.l.b16 %v1406
    %v1487 = vunpack.c.h.b16 %v1406
    %v1488 = vunpack.c.l.b16 %v1407
    %v1489 = vunpack.c.h.b16 %v1407
    %v1490 = vunpack.c.l.b16 %v1408
    %v1491 = vunpack.c.h.b16 %v1408
    %v1492 = vunpack.c.l.b16 %v1409
    %v1493 = vunpack.c.h.b16 %v1409
    %v1494 = vunpack.c.l.b16 %v1410
    %v1495 = vunpack.c.h.b16 %v1410
    %v1496 = vunpack.c.l.b16 %v1411
    %v1497 = vunpack.c.h.b16 %v1411
    %v1498 = vunpack.c.l.b16 %v1412
    %v1499 = vunpack.c.h.b16 %v1412
    %v1500 = vunpack.c.l.b16 %v1413
    %v1501 = vunpack.c.h.b16 %v1413
    %v1502 = vunpack.c.l.b16 %v1414
    %v1503 = vunpack.c.h.b16 %v1414
    %v1504 = vunpack.c.l.b16 %v1415
    %v1505 = vunpack.c.h.b16 %v1415
    %v1506 = vunpack.c.l.b16 %v1416
    %v1507 = vunpack.c.h.b16 %v1416
    %v1508 = vunpack.c.l.b16 %v1417
    %v1509 = vunpack.c.h.b16 %v1417
    %v1510 = vunpack.c.l.b16 %v1418
    %v1511 = vunpack.c.h.b16 %v1418
    %v1512 = vunpack.c.l.b16 %v1419
    %v1513 = vunpack.c.h.b16 %v1419
    %v1514 = vunpack.c.l.b16 %v1420
    %v1515 = vunpack.c.h.b16 %v1420
    %v1516 = vunpack.c.l.b16 %v1421
    %v1517 = vunpack.c.h.b16 %v1421
    %v1518 = vunpack.c.l.b16 %v1422
    %v1519 = vunpack.c.h.b16 %v1422
    %v1520 = vunpack.c.l.b16 %v1423
    %v1521 = vunpack.c.h.b16 %v1423
    %v1522 = vunpack.c.l.b16 %v1424
    %v1523 = vunpack.c.h.b16 %v1424
    %v1524 = vunpack.c.l.b16 %v1425
    %v1525 = vunpack.c.h.b16 %v1425
    %v1526 = vunpack.c.l.b16 %v1426
    %v1527 = vunpack.c.h.b16 %v1426
    %v1528 = vunpack.c.l.b16 %v1427
    %v1529 = vunpack.c.h.b16 %v1427
    %v1530 = vunpack.c.l.b16 %v1428
    %v1531 = vunpack.c.h.b16 %v1428
    %v1532 = vpack.c.b16 %v1470, %v1468
    %v1533 = vpack.c.b16 %v1471, %v1469
    %v1534 = vpack.c.b16 %v1474, %v1472
    %v1535 = vpack.c.b16 %v1475, %v1473
    %v1536 = vpack.c.b16 %v1478, %v1476
    %v1537 = vpack.c.b16 %v1479, %v1477
    %v1538 = vpack.c.b16 %v1482, %v1480
    %v1539 = vpack.c.b16 %v1483, %v1481
    %v1540 = vpack.c.b16 %v1486, %v1484
    %v1541 = vpack.c.b16 %v1487, %v1485
    %v1542 = vpack.c.b16 %v1490, %v1488
    %v1543 = vpack.c.b16 %v1491, %v1489
    %v1544 = vpack.c.b16 %v1494, %v1492
    %v1545 = vpack.c.b16 %v1495, %v1493
    %v1546 = vpack.c.b16 %v1498, %v1496
    %v1547 = vpack.c.b16 %v1499, %v1497
    %v1548 = vpack.c.b16 %v1502, %v1500
    %v1549 = vpack.c.b16 %v1503, %v1501
    %v1550 = vpack.c.b16 %v1506, %v1504
    %v1551 = vpack.c.b16 %v1507, %v1505
    %v1552 = vpack.c.b16 %v1510, %v1508
    %v1553 = vpack.c.b16 %v1511, %v1509
    %v1554 = vpack.c.b16 %v1514, %v1512
    %v1555 = vpack.c.b16 %v1515, %v1513
    %v1556 = vpack.c.b16 %v1518, %v1516
    %v1557 = vpack.c.b16 %v1519, %v1517
    %v1558 = vpack.c.b16 %v1522, %v1520
    %v1559 = vpack.c.b16 %v1523, %v1521
    %v1560 = vpack.c.b16 %v1526, %v1524
    %v1561 = vpack.c.b16 %v1527, %v1525
    %v1562 = vpack.c.b16 %v1530, %v1528
    %v1563 = vpack.c.b16 %v1531, %v1529
    %1596 = vmatpush.bf16.msra.mxu0 %v1546
    %1597 = vmatpush.bf16.msra.mxu0 %v1544
    %1598 = vmatpush.bf16.msra.mxu0 %v1542
    %1599 = vmatpush.bf16.msra.mxu0 %v1540
    %1600 = vmatpush.bf16.msra.mxu0 %v1538
    %1601 = vmatpush.bf16.msra.mxu0 %v1536
    %1602 = vmatpush.bf16.msra.mxu0 %v1534
    %1603 = vmatpush.bf16.msra.mxu0 %v1532
    %1604 = vmatmul.bf16.gmra.mxu0 %v1394
    %v1605 = vpop.f32.mrf.mxu0
    %v1606 = vadd.f32 %v1432, %v1605
    %v1607 = vpop.f32.mrf.mxu0
    %1608 = vdwg.mxu0
    %1609 = vmatpush.bf16.msra.mxu0 %v1562
    %1610 = vmatpush.bf16.msra.mxu0 %v1560
    %1611 = vmatpush.bf16.msra.mxu0 %v1558
    %1612 = vmatpush.bf16.msra.mxu0 %v1556
    %1613 = vmatpush.bf16.msra.mxu0 %v1554
    %1614 = vmatpush.bf16.msra.mxu0 %v1552
    %1615 = vmatpush.bf16.msra.mxu0 %v1550
    %1616 = vmatpush.bf16.msra.mxu0 %v1548
    %1617 = vmatmul.bf16.gmra.mxu0 %v1395
    %v1618 = vpop.f32.mrf.mxu0
    %v1619 = vadd.f32 %v1606, %v1618
    %v1620 = vpop.f32.mrf.mxu0
    %1621 = vdwg.mxu0
    %1622 = vmatpush.bf16.msra.mxu0 %v1547
    %1623 = vmatpush.bf16.msra.mxu0 %v1545
    %1624 = vmatpush.bf16.msra.mxu0 %v1543
    %1625 = vmatpush.bf16.msra.mxu0 %v1541
    %1626 = vmatpush.bf16.msra.mxu0 %v1539
    %1627 = vmatpush.bf16.msra.mxu0 %v1537
    %1628 = vmatpush.bf16.msra.mxu0 %v1535
    %1629 = vmatpush.bf16.msra.mxu0 %v1533
    %1630 = vmatmul.bf16.gmra.mxu0 %v1394
    %v1631 = vpop.f32.mrf.mxu0
    %v1632 = vadd.f32 %v1433, %v1631
    %v1633 = vpop.f32.mrf.mxu0
    %1634 = vdwg.mxu0
    %1635 = vmatpush.bf16.msra.mxu0 %v1563
    %1636 = vmatpush.bf16.msra.mxu0 %v1561
    %1637 = vmatpush.bf16.msra.mxu0 %v1559
    %1638 = vmatpush.bf16.msra.mxu0 %v1557
    %1639 = vmatpush.bf16.msra.mxu0 %v1555
    %1640 = vmatpush.bf16.msra.mxu0 %v1553
    %1641 = vmatpush.bf16.msra.mxu0 %v1551
    %1642 = vmatpush.bf16.msra.mxu0 %v1549
    %1643 = vmatmul.bf16.gmra.mxu0 %v1395
    %v1644 = vpop.f32.mrf.mxu0
    %v1645 = vadd.f32 %v1632, %v1644
    %v1646 = vpop.f32.mrf.mxu0
    %1647 = vdwg.mxu0
    %s1648 = scalar_lea.vmem %s10, 6
    %v1649 = vld [vmem:[%s1648] sm:$0x3]
    %s1650 = scalar_lea.vmem %s11, 6
    %v1651 = vld [vmem:[%s1650] sm:$0x3]
    %v1652 = vrot.slane %v1619, 4
    %v1653 = vadd.f32 %v1619, %v1652
    %v1654 = vrot.slane %v1653, 2
    %v1655 = vadd.f32 %v1653, %v1654
    %v1656 = vrot.slane %v1655, 1
    %v1657 = vadd.f32 %v1655, %v1656
    %v1658 = vrot.slane %v1645, 4
    %v1659 = vadd.f32 %v1645, %v1658
    %v1660 = vrot.slane %v1659, 2
    %v1661 = vadd.f32 %v1659, %v1660
    %v1662 = vrot.slane %v1661, 1
    %v1663 = vadd.f32 %v1661, %v1662
    %v1664 = vmul.f32 %v1657, %v274
    %v1665 = vmul.f32 %v1663, %v274
    %v1666 = vmul.f32 %v1619, %v1619
    %v1667 = vmul.f32 %v1645, %v1645
    %v1668 = vrot.slane %v1666, 4
    %v1669 = vadd.f32 %v1666, %v1668
    %v1670 = vrot.slane %v1669, 2
    %v1671 = vadd.f32 %v1669, %v1670
    %v1672 = vrot.slane %v1671, 1
    %v1673 = vadd.f32 %v1671, %v1672
    %v1674 = vrot.slane %v1667, 4
    %v1675 = vadd.f32 %v1667, %v1674
    %v1676 = vrot.slane %v1675, 2
    %v1677 = vadd.f32 %v1675, %v1676
    %v1678 = vrot.slane %v1677, 1
    %v1679 = vadd.f32 %v1677, %v1678
    %v1680 = vmul.f32 %v1673, %v274
    %v1681 = vmul.f32 %v1679, %v274
    %v1682 = vmul.f32 %v1664, %v1664
    %v1683 = vmul.f32 %v1665, %v1665
    %v1684 = vsub.f32 %v1680, %v1682
    %v1685 = vsub.f32 %v1681, %v1683
    %v1686 = vmax.f32 %v1684, 0.0
    %v1687 = vmax.f32 %v1685, 0.0
    %v1688 = vadd.f32 %v1686, 1e-05
    %v1689 = vadd.f32 %v1687, 1e-05
    %v1690 = vrsqrt.pop %v1688
    %v1691 = vmul.f32 %v1690, %v1688
    %v1692 = vmul.f32 %v1691, %v1690
    %v1693 = vmul.f32 0.5, %v1692
    %v1694 = vsub.f32 1.5, %v1693
    %v1695 = vmul.f32 %v1690, %v1694
    %vm1696 = vweird.f32 %v1688
    %vm1697 = vweird.f32 %v1690
    %vm1698 = vmor %vm1696, %vm1697
    %v1699 = vsel %vm1698, %v1690, %v1695
    %v1700 = vrsqrt.pop %v1689
    %v1701 = vmul.f32 %v1700, %v1689
    %v1702 = vmul.f32 %v1701, %v1700
    %v1703 = vmul.f32 0.5, %v1702
    %v1704 = vsub.f32 1.5, %v1703
    %v1705 = vmul.f32 %v1700, %v1704
    %vm1706 = vweird.f32 %v1689
    %vm1707 = vweird.f32 %v1700
    %vm1708 = vmor %vm1706, %vm1707
    %v1709 = vsel %vm1708, %v1700, %v1705
    %v1712 = vrot.slane %v1709, 7
    %v1713 = vsel %vm324, %v1699, %v1712
    %v1715 = vmul.f32 %v1649, %v1713
    %v1717 = vperm.slane %v1715, 0
    %v1718 = vperm.slane %v1715, 1
    %v1721 = vmul.f32 %v1664, %v1717
    %v1722 = vmul.f32 %v1665, %v1718
    %v1725 = vrot.slane %v1722, 7
    %v1726 = vsel %vm324, %v1721, %v1725
    %v1728 = vsub.f32 %v1651, %v1726
    %v1729 = vmul.f32 %v1619, %v1717
    %v1730 = vmul.f32 %v1645, %v1718
    %v1732 = vperm.slane %v1728, 0
    %v1733 = vperm.slane %v1728, 1
    %v1736 = vadd.f32 %v1729, %v1732
    %v1737 = vadd.f32 %v1730, %v1733
    %v1738 = vmul.f32 %v1736, 0.01
    %v1739 = vmul.f32 %v1737, 0.01
    %v1740 = vmax.f32 %v1736, %v1738
    %v1741 = vmax.f32 %v1737, %v1739
    %v1742 = vpack.c.bf16 %v1740, %v1740
    %v1743 = vpack.c.bf16 %v1741, %v1741
    %v1744 = vld [vmem:[%s12] sm:$0xf]
    %v1745 = vld [vmem:[%s12 + $0x4] sm:$0xf]
    %v1746 = vld [vmem:[%s12 + $0x8] sm:$0xf]
    %v1747 = vld [vmem:[%s12 + $0xc] sm:$0xf]
    %v1748 = vld [vmem:[%s12 + $0x10] sm:$0xf]
    %v1749 = vld [vmem:[%s12 + $0x14] sm:$0xf]
    %v1750 = vld [vmem:[%s12 + $0x18] sm:$0xf]
    %v1751 = vld [vmem:[%s12 + $0x1c] sm:$0xf]
    %v1752 = vld [vmem:[%s12 + $0x20] sm:$0xf]
    %v1753 = vld [vmem:[%s12 + $0x24] sm:$0xf]
    %v1754 = vld [vmem:[%s12 + $0x28] sm:$0xf]
    %v1755 = vld [vmem:[%s12 + $0x2c] sm:$0xf]
    %v1756 = vld [vmem:[%s12 + $0x30] sm:$0xf]
    %v1757 = vld [vmem:[%s12 + $0x34] sm:$0xf]
    %v1758 = vld [vmem:[%s12 + $0x38] sm:$0xf]
    %v1759 = vld [vmem:[%s12 + $0x3c] sm:$0xf]
    %v1760 = vld [vmem:[%s12 + $0x40] sm:$0xf]
    %v1761 = vld [vmem:[%s12 + $0x44] sm:$0xf]
    %v1762 = vld [vmem:[%s12 + $0x48] sm:$0xf]
    %v1763 = vld [vmem:[%s12 + $0x4c] sm:$0xf]
    %v1764 = vld [vmem:[%s12 + $0x50] sm:$0xf]
    %v1765 = vld [vmem:[%s12 + $0x54] sm:$0xf]
    %v1766 = vld [vmem:[%s12 + $0x58] sm:$0xf]
    %v1767 = vld [vmem:[%s12 + $0x5c] sm:$0xf]
    %v1768 = vld [vmem:[%s12 + $0x60] sm:$0xf]
    %v1769 = vld [vmem:[%s12 + $0x64] sm:$0xf]
    %v1770 = vld [vmem:[%s12 + $0x68] sm:$0xf]
    %v1771 = vld [vmem:[%s12 + $0x6c] sm:$0xf]
    %v1772 = vld [vmem:[%s12 + $0x70] sm:$0xf]
    %v1773 = vld [vmem:[%s12 + $0x74] sm:$0xf]
    %v1774 = vld [vmem:[%s12 + $0x78] sm:$0xf]
    %v1775 = vld [vmem:[%s12 + $0x7c] sm:$0xf]
    %v1776 = vld [vmem:[%s13] sm:$0x1]
    %v1778 = vperm.slane %v1776, 0
    %v1812 = vunpack.c.l.b16 %v1744
    %v1813 = vunpack.c.l.b16 %v1745
    %v1814 = vunpack.c.l.b16 %v1746
    %v1815 = vunpack.c.l.b16 %v1747
    %v1816 = vunpack.c.l.b16 %v1748
    %v1817 = vunpack.c.l.b16 %v1749
    %v1818 = vunpack.c.l.b16 %v1750
    %v1819 = vunpack.c.l.b16 %v1751
    %v1820 = vunpack.c.l.b16 %v1752
    %v1821 = vunpack.c.l.b16 %v1753
    %v1822 = vunpack.c.l.b16 %v1754
    %v1823 = vunpack.c.l.b16 %v1755
    %v1824 = vunpack.c.l.b16 %v1756
    %v1825 = vunpack.c.l.b16 %v1757
    %v1826 = vunpack.c.l.b16 %v1758
    %v1827 = vunpack.c.l.b16 %v1759
    %v1828 = vunpack.c.l.b16 %v1760
    %v1829 = vunpack.c.l.b16 %v1761
    %v1830 = vunpack.c.l.b16 %v1762
    %v1831 = vunpack.c.l.b16 %v1763
    %v1832 = vunpack.c.l.b16 %v1764
    %v1833 = vunpack.c.l.b16 %v1765
    %v1834 = vunpack.c.l.b16 %v1766
    %v1835 = vunpack.c.l.b16 %v1767
    %v1836 = vunpack.c.l.b16 %v1768
    %v1837 = vunpack.c.l.b16 %v1769
    %v1838 = vunpack.c.l.b16 %v1770
    %v1839 = vunpack.c.l.b16 %v1771
    %v1840 = vunpack.c.l.b16 %v1772
    %v1841 = vunpack.c.l.b16 %v1773
    %v1842 = vunpack.c.l.b16 %v1774
    %v1843 = vunpack.c.l.b16 %v1775
    %v1844 = vpack.c.b16 %v1813, %v1812
    %v1845 = vpack.c.b16 %v1815, %v1814
    %v1846 = vpack.c.b16 %v1817, %v1816
    %v1847 = vpack.c.b16 %v1819, %v1818
    %v1848 = vpack.c.b16 %v1821, %v1820
    %v1849 = vpack.c.b16 %v1823, %v1822
    %v1850 = vpack.c.b16 %v1825, %v1824
    %v1851 = vpack.c.b16 %v1827, %v1826
    %v1852 = vpack.c.b16 %v1829, %v1828
    %v1853 = vpack.c.b16 %v1831, %v1830
    %v1854 = vpack.c.b16 %v1833, %v1832
    %v1855 = vpack.c.b16 %v1835, %v1834
    %v1856 = vpack.c.b16 %v1837, %v1836
    %v1857 = vpack.c.b16 %v1839, %v1838
    %v1858 = vpack.c.b16 %v1841, %v1840
    %v1859 = vpack.c.b16 %v1843, %v1842
    %1876 = vmatpush.bf16.msra.mxu0 %v1851
    %1877 = vmatpush.bf16.msra.mxu0 %v1850
    %1878 = vmatpush.bf16.msra.mxu0 %v1849
    %1879 = vmatpush.bf16.msra.mxu0 %v1848
    %1880 = vmatpush.bf16.msra.mxu0 %v1847
    %1881 = vmatpush.bf16.msra.mxu0 %v1846
    %1882 = vmatpush.bf16.msra.mxu0 %v1845
    %1883 = vmatpush.bf16.msra.mxu0 %v1844
    %1884 = vmatmul.bf16.gmra.mxu0 %v1742
    %v1885 = vpop.f32.mrf.mxu0
    %v1886 = vadd.f32 %v1778, %v1885
    %v1887 = vpop.f32.mrf.mxu0
    %1888 = vdwg.mxu0
    %1889 = vmatpush.bf16.msra.mxu0 %v1859
    %1890 = vmatpush.bf16.msra.mxu0 %v1858
    %1891 = vmatpush.bf16.msra.mxu0 %v1857
    %1892 = vmatpush.bf16.msra.mxu0 %v1856
    %1893 = vmatpush.bf16.msra.mxu0 %v1855
    %1894 = vmatpush.bf16.msra.mxu0 %v1854
    %1895 = vmatpush.bf16.msra.mxu0 %v1853
    %1896 = vmatpush.bf16.msra.mxu0 %v1852
    %1897 = vmatmul.bf16.gmra.mxu0 %v1743
    %v1898 = vpop.f32.mrf.mxu0
    %v1899 = vadd.f32 %v1886, %v1898
    %v1900 = vpop.f32.mrf.mxu0
    %1901 = vdwg.mxu0
    %s1902 = scalar_lea.vmem %s1, 8
    %v1903 = vld [vmem:[%s1902] sm:$0xff]
    %v1904 = vpack.c.bf16 %v1903, %v1903
    %s1905 = scalar_lea.vmem %s3, 48
    %v1906 = vld [vmem:[%s1905] sm:$0xff]
    %v1907 = vld [vmem:[%s1905 + $0x8] sm:$0xff]
    %v1908 = vld [vmem:[%s1905 + $0x10] sm:$0xff]
    %v1909 = vld [vmem:[%s1905 + $0x18] sm:$0xff]
    %v1910 = vld [vmem:[%s1905 + $0x20] sm:$0xff]
    %v1911 = vld [vmem:[%s1905 + $0x28] sm:$0xff]
    %s1912 = scalar_lea.vmem %s4, 48
    %v1913 = vld [vmem:[%s1912] sm:$0xff]
    %v1914 = vld [vmem:[%s1912 + $0x8] sm:$0xff]
    %v1915 = vld [vmem:[%s1912 + $0x10] sm:$0xff]
    %v1916 = vld [vmem:[%s1912 + $0x18] sm:$0xff]
    %v1917 = vld [vmem:[%s1912 + $0x20] sm:$0xff]
    %v1918 = vld [vmem:[%s1912 + $0x28] sm:$0xff]
    %v1925 = vunpack.c.l.b16 %v1913
    %v1926 = vunpack.c.h.b16 %v1913
    %v1927 = vunpack.c.l.b16 %v1914
    %v1928 = vunpack.c.h.b16 %v1914
    %v1929 = vunpack.c.l.b16 %v1915
    %v1930 = vunpack.c.h.b16 %v1915
    %v1931 = vunpack.c.l.b16 %v1916
    %v1932 = vunpack.c.h.b16 %v1916
    %v1933 = vunpack.c.l.b16 %v1917
    %v1934 = vunpack.c.h.b16 %v1917
    %v1935 = vunpack.c.l.b16 %v1918
    %v1936 = vunpack.c.h.b16 %v1918
    %v1937 = vpack.c.b16 %v1927, %v1925
    %v1938 = vpack.c.b16 %v1928, %v1926
    %v1939 = vpack.c.b16 %v1931, %v1929
    %v1940 = vpack.c.b16 %v1932, %v1930
    %v1941 = vpack.c.b16 %v1935, %v1933
    %v1942 = vpack.c.b16 %v1936, %v1934
    %v1950 = vsel %vm157, %v1904, 0
    %1952 = vmatpush.bf16.msra.mxu0 0
    %1953 = vmatpush.bf16.msra.mxu0 0
    %1954 = vmatpush.bf16.msra.mxu0 0
    %1955 = vmatpush.bf16.msra.mxu0 0
    %1956 = vmatpush.bf16.msra.mxu0 0
    %1957 = vmatpush.bf16.msra.mxu0 %v1941
    %1958 = vmatpush.bf16.msra.mxu0 %v1939
    %1959 = vmatpush.bf16.msra.mxu0 %v1937
    %1960 = vmatmul.bf16.gmra.mxu0 %v1950
    %v1961 = vpop.f32.mrf.mxu0
    %v1962 = vadd.f32 0.0, %v1961
    %v1963 = vpop.f32.mrf.mxu0
    %1964 = vdwg.mxu0
    %1965 = vmatpush.bf16.msra.mxu0 0
    %1966 = vmatpush.bf16.msra.mxu0 0
    %1967 = vmatpush.bf16.msra.mxu0 0
    %1968 = vmatpush.bf16.msra.mxu0 0
    %1969 = vmatpush.bf16.msra.mxu0 0
    %1970 = vmatpush.bf16.msra.mxu0 %v1942
    %1971 = vmatpush.bf16.msra.mxu0 %v1940
    %1972 = vmatpush.bf16.msra.mxu0 %v1938
    %1973 = vmatmul.bf16.gmra.mxu0 %v1950
    %v1974 = vpop.f32.mrf.mxu0
    %v1975 = vadd.f32 0.0, %v1974
    %v1976 = vpop.f32.mrf.mxu0
    %1977 = vdwg.mxu0
    %v1984 = vunpack.c.l.b16 %v1906
    %v1985 = vunpack.c.h.b16 %v1906
    %v1986 = vunpack.c.l.b16 %v1907
    %v1987 = vunpack.c.h.b16 %v1907
    %v1988 = vunpack.c.l.b16 %v1908
    %v1989 = vunpack.c.h.b16 %v1908
    %v1990 = vunpack.c.l.b16 %v1909
    %v1991 = vunpack.c.h.b16 %v1909
    %v1992 = vunpack.c.l.b16 %v1910
    %v1993 = vunpack.c.h.b16 %v1910
    %v1994 = vunpack.c.l.b16 %v1911
    %v1995 = vunpack.c.h.b16 %v1911
    %v1996 = vpack.c.b16 %v1986, %v1984
    %v1997 = vpack.c.b16 %v1987, %v1985
    %v1998 = vpack.c.b16 %v1990, %v1988
    %v1999 = vpack.c.b16 %v1991, %v1989
    %v2000 = vpack.c.b16 %v1994, %v1992
    %v2001 = vpack.c.b16 %v1995, %v1993
    %2008 = vmatpush.bf16.msra.mxu0 0
    %2009 = vmatpush.bf16.msra.mxu0 0
    %2010 = vmatpush.bf16.msra.mxu0 0
    %2011 = vmatpush.bf16.msra.mxu0 0
    %2012 = vmatpush.bf16.msra.mxu0 0
    %2013 = vmatpush.bf16.msra.mxu0 %v2000
    %2014 = vmatpush.bf16.msra.mxu0 %v1998
    %2015 = vmatpush.bf16.msra.mxu0 %v1996
    %2016 = vmatmul.bf16.gmra.mxu0 %v218
    %v2017 = vpop.f32.mrf.mxu0
    %v2018 = vadd.f32 %v1962, %v2017
    %v2019 = vpop.f32.mrf.mxu0
    %2020 = vdwg.mxu0
    %2021 = vmatpush.bf16.msra.mxu0 0
    %2022 = vmatpush.bf16.msra.mxu0 0
    %2023 = vmatpush.bf16.msra.mxu0 0
    %2024 = vmatpush.bf16.msra.mxu0 0
    %2025 = vmatpush.bf16.msra.mxu0 0
    %2026 = vmatpush.bf16.msra.mxu0 %v2001
    %2027 = vmatpush.bf16.msra.mxu0 %v1999
    %2028 = vmatpush.bf16.msra.mxu0 %v1997
    %2029 = vmatmul.bf16.gmra.mxu0 %v218
    %v2030 = vpop.f32.mrf.mxu0
    %v2031 = vadd.f32 %v1975, %v2030
    %v2032 = vpop.f32.mrf.mxu0
    %2033 = vdwg.mxu0
    %s2034 = scalar_lea.vmem %s5, 2
    %v2035 = vld [vmem:[%s2034] sm:$0x3]
    %v2037 = vperm.slane %v2035, 0
    %v2038 = vperm.slane %v2035, 1
    %v2041 = vadd.f32 %v2018, %v2037
    %v2042 = vadd.f32 %v2031, %v2038
    %s2043 = scalar_lea.vmem %s6, 2
    %v2044 = vld [vmem:[%s2043] sm:$0x3]
    %s2045 = scalar_lea.vmem [#allocation7], 2
    %v2046 = vld [vmem:[%s2045] sm:$0x3]
    %v2047 = vrot.slane %v2041, 4
    %v2048 = vadd.f32 %v2041, %v2047
    %v2049 = vrot.slane %v2048, 2
    %v2050 = vadd.f32 %v2048, %v2049
    %v2051 = vrot.slane %v2050, 1
    %v2052 = vadd.f32 %v2050, %v2051
    %v2053 = vrot.slane %v2042, 4
    %v2054 = vadd.f32 %v2042, %v2053
    %v2055 = vrot.slane %v2054, 2
    %v2056 = vadd.f32 %v2054, %v2055
    %v2057 = vrot.slane %v2056, 1
    %v2058 = vadd.f32 %v2056, %v2057
    %v2059 = vmul.f32 %v2052, %v274
    %v2060 = vmul.f32 %v2058, %v274
    %v2061 = vmul.f32 %v2041, %v2041
    %v2062 = vmul.f32 %v2042, %v2042
    %v2063 = vrot.slane %v2061, 4
    %v2064 = vadd.f32 %v2061, %v2063
    %v2065 = vrot.slane %v2064, 2
    %v2066 = vadd.f32 %v2064, %v2065
    %v2067 = vrot.slane %v2066, 1
    %v2068 = vadd.f32 %v2066, %v2067
    %v2069 = vrot.slane %v2062, 4
    %v2070 = vadd.f32 %v2062, %v2069
    %v2071 = vrot.slane %v2070, 2
    %v2072 = vadd.f32 %v2070, %v2071
    %v2073 = vrot.slane %v2072, 1
    %v2074 = vadd.f32 %v2072, %v2073
    %v2075 = vmul.f32 %v2068, %v274
    %v2076 = vmul.f32 %v2074, %v274
    %v2077 = vmul.f32 %v2059, %v2059
    %v2078 = vmul.f32 %v2060, %v2060
    %v2079 = vsub.f32 %v2075, %v2077
    %v2080 = vsub.f32 %v2076, %v2078
    %v2081 = vmax.f32 %v2079, 0.0
    %v2082 = vmax.f32 %v2080, 0.0
    %v2083 = vadd.f32 %v2081, 1e-05
    %v2084 = vadd.f32 %v2082, 1e-05
    %v2085 = vrsqrt.pop %v2083
    %v2086 = vmul.f32 %v2085, %v2083
    %v2087 = vmul.f32 %v2086, %v2085
    %v2088 = vmul.f32 0.5, %v2087
    %v2089 = vsub.f32 1.5, %v2088
    %v2090 = vmul.f32 %v2085, %v2089
    %vm2091 = vweird.f32 %v2083
    %vm2092 = vweird.f32 %v2085
    %vm2093 = vmor %vm2091, %vm2092
    %v2094 = vsel %vm2093, %v2085, %v2090
    %v2095 = vrsqrt.pop %v2084
    %v2096 = vmul.f32 %v2095, %v2084
    %v2097 = vmul.f32 %v2096, %v2095
    %v2098 = vmul.f32 0.5, %v2097
    %v2099 = vsub.f32 1.5, %v2098
    %v2100 = vmul.f32 %v2095, %v2099
    %vm2101 = vweird.f32 %v2084
    %vm2102 = vweird.f32 %v2095
    %vm2103 = vmor %vm2101, %vm2102
    %v2104 = vsel %vm2103, %v2095, %v2100
    %v2107 = vrot.slane %v2104, 7
    %v2108 = vsel %vm324, %v2094, %v2107
    %v2110 = vmul.f32 %v2044, %v2108
    %v2112 = vperm.slane %v2110, 0
    %v2113 = vperm.slane %v2110, 1
    %v2116 = vmul.f32 %v2059, %v2112
    %v2117 = vmul.f32 %v2060, %v2113
    %v2120 = vrot.slane %v2117, 7
    %v2121 = vsel %vm324, %v2116, %v2120
    %v2123 = vsub.f32 %v2046, %v2121
    %v2124 = vmul.f32 %v2041, %v2112
    %v2125 = vmul.f32 %v2042, %v2113
    %v2127 = vperm.slane %v2123, 0
    %v2128 = vperm.slane %v2123, 1
    %v2131 = vadd.f32 %v2124, %v2127
    %v2132 = vadd.f32 %v2125, %v2128
    %v2133 = vmul.f32 %v2131, 0.01
    %v2134 = vmul.f32 %v2132, 0.01
    %v2135 = vmax.f32 %v2131, %v2133
    %v2136 = vmax.f32 %v2132, %v2134
    %v2137 = vpack.c.bf16 %v2135, %v2135
    %v2138 = vpack.c.bf16 %v2136, %v2136
    %s2139 = scalar_lea.vmem [#allocation8], 1024
    %v2140 = vld [vmem:[%s2139] sm:$0xff]
    %v2141 = vld [vmem:[%s2139 + $0x8] sm:$0xff]
    %v2142 = vld [vmem:[%s2139 + $0x10] sm:$0xff]
    %v2143 = vld [vmem:[%s2139 + $0x18] sm:$0xff]
    %v2144 = vld [vmem:[%s2139 + $0x20] sm:$0xff]
    %v2145 = vld [vmem:[%s2139 + $0x28] sm:$0xff]
    %v2146 = vld [vmem:[%s2139 + $0x30] sm:$0xff]
    %v2147 = vld [vmem:[%s2139 + $0x38] sm:$0xff]
    %v2148 = vld [vmem:[%s2139 + $0x40] sm:$0xff]
    %v2149 = vld [vmem:[%s2139 + $0x48] sm:$0xff]
    %v2150 = vld [vmem:[%s2139 + $0x50] sm:$0xff]
    %v2151 = vld [vmem:[%s2139 + $0x58] sm:$0xff]
    %v2152 = vld [vmem:[%s2139 + $0x60] sm:$0xff]
    %v2153 = vld [vmem:[%s2139 + $0x68] sm:$0xff]
    %v2154 = vld [vmem:[%s2139 + $0x70] sm:$0xff]
    %v2155 = vld [vmem:[%s2139 + $0x78] sm:$0xff]
    %v2156 = vld [vmem:[%s2139 + $0x80] sm:$0xff]
    %v2157 = vld [vmem:[%s2139 + $0x88] sm:$0xff]
    %v2158 = vld [vmem:[%s2139 + $0x90] sm:$0xff]
    %v2159 = vld [vmem:[%s2139 + $0x98] sm:$0xff]
    %v2160 = vld [vmem:[%s2139 + $0xa0] sm:$0xff]
    %v2161 = vld [vmem:[%s2139 + $0xa8] sm:$0xff]
    %v2162 = vld [vmem:[%s2139 + $0xb0] sm:$0xff]
    %v2163 = vld [vmem:[%s2139 + $0xb8] sm:$0xff]
    %v2164 = vld [vmem:[%s2139 + $0xc0] sm:$0xff]
    %v2165 = vld [vmem:[%s2139 + $0xc8] sm:$0xff]
    %v2166 = vld [vmem:[%s2139 + $0xd0] sm:$0xff]
    %v2167 = vld [vmem:[%s2139 + $0xd8] sm:$0xff]
    %v2168 = vld [vmem:[%s2139 + $0xe0] sm:$0xff]
    %v2169 = vld [vmem:[%s2139 + $0xe8] sm:$0xff]
    %v2170 = vld [vmem:[%s2139 + $0xf0] sm:$0xff]
    %v2171 = vld [vmem:[%s2139 + $0xf8] sm:$0xff]
    %s2172 = scalar_lea.vmem %s9, 8
    %v2173 = vld [vmem:[%s2172] sm:$0x3]
    %v2175 = vperm.slane %v2173, 0
    %v2176 = vperm.slane %v2173, 1
    %v2211 = vunpack.c.l.b16 %v2140
    %v2212 = vunpack.c.h.b16 %v2140
    %v2213 = vunpack.c.l.b16 %v2141
    %v2214 = vunpack.c.h.b16 %v2141
    %v2215 = vunpack.c.l.b16 %v2142
    %v2216 = vunpack.c.h.b16 %v2142
    %v2217 = vunpack.c.l.b16 %v2143
    %v2218 = vunpack.c.h.b16 %v2143
    %v2219 = vunpack.c.l.b16 %v2144
    %v2220 = vunpack.c.h.b16 %v2144
    %v2221 = vunpack.c.l.b16 %v2145
    %v2222 = vunpack.c.h.b16 %v2145
    %v2223 = vunpack.c.l.b16 %v2146
    %v2224 = vunpack.c.h.b16 %v2146
    %v2225 = vunpack.c.l.b16 %v2147
    %v2226 = vunpack.c.h.b16 %v2147
    %v2227 = vunpack.c.l.b16 %v2148
    %v2228 = vunpack.c.h.b16 %v2148
    %v2229 = vunpack.c.l.b16 %v2149
    %v2230 = vunpack.c.h.b16 %v2149
    %v2231 = vunpack.c.l.b16 %v2150
    %v2232 = vunpack.c.h.b16 %v2150
    %v2233 = vunpack.c.l.b16 %v2151
    %v2234 = vunpack.c.h.b16 %v2151
    %v2235 = vunpack.c.l.b16 %v2152
    %v2236 = vunpack.c.h.b16 %v2152
    %v2237 = vunpack.c.l.b16 %v2153
    %v2238 = vunpack.c.h.b16 %v2153
    %v2239 = vunpack.c.l.b16 %v2154
    %v2240 = vunpack.c.h.b16 %v2154
    %v2241 = vunpack.c.l.b16 %v2155
    %v2242 = vunpack.c.h.b16 %v2155
    %v2243 = vunpack.c.l.b16 %v2156
    %v2244 = vunpack.c.h.b16 %v2156
    %v2245 = vunpack.c.l.b16 %v2157
    %v2246 = vunpack.c.h.b16 %v2157
    %v2247 = vunpack.c.l.b16 %v2158
    %v2248 = vunpack.c.h.b16 %v2158
    %v2249 = vunpack.c.l.b16 %v2159
    %v2250 = vunpack.c.h.b16 %v2159
    %v2251 = vunpack.c.l.b16 %v2160
    %v2252 = vunpack.c.h.b16 %v2160
    %v2253 = vunpack.c.l.b16 %v2161
    %v2254 = vunpack.c.h.b16 %v2161
    %v2255 = vunpack.c.l.b16 %v2162
    %v2256 = vunpack.c.h.b16 %v2162
    %v2257 = vunpack.c.l.b16 %v2163
    %v2258 = vunpack.c.h.b16 %v2163
    %v2259 = vunpack.c.l.b16 %v2164
    %v2260 = vunpack.c.h.b16 %v2164
    %v2261 = vunpack.c.l.b16 %v2165
    %v2262 = vunpack.c.h.b16 %v2165
    %v2263 = vunpack.c.l.b16 %v2166
    %v2264 = vunpack.c.h.b16 %v2166
    %v2265 = vunpack.c.l.b16 %v2167
    %v2266 = vunpack.c.h.b16 %v2167
    %v2267 = vunpack.c.l.b16 %v2168
    %v2268 = vunpack.c.h.b16 %v2168
    %v2269 = vunpack.c.l.b16 %v2169
    %v2270 = vunpack.c.h.b16 %v2169
    %v2271 = vunpack.c.l.b16 %v2170
    %v2272 = vunpack.c.h.b16 %v2170
    %v2273 = vunpack.c.l.b16 %v2171
    %v2274 = vunpack.c.h.b16 %v2171
    %v2275 = vpack.c.b16 %v2213, %v2211
    %v2276 = vpack.c.b16 %v2214, %v2212
    %v2277 = vpack.c.b16 %v2217, %v2215
    %v2278 = vpack.c.b16 %v2218, %v2216
    %v2279 = vpack.c.b16 %v2221, %v2219
    %v2280 = vpack.c.b16 %v2222, %v2220
    %v2281 = vpack.c.b16 %v2225, %v2223
    %v2282 = vpack.c.b16 %v2226, %v2224
    %v2283 = vpack.c.b16 %v2229, %v2227
    %v2284 = vpack.c.b16 %v2230, %v2228
    %v2285 = vpack.c.b16 %v2233, %v2231
    %v2286 = vpack.c.b16 %v2234, %v2232
    %v2287 = vpack.c.b16 %v2237, %v2235
    %v2288 = vpack.c.b16 %v2238, %v2236
    %v2289 = vpack.c.b16 %v2241, %v2239
    %v2290 = vpack.c.b16 %v2242, %v2240
    %v2291 = vpack.c.b16 %v2245, %v2243
    %v2292 = vpack.c.b16 %v2246, %v2244
    %v2293 = vpack.c.b16 %v2249, %v2247
    %v2294 = vpack.c.b16 %v2250, %v2248
    %v2295 = vpack.c.b16 %v2253, %v2251
    %v2296 = vpack.c.b16 %v2254, %v2252
    %v2297 = vpack.c.b16 %v2257, %v2255
    %v2298 = vpack.c.b16 %v2258, %v2256
    %v2299 = vpack.c.b16 %v2261, %v2259
    %v2300 = vpack.c.b16 %v2262, %v2260
    %v2301 = vpack.c.b16 %v2265, %v2263
    %v2302 = vpack.c.b16 %v2266, %v2264
    %v2303 = vpack.c.b16 %v2269, %v2267
    %v2304 = vpack.c.b16 %v2270, %v2268
    %v2305 = vpack.c.b16 %v2273, %v2271
    %v2306 = vpack.c.b16 %v2274, %v2272
    %2339 = vmatpush.bf16.msra.mxu0 %v2289
    %2340 = vmatpush.bf16.msra.mxu0 %v2287
    %2341 = vmatpush.bf16.msra.mxu0 %v2285
    %2342 = vmatpush.bf16.msra.mxu0 %v2283
    %2343 = vmatpush.bf16.msra.mxu0 %v2281
    %2344 = vmatpush.bf16.msra.mxu0 %v2279
    %2345 = vmatpush.bf16.msra.mxu0 %v2277
    %2346 = vmatpush.bf16.msra.mxu0 %v2275
    %2347 = vmatmul.bf16.gmra.mxu0 %v2137
    %v2348 = vpop.f32.mrf.mxu0
    %v2349 = vadd.f32 %v2175, %v2348
    %v2350 = vpop.f32.mrf.mxu0
    %2351 = vdwg.mxu0
    %2352 = vmatpush.bf16.msra.mxu0 %v2305
    %2353 = vmatpush.bf16.msra.mxu0 %v2303
    %2354 = vmatpush.bf16.msra.mxu0 %v2301
    %2355 = vmatpush.bf16.msra.mxu0 %v2299
    %2356 = vmatpush.bf16.msra.mxu0 %v2297
    %2357 = vmatpush.bf16.msra.mxu0 %v2295
    %2358 = vmatpush.bf16.msra.mxu0 %v2293
    %2359 = vmatpush.bf16.msra.mxu0 %v2291
    %2360 = vmatmul.bf16.gmra.mxu0 %v2138
    %v2361 = vpop.f32.mrf.mxu0
    %v2362 = vadd.f32 %v2349, %v2361
    %v2363 = vpop.f32.mrf.mxu0
    %2364 = vdwg.mxu0
    %2365 = vmatpush.bf16.msra.mxu0 %v2290
    %2366 = vmatpush.bf16.msra.mxu0 %v2288
    %2367 = vmatpush.bf16.msra.mxu0 %v2286
    %2368 = vmatpush.bf16.msra.mxu0 %v2284
    %2369 = vmatpush.bf16.msra.mxu0 %v2282
    %2370 = vmatpush.bf16.msra.mxu0 %v2280
    %2371 = vmatpush.bf16.msra.mxu0 %v2278
    %2372 = vmatpush.bf16.msra.mxu0 %v2276
    %2373 = vmatmul.bf16.gmra.mxu0 %v2137
    %v2374 = vpop.f32.mrf.mxu0
    %v2375 = vadd.f32 %v2176, %v2374
    %v2376 = vpop.f32.mrf.mxu0
    %2377 = vdwg.mxu0
    %2378 = vmatpush.bf16.msra.mxu0 %v2306
    %2379 = vmatpush.bf16.msra.mxu0 %v2304
    %2380 = vmatpush.bf16.msra.mxu0 %v2302
    %2381 = vmatpush.bf16.msra.mxu0 %v2300
    %2382 = vmatpush.bf16.msra.mxu0 %v2298
    %2383 = vmatpush.bf16.msra.mxu0 %v2296
    %2384 = vmatpush.bf16.msra.mxu0 %v2294
    %2385 = vmatpush.bf16.msra.mxu0 %v2292
    %2386 = vmatmul.bf16.gmra.mxu0 %v2138
    %v2387 = vpop.f32.mrf.mxu0
    %v2388 = vadd.f32 %v2375, %v2387
    %v2389 = vpop.f32.mrf.mxu0
    %2390 = vdwg.mxu0
    %s2391 = scalar_lea.vmem %s10, 8
    %v2392 = vld [vmem:[%s2391] sm:$0x3]
    %s2393 = scalar_lea.vmem %s11, 8
    %v2394 = vld [vmem:[%s2393] sm:$0x3]
    %v2395 = vrot.slane %v2362, 4
    %v2396 = vadd.f32 %v2362, %v2395
    %v2397 = vrot.slane %v2396, 2
    %v2398 = vadd.f32 %v2396, %v2397
    %v2399 = vrot.slane %v2398, 1
    %v2400 = vadd.f32 %v2398, %v2399
    %v2401 = vrot.slane %v2388, 4
    %v2402 = vadd.f32 %v2388, %v2401
    %v2403 = vrot.slane %v2402, 2
    %v2404 = vadd.f32 %v2402, %v2403
    %v2405 = vrot.slane %v2404, 1
    %v2406 = vadd.f32 %v2404, %v2405
    %v2407 = vmul.f32 %v2400, %v274
    %v2408 = vmul.f32 %v2406, %v274
    %v2409 = vmul.f32 %v2362, %v2362
    %v2410 = vmul.f32 %v2388, %v2388
    %v2411 = vrot.slane %v2409, 4
    %v2412 = vadd.f32 %v2409, %v2411
    %v2413 = vrot.slane %v2412, 2
    %v2414 = vadd.f32 %v2412, %v2413
    %v2415 = vrot.slane %v2414, 1
    %v2416 = vadd.f32 %v2414, %v2415
    %v2417 = vrot.slane %v2410, 4
    %v2418 = vadd.f32 %v2410, %v2417
    %v2419 = vrot.slane %v2418, 2
    %v2420 = vadd.f32 %v2418, %v2419
    %v2421 = vrot.slane %v2420, 1
    %v2422 = vadd.f32 %v2420, %v2421
    %v2423 = vmul.f32 %v2416, %v274
    %v2424 = vmul.f32 %v2422, %v274
    %v2425 = vmul.f32 %v2407, %v2407
    %v2426 = vmul.f32 %v2408, %v2408
    %v2427 = vsub.f32 %v2423, %v2425
    %v2428 = vsub.f32 %v2424, %v2426
    %v2429 = vmax.f32 %v2427, 0.0
    %v2430 = vmax.f32 %v2428, 0.0
    %v2431 = vadd.f32 %v2429, 1e-05
    %v2432 = vadd.f32 %v2430, 1e-05
    %v2433 = vrsqrt.pop %v2431
    %v2434 = vmul.f32 %v2433, %v2431
    %v2435 = vmul.f32 %v2434, %v2433
    %v2436 = vmul.f32 0.5, %v2435
    %v2437 = vsub.f32 1.5, %v2436
    %v2438 = vmul.f32 %v2433, %v2437
    %vm2439 = vweird.f32 %v2431
    %vm2440 = vweird.f32 %v2433
    %vm2441 = vmor %vm2439, %vm2440
    %v2442 = vsel %vm2441, %v2433, %v2438
    %v2443 = vrsqrt.pop %v2432
    %v2444 = vmul.f32 %v2443, %v2432
    %v2445 = vmul.f32 %v2444, %v2443
    %v2446 = vmul.f32 0.5, %v2445
    %v2447 = vsub.f32 1.5, %v2446
    %v2448 = vmul.f32 %v2443, %v2447
    %vm2449 = vweird.f32 %v2432
    %vm2450 = vweird.f32 %v2443
    %vm2451 = vmor %vm2449, %vm2450
    %v2452 = vsel %vm2451, %v2443, %v2448
    %v2455 = vrot.slane %v2452, 7
    %v2456 = vsel %vm324, %v2442, %v2455
    %v2458 = vmul.f32 %v2392, %v2456
    %v2460 = vperm.slane %v2458, 0
    %v2461 = vperm.slane %v2458, 1
    %v2464 = vmul.f32 %v2407, %v2460
    %v2465 = vmul.f32 %v2408, %v2461
    %v2468 = vrot.slane %v2465, 7
    %v2469 = vsel %vm324, %v2464, %v2468
    %v2471 = vsub.f32 %v2394, %v2469
    %v2472 = vmul.f32 %v2362, %v2460
    %v2473 = vmul.f32 %v2388, %v2461
    %v2475 = vperm.slane %v2471, 0
    %v2476 = vperm.slane %v2471, 1
    %v2479 = vadd.f32 %v2472, %v2475
    %v2480 = vadd.f32 %v2473, %v2476
    %v2481 = vmul.f32 %v2479, 0.01
    %v2482 = vmul.f32 %v2480, 0.01
    %v2483 = vmax.f32 %v2479, %v2481
    %v2484 = vmax.f32 %v2480, %v2482
    %v2485 = vpack.c.bf16 %v2483, %v2483
    %v2486 = vpack.c.bf16 %v2484, %v2484
    %s2487 = scalar_lea.vmem [#allocation8], 1280
    %v2488 = vld [vmem:[%s2487] sm:$0xff]
    %v2489 = vld [vmem:[%s2487 + $0x8] sm:$0xff]
    %v2490 = vld [vmem:[%s2487 + $0x10] sm:$0xff]
    %v2491 = vld [vmem:[%s2487 + $0x18] sm:$0xff]
    %v2492 = vld [vmem:[%s2487 + $0x20] sm:$0xff]
    %v2493 = vld [vmem:[%s2487 + $0x28] sm:$0xff]
    %v2494 = vld [vmem:[%s2487 + $0x30] sm:$0xff]
    %v2495 = vld [vmem:[%s2487 + $0x38] sm:$0xff]
    %v2496 = vld [vmem:[%s2487 + $0x40] sm:$0xff]
    %v2497 = vld [vmem:[%s2487 + $0x48] sm:$0xff]
    %v2498 = vld [vmem:[%s2487 + $0x50] sm:$0xff]
    %v2499 = vld [vmem:[%s2487 + $0x58] sm:$0xff]
    %v2500 = vld [vmem:[%s2487 + $0x60] sm:$0xff]
    %v2501 = vld [vmem:[%s2487 + $0x68] sm:$0xff]
    %v2502 = vld [vmem:[%s2487 + $0x70] sm:$0xff]
    %v2503 = vld [vmem:[%s2487 + $0x78] sm:$0xff]
    %v2504 = vld [vmem:[%s2487 + $0x80] sm:$0xff]
    %v2505 = vld [vmem:[%s2487 + $0x88] sm:$0xff]
    %v2506 = vld [vmem:[%s2487 + $0x90] sm:$0xff]
    %v2507 = vld [vmem:[%s2487 + $0x98] sm:$0xff]
    %v2508 = vld [vmem:[%s2487 + $0xa0] sm:$0xff]
    %v2509 = vld [vmem:[%s2487 + $0xa8] sm:$0xff]
    %v2510 = vld [vmem:[%s2487 + $0xb0] sm:$0xff]
    %v2511 = vld [vmem:[%s2487 + $0xb8] sm:$0xff]
    %v2512 = vld [vmem:[%s2487 + $0xc0] sm:$0xff]
    %v2513 = vld [vmem:[%s2487 + $0xc8] sm:$0xff]
    %v2514 = vld [vmem:[%s2487 + $0xd0] sm:$0xff]
    %v2515 = vld [vmem:[%s2487 + $0xd8] sm:$0xff]
    %v2516 = vld [vmem:[%s2487 + $0xe0] sm:$0xff]
    %v2517 = vld [vmem:[%s2487 + $0xe8] sm:$0xff]
    %v2518 = vld [vmem:[%s2487 + $0xf0] sm:$0xff]
    %v2519 = vld [vmem:[%s2487 + $0xf8] sm:$0xff]
    %s2520 = scalar_lea.vmem %s9, 10
    %v2521 = vld [vmem:[%s2520] sm:$0x3]
    %v2523 = vperm.slane %v2521, 0
    %v2524 = vperm.slane %v2521, 1
    %v2559 = vunpack.c.l.b16 %v2488
    %v2560 = vunpack.c.h.b16 %v2488
    %v2561 = vunpack.c.l.b16 %v2489
    %v2562 = vunpack.c.h.b16 %v2489
    %v2563 = vunpack.c.l.b16 %v2490
    %v2564 = vunpack.c.h.b16 %v2490
    %v2565 = vunpack.c.l.b16 %v2491
    %v2566 = vunpack.c.h.b16 %v2491
    %v2567 = vunpack.c.l.b16 %v2492
    %v2568 = vunpack.c.h.b16 %v2492
    %v2569 = vunpack.c.l.b16 %v2493
    %v2570 = vunpack.c.h.b16 %v2493
    %v2571 = vunpack.c.l.b16 %v2494
    %v2572 = vunpack.c.h.b16 %v2494
    %v2573 = vunpack.c.l.b16 %v2495
    %v2574 = vunpack.c.h.b16 %v2495
    %v2575 = vunpack.c.l.b16 %v2496
    %v2576 = vunpack.c.h.b16 %v2496
    %v2577 = vunpack.c.l.b16 %v2497
    %v2578 = vunpack.c.h.b16 %v2497
    %v2579 = vunpack.c.l.b16 %v2498
    %v2580 = vunpack.c.h.b16 %v2498
    %v2581 = vunpack.c.l.b16 %v2499
    %v2582 = vunpack.c.h.b16 %v2499
    %v2583 = vunpack.c.l.b16 %v2500
    %v2584 = vunpack.c.h.b16 %v2500
    %v2585 = vunpack.c.l.b16 %v2501
    %v2586 = vunpack.c.h.b16 %v2501
    %v2587 = vunpack.c.l.b16 %v2502
    %v2588 = vunpack.c.h.b16 %v2502
    %v2589 = vunpack.c.l.b16 %v2503
    %v2590 = vunpack.c.h.b16 %v2503
    %v2591 = vunpack.c.l.b16 %v2504
    %v2592 = vunpack.c.h.b16 %v2504
    %v2593 = vunpack.c.l.b16 %v2505
    %v2594 = vunpack.c.h.b16 %v2505
    %v2595 = vunpack.c.l.b16 %v2506
    %v2596 = vunpack.c.h.b16 %v2506
    %v2597 = vunpack.c.l.b16 %v2507
    %v2598 = vunpack.c.h.b16 %v2507
    %v2599 = vunpack.c.l.b16 %v2508
    %v2600 = vunpack.c.h.b16 %v2508
    %v2601 = vunpack.c.l.b16 %v2509
    %v2602 = vunpack.c.h.b16 %v2509
    %v2603 = vunpack.c.l.b16 %v2510
    %v2604 = vunpack.c.h.b16 %v2510
    %v2605 = vunpack.c.l.b16 %v2511
    %v2606 = vunpack.c.h.b16 %v2511
    %v2607 = vunpack.c.l.b16 %v2512
    %v2608 = vunpack.c.h.b16 %v2512
    %v2609 = vunpack.c.l.b16 %v2513
    %v2610 = vunpack.c.h.b16 %v2513
    %v2611 = vunpack.c.l.b16 %v2514
    %v2612 = vunpack.c.h.b16 %v2514
    %v2613 = vunpack.c.l.b16 %v2515
    %v2614 = vunpack.c.h.b16 %v2515
    %v2615 = vunpack.c.l.b16 %v2516
    %v2616 = vunpack.c.h.b16 %v2516
    %v2617 = vunpack.c.l.b16 %v2517
    %v2618 = vunpack.c.h.b16 %v2517
    %v2619 = vunpack.c.l.b16 %v2518
    %v2620 = vunpack.c.h.b16 %v2518
    %v2621 = vunpack.c.l.b16 %v2519
    %v2622 = vunpack.c.h.b16 %v2519
    %v2623 = vpack.c.b16 %v2561, %v2559
    %v2624 = vpack.c.b16 %v2562, %v2560
    %v2625 = vpack.c.b16 %v2565, %v2563
    %v2626 = vpack.c.b16 %v2566, %v2564
    %v2627 = vpack.c.b16 %v2569, %v2567
    %v2628 = vpack.c.b16 %v2570, %v2568
    %v2629 = vpack.c.b16 %v2573, %v2571
    %v2630 = vpack.c.b16 %v2574, %v2572
    %v2631 = vpack.c.b16 %v2577, %v2575
    %v2632 = vpack.c.b16 %v2578, %v2576
    %v2633 = vpack.c.b16 %v2581, %v2579
    %v2634 = vpack.c.b16 %v2582, %v2580
    %v2635 = vpack.c.b16 %v2585, %v2583
    %v2636 = vpack.c.b16 %v2586, %v2584
    %v2637 = vpack.c.b16 %v2589, %v2587
    %v2638 = vpack.c.b16 %v2590, %v2588
    %v2639 = vpack.c.b16 %v2593, %v2591
    %v2640 = vpack.c.b16 %v2594, %v2592
    %v2641 = vpack.c.b16 %v2597, %v2595
    %v2642 = vpack.c.b16 %v2598, %v2596
    %v2643 = vpack.c.b16 %v2601, %v2599
    %v2644 = vpack.c.b16 %v2602, %v2600
    %v2645 = vpack.c.b16 %v2605, %v2603
    %v2646 = vpack.c.b16 %v2606, %v2604
    %v2647 = vpack.c.b16 %v2609, %v2607
    %v2648 = vpack.c.b16 %v2610, %v2608
    %v2649 = vpack.c.b16 %v2613, %v2611
    %v2650 = vpack.c.b16 %v2614, %v2612
    %v2651 = vpack.c.b16 %v2617, %v2615
    %v2652 = vpack.c.b16 %v2618, %v2616
    %v2653 = vpack.c.b16 %v2621, %v2619
    %v2654 = vpack.c.b16 %v2622, %v2620
    %2687 = vmatpush.bf16.msra.mxu0 %v2637
    %2688 = vmatpush.bf16.msra.mxu0 %v2635
    %2689 = vmatpush.bf16.msra.mxu0 %v2633
    %2690 = vmatpush.bf16.msra.mxu0 %v2631
    %2691 = vmatpush.bf16.msra.mxu0 %v2629
    %2692 = vmatpush.bf16.msra.mxu0 %v2627
    %2693 = vmatpush.bf16.msra.mxu0 %v2625
    %2694 = vmatpush.bf16.msra.mxu0 %v2623
    %2695 = vmatmul.bf16.gmra.mxu0 %v2485
    %v2696 = vpop.f32.mrf.mxu0
    %v2697 = vadd.f32 %v2523, %v2696
    %v2698 = vpop.f32.mrf.mxu0
    %2699 = vdwg.mxu0
    %2700 = vmatpush.bf16.msra.mxu0 %v2653
    %2701 = vmatpush.bf16.msra.mxu0 %v2651
    %2702 = vmatpush.bf16.msra.mxu0 %v2649
    %2703 = vmatpush.bf16.msra.mxu0 %v2647
    %2704 = vmatpush.bf16.msra.mxu0 %v2645
    %2705 = vmatpush.bf16.msra.mxu0 %v2643
    %2706 = vmatpush.bf16.msra.mxu0 %v2641
    %2707 = vmatpush.bf16.msra.mxu0 %v2639
    %2708 = vmatmul.bf16.gmra.mxu0 %v2486
    %v2709 = vpop.f32.mrf.mxu0
    %v2710 = vadd.f32 %v2697, %v2709
    %v2711 = vpop.f32.mrf.mxu0
    %2712 = vdwg.mxu0
    %2713 = vmatpush.bf16.msra.mxu0 %v2638
    %2714 = vmatpush.bf16.msra.mxu0 %v2636
    %2715 = vmatpush.bf16.msra.mxu0 %v2634
    %2716 = vmatpush.bf16.msra.mxu0 %v2632
    %2717 = vmatpush.bf16.msra.mxu0 %v2630
    %2718 = vmatpush.bf16.msra.mxu0 %v2628
    %2719 = vmatpush.bf16.msra.mxu0 %v2626
    %2720 = vmatpush.bf16.msra.mxu0 %v2624
    %2721 = vmatmul.bf16.gmra.mxu0 %v2485
    %v2722 = vpop.f32.mrf.mxu0
    %v2723 = vadd.f32 %v2524, %v2722
    %v2724 = vpop.f32.mrf.mxu0
    %2725 = vdwg.mxu0
    %2726 = vmatpush.bf16.msra.mxu0 %v2654
    %2727 = vmatpush.bf16.msra.mxu0 %v2652
    %2728 = vmatpush.bf16.msra.mxu0 %v2650
    %2729 = vmatpush.bf16.msra.mxu0 %v2648
    %2730 = vmatpush.bf16.msra.mxu0 %v2646
    %2731 = vmatpush.bf16.msra.mxu0 %v2644
    %2732 = vmatpush.bf16.msra.mxu0 %v2642
    %2733 = vmatpush.bf16.msra.mxu0 %v2640
    %2734 = vmatmul.bf16.gmra.mxu0 %v2486
    %v2735 = vpop.f32.mrf.mxu0
    %v2736 = vadd.f32 %v2723, %v2735
    %v2737 = vpop.f32.mrf.mxu0
    %2738 = vdwg.mxu0
    %s2739 = scalar_lea.vmem %s10, 10
    %v2740 = vld [vmem:[%s2739] sm:$0x3]
    %s2741 = scalar_lea.vmem %s11, 10
    %v2742 = vld [vmem:[%s2741] sm:$0x3]
    %v2743 = vrot.slane %v2710, 4
    %v2744 = vadd.f32 %v2710, %v2743
    %v2745 = vrot.slane %v2744, 2
    %v2746 = vadd.f32 %v2744, %v2745
    %v2747 = vrot.slane %v2746, 1
    %v2748 = vadd.f32 %v2746, %v2747
    %v2749 = vrot.slane %v2736, 4
    %v2750 = vadd.f32 %v2736, %v2749
    %v2751 = vrot.slane %v2750, 2
    %v2752 = vadd.f32 %v2750, %v2751
    %v2753 = vrot.slane %v2752, 1
    %v2754 = vadd.f32 %v2752, %v2753
    %v2755 = vmul.f32 %v2748, %v274
    %v2756 = vmul.f32 %v2754, %v274
    %v2757 = vmul.f32 %v2710, %v2710
    %v2758 = vmul.f32 %v2736, %v2736
    %v2759 = vrot.slane %v2757, 4
    %v2760 = vadd.f32 %v2757, %v2759
    %v2761 = vrot.slane %v2760, 2
    %v2762 = vadd.f32 %v2760, %v2761
    %v2763 = vrot.slane %v2762, 1
    %v2764 = vadd.f32 %v2762, %v2763
    %v2765 = vrot.slane %v2758, 4
    %v2766 = vadd.f32 %v2758, %v2765
    %v2767 = vrot.slane %v2766, 2
    %v2768 = vadd.f32 %v2766, %v2767
    %v2769 = vrot.slane %v2768, 1
    %v2770 = vadd.f32 %v2768, %v2769
    %v2771 = vmul.f32 %v2764, %v274
    %v2772 = vmul.f32 %v2770, %v274
    %v2773 = vmul.f32 %v2755, %v2755
    %v2774 = vmul.f32 %v2756, %v2756
    %v2775 = vsub.f32 %v2771, %v2773
    %v2776 = vsub.f32 %v2772, %v2774
    %v2777 = vmax.f32 %v2775, 0.0
    %v2778 = vmax.f32 %v2776, 0.0
    %v2779 = vadd.f32 %v2777, 1e-05
    %v2780 = vadd.f32 %v2778, 1e-05
    %v2781 = vrsqrt.pop %v2779
    %v2782 = vmul.f32 %v2781, %v2779
    %v2783 = vmul.f32 %v2782, %v2781
    %v2784 = vmul.f32 0.5, %v2783
    %v2785 = vsub.f32 1.5, %v2784
    %v2786 = vmul.f32 %v2781, %v2785
    %vm2787 = vweird.f32 %v2779
    %vm2788 = vweird.f32 %v2781
    %vm2789 = vmor %vm2787, %vm2788
    %v2790 = vsel %vm2789, %v2781, %v2786
    %v2791 = vrsqrt.pop %v2780
    %v2792 = vmul.f32 %v2791, %v2780
    %v2793 = vmul.f32 %v2792, %v2791
    %v2794 = vmul.f32 0.5, %v2793
    %v2795 = vsub.f32 1.5, %v2794
    %v2796 = vmul.f32 %v2791, %v2795
    %vm2797 = vweird.f32 %v2780
    %vm2798 = vweird.f32 %v2791
    %vm2799 = vmor %vm2797, %vm2798
    %v2800 = vsel %vm2799, %v2791, %v2796
    %v2803 = vrot.slane %v2800, 7
    %v2804 = vsel %vm324, %v2790, %v2803
    %v2806 = vmul.f32 %v2740, %v2804
    %v2808 = vperm.slane %v2806, 0
    %v2809 = vperm.slane %v2806, 1
    %v2812 = vmul.f32 %v2755, %v2808
    %v2813 = vmul.f32 %v2756, %v2809
    %v2816 = vrot.slane %v2813, 7
    %v2817 = vsel %vm324, %v2812, %v2816
    %v2819 = vsub.f32 %v2742, %v2817
    %v2820 = vmul.f32 %v2710, %v2808
    %v2821 = vmul.f32 %v2736, %v2809
    %v2823 = vperm.slane %v2819, 0
    %v2824 = vperm.slane %v2819, 1
    %v2827 = vadd.f32 %v2820, %v2823
    %v2828 = vadd.f32 %v2821, %v2824
    %v2829 = vmul.f32 %v2827, 0.01
    %v2830 = vmul.f32 %v2828, 0.01
    %v2831 = vmax.f32 %v2827, %v2829
    %v2832 = vmax.f32 %v2828, %v2830
    %v2833 = vpack.c.bf16 %v2831, %v2831
    %v2834 = vpack.c.bf16 %v2832, %v2832
    %s2835 = scalar_lea.vmem [#allocation8], 1536
    %v2836 = vld [vmem:[%s2835] sm:$0xff]
    %v2837 = vld [vmem:[%s2835 + $0x8] sm:$0xff]
    %v2838 = vld [vmem:[%s2835 + $0x10] sm:$0xff]
    %v2839 = vld [vmem:[%s2835 + $0x18] sm:$0xff]
    %v2840 = vld [vmem:[%s2835 + $0x20] sm:$0xff]
    %v2841 = vld [vmem:[%s2835 + $0x28] sm:$0xff]
    %v2842 = vld [vmem:[%s2835 + $0x30] sm:$0xff]
    %v2843 = vld [vmem:[%s2835 + $0x38] sm:$0xff]
    %v2844 = vld [vmem:[%s2835 + $0x40] sm:$0xff]
    %v2845 = vld [vmem:[%s2835 + $0x48] sm:$0xff]
    %v2846 = vld [vmem:[%s2835 + $0x50] sm:$0xff]
    %v2847 = vld [vmem:[%s2835 + $0x58] sm:$0xff]
    %v2848 = vld [vmem:[%s2835 + $0x60] sm:$0xff]
    %v2849 = vld [vmem:[%s2835 + $0x68] sm:$0xff]
    %v2850 = vld [vmem:[%s2835 + $0x70] sm:$0xff]
    %v2851 = vld [vmem:[%s2835 + $0x78] sm:$0xff]
    %v2852 = vld [vmem:[%s2835 + $0x80] sm:$0xff]
    %v2853 = vld [vmem:[%s2835 + $0x88] sm:$0xff]
    %v2854 = vld [vmem:[%s2835 + $0x90] sm:$0xff]
    %v2855 = vld [vmem:[%s2835 + $0x98] sm:$0xff]
    %v2856 = vld [vmem:[%s2835 + $0xa0] sm:$0xff]
    %v2857 = vld [vmem:[%s2835 + $0xa8] sm:$0xff]
    %v2858 = vld [vmem:[%s2835 + $0xb0] sm:$0xff]
    %v2859 = vld [vmem:[%s2835 + $0xb8] sm:$0xff]
    %v2860 = vld [vmem:[%s2835 + $0xc0] sm:$0xff]
    %v2861 = vld [vmem:[%s2835 + $0xc8] sm:$0xff]
    %v2862 = vld [vmem:[%s2835 + $0xd0] sm:$0xff]
    %v2863 = vld [vmem:[%s2835 + $0xd8] sm:$0xff]
    %v2864 = vld [vmem:[%s2835 + $0xe0] sm:$0xff]
    %v2865 = vld [vmem:[%s2835 + $0xe8] sm:$0xff]
    %v2866 = vld [vmem:[%s2835 + $0xf0] sm:$0xff]
    %v2867 = vld [vmem:[%s2835 + $0xf8] sm:$0xff]
    %s2868 = scalar_lea.vmem %s9, 12
    %v2869 = vld [vmem:[%s2868] sm:$0x3]
    %v2871 = vperm.slane %v2869, 0
    %v2872 = vperm.slane %v2869, 1
    %v2907 = vunpack.c.l.b16 %v2836
    %v2908 = vunpack.c.h.b16 %v2836
    %v2909 = vunpack.c.l.b16 %v2837
    %v2910 = vunpack.c.h.b16 %v2837
    %v2911 = vunpack.c.l.b16 %v2838
    %v2912 = vunpack.c.h.b16 %v2838
    %v2913 = vunpack.c.l.b16 %v2839
    %v2914 = vunpack.c.h.b16 %v2839
    %v2915 = vunpack.c.l.b16 %v2840
    %v2916 = vunpack.c.h.b16 %v2840
    %v2917 = vunpack.c.l.b16 %v2841
    %v2918 = vunpack.c.h.b16 %v2841
    %v2919 = vunpack.c.l.b16 %v2842
    %v2920 = vunpack.c.h.b16 %v2842
    %v2921 = vunpack.c.l.b16 %v2843
    %v2922 = vunpack.c.h.b16 %v2843
    %v2923 = vunpack.c.l.b16 %v2844
    %v2924 = vunpack.c.h.b16 %v2844
    %v2925 = vunpack.c.l.b16 %v2845
    %v2926 = vunpack.c.h.b16 %v2845
    %v2927 = vunpack.c.l.b16 %v2846
    %v2928 = vunpack.c.h.b16 %v2846
    %v2929 = vunpack.c.l.b16 %v2847
    %v2930 = vunpack.c.h.b16 %v2847
    %v2931 = vunpack.c.l.b16 %v2848
    %v2932 = vunpack.c.h.b16 %v2848
    %v2933 = vunpack.c.l.b16 %v2849
    %v2934 = vunpack.c.h.b16 %v2849
    %v2935 = vunpack.c.l.b16 %v2850
    %v2936 = vunpack.c.h.b16 %v2850
    %v2937 = vunpack.c.l.b16 %v2851
    %v2938 = vunpack.c.h.b16 %v2851
    %v2939 = vunpack.c.l.b16 %v2852
    %v2940 = vunpack.c.h.b16 %v2852
    %v2941 = vunpack.c.l.b16 %v2853
    %v2942 = vunpack.c.h.b16 %v2853
    %v2943 = vunpack.c.l.b16 %v2854
    %v2944 = vunpack.c.h.b16 %v2854
    %v2945 = vunpack.c.l.b16 %v2855
    %v2946 = vunpack.c.h.b16 %v2855
    %v2947 = vunpack.c.l.b16 %v2856
    %v2948 = vunpack.c.h.b16 %v2856
    %v2949 = vunpack.c.l.b16 %v2857
    %v2950 = vunpack.c.h.b16 %v2857
    %v2951 = vunpack.c.l.b16 %v2858
    %v2952 = vunpack.c.h.b16 %v2858
    %v2953 = vunpack.c.l.b16 %v2859
    %v2954 = vunpack.c.h.b16 %v2859
    %v2955 = vunpack.c.l.b16 %v2860
    %v2956 = vunpack.c.h.b16 %v2860
    %v2957 = vunpack.c.l.b16 %v2861
    %v2958 = vunpack.c.h.b16 %v2861
    %v2959 = vunpack.c.l.b16 %v2862
    %v2960 = vunpack.c.h.b16 %v2862
    %v2961 = vunpack.c.l.b16 %v2863
    %v2962 = vunpack.c.h.b16 %v2863
    %v2963 = vunpack.c.l.b16 %v2864
    %v2964 = vunpack.c.h.b16 %v2864
    %v2965 = vunpack.c.l.b16 %v2865
    %v2966 = vunpack.c.h.b16 %v2865
    %v2967 = vunpack.c.l.b16 %v2866
    %v2968 = vunpack.c.h.b16 %v2866
    %v2969 = vunpack.c.l.b16 %v2867
    %v2970 = vunpack.c.h.b16 %v2867
    %v2971 = vpack.c.b16 %v2909, %v2907
    %v2972 = vpack.c.b16 %v2910, %v2908
    %v2973 = vpack.c.b16 %v2913, %v2911
    %v2974 = vpack.c.b16 %v2914, %v2912
    %v2975 = vpack.c.b16 %v2917, %v2915
    %v2976 = vpack.c.b16 %v2918, %v2916
    %v2977 = vpack.c.b16 %v2921, %v2919
    %v2978 = vpack.c.b16 %v2922, %v2920
    %v2979 = vpack.c.b16 %v2925, %v2923
    %v2980 = vpack.c.b16 %v2926, %v2924
    %v2981 = vpack.c.b16 %v2929, %v2927
    %v2982 = vpack.c.b16 %v2930, %v2928
    %v2983 = vpack.c.b16 %v2933, %v2931
    %v2984 = vpack.c.b16 %v2934, %v2932
    %v2985 = vpack.c.b16 %v2937, %v2935
    %v2986 = vpack.c.b16 %v2938, %v2936
    %v2987 = vpack.c.b16 %v2941, %v2939
    %v2988 = vpack.c.b16 %v2942, %v2940
    %v2989 = vpack.c.b16 %v2945, %v2943
    %v2990 = vpack.c.b16 %v2946, %v2944
    %v2991 = vpack.c.b16 %v2949, %v2947
    %v2992 = vpack.c.b16 %v2950, %v2948
    %v2993 = vpack.c.b16 %v2953, %v2951
    %v2994 = vpack.c.b16 %v2954, %v2952
    %v2995 = vpack.c.b16 %v2957, %v2955
    %v2996 = vpack.c.b16 %v2958, %v2956
    %v2997 = vpack.c.b16 %v2961, %v2959
    %v2998 = vpack.c.b16 %v2962, %v2960
    %v2999 = vpack.c.b16 %v2965, %v2963
    %v3000 = vpack.c.b16 %v2966, %v2964
    %v3001 = vpack.c.b16 %v2969, %v2967
    %v3002 = vpack.c.b16 %v2970, %v2968
    %3035 = vmatpush.bf16.msra.mxu0 %v2985
    %3036 = vmatpush.bf16.msra.mxu0 %v2983
    %3037 = vmatpush.bf16.msra.mxu0 %v2981
    %3038 = vmatpush.bf16.msra.mxu0 %v2979
    %3039 = vmatpush.bf16.msra.mxu0 %v2977
    %3040 = vmatpush.bf16.msra.mxu0 %v2975
    %3041 = vmatpush.bf16.msra.mxu0 %v2973
    %3042 = vmatpush.bf16.msra.mxu0 %v2971
    %3043 = vmatmul.bf16.gmra.mxu0 %v2833
    %v3044 = vpop.f32.mrf.mxu0
    %v3045 = vadd.f32 %v2871, %v3044
    %v3046 = vpop.f32.mrf.mxu0
    %3047 = vdwg.mxu0
    %3048 = vmatpush.bf16.msra.mxu0 %v3001
    %3049 = vmatpush.bf16.msra.mxu0 %v2999
    %3050 = vmatpush.bf16.msra.mxu0 %v2997
    %3051 = vmatpush.bf16.msra.mxu0 %v2995
    %3052 = vmatpush.bf16.msra.mxu0 %v2993
    %3053 = vmatpush.bf16.msra.mxu0 %v2991
    %3054 = vmatpush.bf16.msra.mxu0 %v2989
    %3055 = vmatpush.bf16.msra.mxu0 %v2987
    %3056 = vmatmul.bf16.gmra.mxu0 %v2834
    %v3057 = vpop.f32.mrf.mxu0
    %v3058 = vadd.f32 %v3045, %v3057
    %v3059 = vpop.f32.mrf.mxu0
    %3060 = vdwg.mxu0
    %3061 = vmatpush.bf16.msra.mxu0 %v2986
    %3062 = vmatpush.bf16.msra.mxu0 %v2984
    %3063 = vmatpush.bf16.msra.mxu0 %v2982
    %3064 = vmatpush.bf16.msra.mxu0 %v2980
    %3065 = vmatpush.bf16.msra.mxu0 %v2978
    %3066 = vmatpush.bf16.msra.mxu0 %v2976
    %3067 = vmatpush.bf16.msra.mxu0 %v2974
    %3068 = vmatpush.bf16.msra.mxu0 %v2972
    %3069 = vmatmul.bf16.gmra.mxu0 %v2833
    %v3070 = vpop.f32.mrf.mxu0
    %v3071 = vadd.f32 %v2872, %v3070
    %v3072 = vpop.f32.mrf.mxu0
    %3073 = vdwg.mxu0
    %3074 = vmatpush.bf16.msra.mxu0 %v3002
    %3075 = vmatpush.bf16.msra.mxu0 %v3000
    %3076 = vmatpush.bf16.msra.mxu0 %v2998
    %3077 = vmatpush.bf16.msra.mxu0 %v2996
    %3078 = vmatpush.bf16.msra.mxu0 %v2994
    %3079 = vmatpush.bf16.msra.mxu0 %v2992
    %3080 = vmatpush.bf16.msra.mxu0 %v2990
    %3081 = vmatpush.bf16.msra.mxu0 %v2988
    %3082 = vmatmul.bf16.gmra.mxu0 %v2834
    %v3083 = vpop.f32.mrf.mxu0
    %v3084 = vadd.f32 %v3071, %v3083
    %v3085 = vpop.f32.mrf.mxu0
    %3086 = vdwg.mxu0
    %s3087 = scalar_lea.vmem %s10, 12
    %v3088 = vld [vmem:[%s3087] sm:$0x3]
    %s3089 = scalar_lea.vmem %s11, 12
    %v3090 = vld [vmem:[%s3089] sm:$0x3]
    %v3091 = vrot.slane %v3058, 4
    %v3092 = vadd.f32 %v3058, %v3091
    %v3093 = vrot.slane %v3092, 2
    %v3094 = vadd.f32 %v3092, %v3093
    %v3095 = vrot.slane %v3094, 1
    %v3096 = vadd.f32 %v3094, %v3095
    %v3097 = vrot.slane %v3084, 4
    %v3098 = vadd.f32 %v3084, %v3097
    %v3099 = vrot.slane %v3098, 2
    %v3100 = vadd.f32 %v3098, %v3099
    %v3101 = vrot.slane %v3100, 1
    %v3102 = vadd.f32 %v3100, %v3101
    %v3103 = vmul.f32 %v3096, %v274
    %v3104 = vmul.f32 %v3102, %v274
    %v3105 = vmul.f32 %v3058, %v3058
    %v3106 = vmul.f32 %v3084, %v3084
    %v3107 = vrot.slane %v3105, 4
    %v3108 = vadd.f32 %v3105, %v3107
    %v3109 = vrot.slane %v3108, 2
    %v3110 = vadd.f32 %v3108, %v3109
    %v3111 = vrot.slane %v3110, 1
    %v3112 = vadd.f32 %v3110, %v3111
    %v3113 = vrot.slane %v3106, 4
    %v3114 = vadd.f32 %v3106, %v3113
    %v3115 = vrot.slane %v3114, 2
    %v3116 = vadd.f32 %v3114, %v3115
    %v3117 = vrot.slane %v3116, 1
    %v3118 = vadd.f32 %v3116, %v3117
    %v3119 = vmul.f32 %v3112, %v274
    %v3120 = vmul.f32 %v3118, %v274
    %v3121 = vmul.f32 %v3103, %v3103
    %v3122 = vmul.f32 %v3104, %v3104
    %v3123 = vsub.f32 %v3119, %v3121
    %v3124 = vsub.f32 %v3120, %v3122
    %v3125 = vmax.f32 %v3123, 0.0
    %v3126 = vmax.f32 %v3124, 0.0
    %v3127 = vadd.f32 %v3125, 1e-05
    %v3128 = vadd.f32 %v3126, 1e-05
    %v3129 = vrsqrt.pop %v3127
    %v3130 = vmul.f32 %v3129, %v3127
    %v3131 = vmul.f32 %v3130, %v3129
    %v3132 = vmul.f32 0.5, %v3131
    %v3133 = vsub.f32 1.5, %v3132
    %v3134 = vmul.f32 %v3129, %v3133
    %vm3135 = vweird.f32 %v3127
    %vm3136 = vweird.f32 %v3129
    %vm3137 = vmor %vm3135, %vm3136
    %v3138 = vsel %vm3137, %v3129, %v3134
    %v3139 = vrsqrt.pop %v3128
    %v3140 = vmul.f32 %v3139, %v3128
    %v3141 = vmul.f32 %v3140, %v3139
    %v3142 = vmul.f32 0.5, %v3141
    %v3143 = vsub.f32 1.5, %v3142
    %v3144 = vmul.f32 %v3139, %v3143
    %vm3145 = vweird.f32 %v3128
    %vm3146 = vweird.f32 %v3139
    %vm3147 = vmor %vm3145, %vm3146
    %v3148 = vsel %vm3147, %v3139, %v3144
    %v3151 = vrot.slane %v3148, 7
    %v3152 = vsel %vm324, %v3138, %v3151
    %v3154 = vmul.f32 %v3088, %v3152
    %v3156 = vperm.slane %v3154, 0
    %v3157 = vperm.slane %v3154, 1
    %v3160 = vmul.f32 %v3103, %v3156
    %v3161 = vmul.f32 %v3104, %v3157
    %v3164 = vrot.slane %v3161, 7
    %v3165 = vsel %vm324, %v3160, %v3164
    %v3167 = vsub.f32 %v3090, %v3165
    %v3168 = vmul.f32 %v3058, %v3156
    %v3169 = vmul.f32 %v3084, %v3157
    %v3171 = vperm.slane %v3167, 0
    %v3172 = vperm.slane %v3167, 1
    %v3175 = vadd.f32 %v3168, %v3171
    %v3176 = vadd.f32 %v3169, %v3172
    %v3177 = vmul.f32 %v3175, 0.01
    %v3178 = vmul.f32 %v3176, 0.01
    %v3179 = vmax.f32 %v3175, %v3177
    %v3180 = vmax.f32 %v3176, %v3178
    %v3181 = vpack.c.bf16 %v3179, %v3179
    %v3182 = vpack.c.bf16 %v3180, %v3180
    %s3183 = scalar_lea.vmem [#allocation8], 1792
    %v3184 = vld [vmem:[%s3183] sm:$0xff]
    %v3185 = vld [vmem:[%s3183 + $0x8] sm:$0xff]
    %v3186 = vld [vmem:[%s3183 + $0x10] sm:$0xff]
    %v3187 = vld [vmem:[%s3183 + $0x18] sm:$0xff]
    %v3188 = vld [vmem:[%s3183 + $0x20] sm:$0xff]
    %v3189 = vld [vmem:[%s3183 + $0x28] sm:$0xff]
    %v3190 = vld [vmem:[%s3183 + $0x30] sm:$0xff]
    %v3191 = vld [vmem:[%s3183 + $0x38] sm:$0xff]
    %v3192 = vld [vmem:[%s3183 + $0x40] sm:$0xff]
    %v3193 = vld [vmem:[%s3183 + $0x48] sm:$0xff]
    %v3194 = vld [vmem:[%s3183 + $0x50] sm:$0xff]
    %v3195 = vld [vmem:[%s3183 + $0x58] sm:$0xff]
    %v3196 = vld [vmem:[%s3183 + $0x60] sm:$0xff]
    %v3197 = vld [vmem:[%s3183 + $0x68] sm:$0xff]
    %v3198 = vld [vmem:[%s3183 + $0x70] sm:$0xff]
    %v3199 = vld [vmem:[%s3183 + $0x78] sm:$0xff]
    %v3200 = vld [vmem:[%s3183 + $0x80] sm:$0xff]
    %v3201 = vld [vmem:[%s3183 + $0x88] sm:$0xff]
    %v3202 = vld [vmem:[%s3183 + $0x90] sm:$0xff]
    %v3203 = vld [vmem:[%s3183 + $0x98] sm:$0xff]
    %v3204 = vld [vmem:[%s3183 + $0xa0] sm:$0xff]
    %v3205 = vld [vmem:[%s3183 + $0xa8] sm:$0xff]
    %v3206 = vld [vmem:[%s3183 + $0xb0] sm:$0xff]
    %v3207 = vld [vmem:[%s3183 + $0xb8] sm:$0xff]
    %v3208 = vld [vmem:[%s3183 + $0xc0] sm:$0xff]
    %v3209 = vld [vmem:[%s3183 + $0xc8] sm:$0xff]
    %v3210 = vld [vmem:[%s3183 + $0xd0] sm:$0xff]
    %v3211 = vld [vmem:[%s3183 + $0xd8] sm:$0xff]
    %v3212 = vld [vmem:[%s3183 + $0xe0] sm:$0xff]
    %v3213 = vld [vmem:[%s3183 + $0xe8] sm:$0xff]
    %v3214 = vld [vmem:[%s3183 + $0xf0] sm:$0xff]
    %v3215 = vld [vmem:[%s3183 + $0xf8] sm:$0xff]
    %s3216 = scalar_lea.vmem %s9, 14
    %v3217 = vld [vmem:[%s3216] sm:$0x3]
    %v3219 = vperm.slane %v3217, 0
    %v3220 = vperm.slane %v3217, 1
    %v3255 = vunpack.c.l.b16 %v3184
    %v3256 = vunpack.c.h.b16 %v3184
    %v3257 = vunpack.c.l.b16 %v3185
    %v3258 = vunpack.c.h.b16 %v3185
    %v3259 = vunpack.c.l.b16 %v3186
    %v3260 = vunpack.c.h.b16 %v3186
    %v3261 = vunpack.c.l.b16 %v3187
    %v3262 = vunpack.c.h.b16 %v3187
    %v3263 = vunpack.c.l.b16 %v3188
    %v3264 = vunpack.c.h.b16 %v3188
    %v3265 = vunpack.c.l.b16 %v3189
    %v3266 = vunpack.c.h.b16 %v3189
    %v3267 = vunpack.c.l.b16 %v3190
    %v3268 = vunpack.c.h.b16 %v3190
    %v3269 = vunpack.c.l.b16 %v3191
    %v3270 = vunpack.c.h.b16 %v3191
    %v3271 = vunpack.c.l.b16 %v3192
    %v3272 = vunpack.c.h.b16 %v3192
    %v3273 = vunpack.c.l.b16 %v3193
    %v3274 = vunpack.c.h.b16 %v3193
    %v3275 = vunpack.c.l.b16 %v3194
    %v3276 = vunpack.c.h.b16 %v3194
    %v3277 = vunpack.c.l.b16 %v3195
    %v3278 = vunpack.c.h.b16 %v3195
    %v3279 = vunpack.c.l.b16 %v3196
    %v3280 = vunpack.c.h.b16 %v3196
    %v3281 = vunpack.c.l.b16 %v3197
    %v3282 = vunpack.c.h.b16 %v3197
    %v3283 = vunpack.c.l.b16 %v3198
    %v3284 = vunpack.c.h.b16 %v3198
    %v3285 = vunpack.c.l.b16 %v3199
    %v3286 = vunpack.c.h.b16 %v3199
    %v3287 = vunpack.c.l.b16 %v3200
    %v3288 = vunpack.c.h.b16 %v3200
    %v3289 = vunpack.c.l.b16 %v3201
    %v3290 = vunpack.c.h.b16 %v3201
    %v3291 = vunpack.c.l.b16 %v3202
    %v3292 = vunpack.c.h.b16 %v3202
    %v3293 = vunpack.c.l.b16 %v3203
    %v3294 = vunpack.c.h.b16 %v3203
    %v3295 = vunpack.c.l.b16 %v3204
    %v3296 = vunpack.c.h.b16 %v3204
    %v3297 = vunpack.c.l.b16 %v3205
    %v3298 = vunpack.c.h.b16 %v3205
    %v3299 = vunpack.c.l.b16 %v3206
    %v3300 = vunpack.c.h.b16 %v3206
    %v3301 = vunpack.c.l.b16 %v3207
    %v3302 = vunpack.c.h.b16 %v3207
    %v3303 = vunpack.c.l.b16 %v3208
    %v3304 = vunpack.c.h.b16 %v3208
    %v3305 = vunpack.c.l.b16 %v3209
    %v3306 = vunpack.c.h.b16 %v3209
    %v3307 = vunpack.c.l.b16 %v3210
    %v3308 = vunpack.c.h.b16 %v3210
    %v3309 = vunpack.c.l.b16 %v3211
    %v3310 = vunpack.c.h.b16 %v3211
    %v3311 = vunpack.c.l.b16 %v3212
    %v3312 = vunpack.c.h.b16 %v3212
    %v3313 = vunpack.c.l.b16 %v3213
    %v3314 = vunpack.c.h.b16 %v3213
    %v3315 = vunpack.c.l.b16 %v3214
    %v3316 = vunpack.c.h.b16 %v3214
    %v3317 = vunpack.c.l.b16 %v3215
    %v3318 = vunpack.c.h.b16 %v3215
    %v3319 = vpack.c.b16 %v3257, %v3255
    %v3320 = vpack.c.b16 %v3258, %v3256
    %v3321 = vpack.c.b16 %v3261, %v3259
    %v3322 = vpack.c.b16 %v3262, %v3260
    %v3323 = vpack.c.b16 %v3265, %v3263
    %v3324 = vpack.c.b16 %v3266, %v3264
    %v3325 = vpack.c.b16 %v3269, %v3267
    %v3326 = vpack.c.b16 %v3270, %v3268
    %v3327 = vpack.c.b16 %v3273, %v3271
    %v3328 = vpack.c.b16 %v3274, %v3272
    %v3329 = vpack.c.b16 %v3277, %v3275
    %v3330 = vpack.c.b16 %v3278, %v3276
    %v3331 = vpack.c.b16 %v3281, %v3279
    %v3332 = vpack.c.b16 %v3282, %v3280
    %v3333 = vpack.c.b16 %v3285, %v3283
    %v3334 = vpack.c.b16 %v3286, %v3284
    %v3335 = vpack.c.b16 %v3289, %v3287
    %v3336 = vpack.c.b16 %v3290, %v3288
    %v3337 = vpack.c.b16 %v3293, %v3291
    %v3338 = vpack.c.b16 %v3294, %v3292
    %v3339 = vpack.c.b16 %v3297, %v3295
    %v3340 = vpack.c.b16 %v3298, %v3296
    %v3341 = vpack.c.b16 %v3301, %v3299
    %v3342 = vpack.c.b16 %v3302, %v3300
    %v3343 = vpack.c.b16 %v3305, %v3303
    %v3344 = vpack.c.b16 %v3306, %v3304
    %v3345 = vpack.c.b16 %v3309, %v3307
    %v3346 = vpack.c.b16 %v3310, %v3308
    %v3347 = vpack.c.b16 %v3313, %v3311
    %v3348 = vpack.c.b16 %v3314, %v3312
    %v3349 = vpack.c.b16 %v3317, %v3315
    %v3350 = vpack.c.b16 %v3318, %v3316
    %3383 = vmatpush.bf16.msra.mxu0 %v3333
    %3384 = vmatpush.bf16.msra.mxu0 %v3331
    %3385 = vmatpush.bf16.msra.mxu0 %v3329
    %3386 = vmatpush.bf16.msra.mxu0 %v3327
    %3387 = vmatpush.bf16.msra.mxu0 %v3325
    %3388 = vmatpush.bf16.msra.mxu0 %v3323
    %3389 = vmatpush.bf16.msra.mxu0 %v3321
    %3390 = vmatpush.bf16.msra.mxu0 %v3319
    %3391 = vmatmul.bf16.gmra.mxu0 %v3181
    %v3392 = vpop.f32.mrf.mxu0
    %v3393 = vadd.f32 %v3219, %v3392
    %v3394 = vpop.f32.mrf.mxu0
    %3395 = vdwg.mxu0
    %3396 = vmatpush.bf16.msra.mxu0 %v3349
    %3397 = vmatpush.bf16.msra.mxu0 %v3347
    %3398 = vmatpush.bf16.msra.mxu0 %v3345
    %3399 = vmatpush.bf16.msra.mxu0 %v3343
    %3400 = vmatpush.bf16.msra.mxu0 %v3341
    %3401 = vmatpush.bf16.msra.mxu0 %v3339
    %3402 = vmatpush.bf16.msra.mxu0 %v3337
    %3403 = vmatpush.bf16.msra.mxu0 %v3335
    %3404 = vmatmul.bf16.gmra.mxu0 %v3182
    %v3405 = vpop.f32.mrf.mxu0
    %v3406 = vadd.f32 %v3393, %v3405
    %v3407 = vpop.f32.mrf.mxu0
    %3408 = vdwg.mxu0
    %3409 = vmatpush.bf16.msra.mxu0 %v3334
    %3410 = vmatpush.bf16.msra.mxu0 %v3332
    %3411 = vmatpush.bf16.msra.mxu0 %v3330
    %3412 = vmatpush.bf16.msra.mxu0 %v3328
    %3413 = vmatpush.bf16.msra.mxu0 %v3326
    %3414 = vmatpush.bf16.msra.mxu0 %v3324
    %3415 = vmatpush.bf16.msra.mxu0 %v3322
    %3416 = vmatpush.bf16.msra.mxu0 %v3320
    %3417 = vmatmul.bf16.gmra.mxu0 %v3181
    %v3418 = vpop.f32.mrf.mxu0
    %v3419 = vadd.f32 %v3220, %v3418
    %v3420 = vpop.f32.mrf.mxu0
    %3421 = vdwg.mxu0
    %3422 = vmatpush.bf16.msra.mxu0 %v3350
    %3423 = vmatpush.bf16.msra.mxu0 %v3348
    %3424 = vmatpush.bf16.msra.mxu0 %v3346
    %3425 = vmatpush.bf16.msra.mxu0 %v3344
    %3426 = vmatpush.bf16.msra.mxu0 %v3342
    %3427 = vmatpush.bf16.msra.mxu0 %v3340
    %3428 = vmatpush.bf16.msra.mxu0 %v3338
    %3429 = vmatpush.bf16.msra.mxu0 %v3336
    %3430 = vmatmul.bf16.gmra.mxu0 %v3182
    %v3431 = vpop.f32.mrf.mxu0
    %v3432 = vadd.f32 %v3419, %v3431
    %v3433 = vpop.f32.mrf.mxu0
    %3434 = vdwg.mxu0
    %s3435 = scalar_lea.vmem %s10, 14
    %v3436 = vld [vmem:[%s3435] sm:$0x3]
    %s3437 = scalar_lea.vmem %s11, 14
    %v3438 = vld [vmem:[%s3437] sm:$0x3]
    %v3439 = vrot.slane %v3406, 4
    %v3440 = vadd.f32 %v3406, %v3439
    %v3441 = vrot.slane %v3440, 2
    %v3442 = vadd.f32 %v3440, %v3441
    %v3443 = vrot.slane %v3442, 1
    %v3444 = vadd.f32 %v3442, %v3443
    %v3445 = vrot.slane %v3432, 4
    %v3446 = vadd.f32 %v3432, %v3445
    %v3447 = vrot.slane %v3446, 2
    %v3448 = vadd.f32 %v3446, %v3447
    %v3449 = vrot.slane %v3448, 1
    %v3450 = vadd.f32 %v3448, %v3449
    %v3451 = vmul.f32 %v3444, %v274
    %v3452 = vmul.f32 %v3450, %v274
    %v3453 = vmul.f32 %v3406, %v3406
    %v3454 = vmul.f32 %v3432, %v3432
    %v3455 = vrot.slane %v3453, 4
    %v3456 = vadd.f32 %v3453, %v3455
    %v3457 = vrot.slane %v3456, 2
    %v3458 = vadd.f32 %v3456, %v3457
    %v3459 = vrot.slane %v3458, 1
    %v3460 = vadd.f32 %v3458, %v3459
    %v3461 = vrot.slane %v3454, 4
    %v3462 = vadd.f32 %v3454, %v3461
    %v3463 = vrot.slane %v3462, 2
    %v3464 = vadd.f32 %v3462, %v3463
    %v3465 = vrot.slane %v3464, 1
    %v3466 = vadd.f32 %v3464, %v3465
    %v3467 = vmul.f32 %v3460, %v274
    %v3468 = vmul.f32 %v3466, %v274
    %v3469 = vmul.f32 %v3451, %v3451
    %v3470 = vmul.f32 %v3452, %v3452
    %v3471 = vsub.f32 %v3467, %v3469
    %v3472 = vsub.f32 %v3468, %v3470
    %v3473 = vmax.f32 %v3471, 0.0
    %v3474 = vmax.f32 %v3472, 0.0
    %v3475 = vadd.f32 %v3473, 1e-05
    %v3476 = vadd.f32 %v3474, 1e-05
    %v3477 = vrsqrt.pop %v3475
    %v3478 = vmul.f32 %v3477, %v3475
    %v3479 = vmul.f32 %v3478, %v3477
    %v3480 = vmul.f32 0.5, %v3479
    %v3481 = vsub.f32 1.5, %v3480
    %v3482 = vmul.f32 %v3477, %v3481
    %vm3483 = vweird.f32 %v3475
    %vm3484 = vweird.f32 %v3477
    %vm3485 = vmor %vm3483, %vm3484
    %v3486 = vsel %vm3485, %v3477, %v3482
    %v3487 = vrsqrt.pop %v3476
    %v3488 = vmul.f32 %v3487, %v3476
    %v3489 = vmul.f32 %v3488, %v3487
    %v3490 = vmul.f32 0.5, %v3489
    %v3491 = vsub.f32 1.5, %v3490
    %v3492 = vmul.f32 %v3487, %v3491
    %vm3493 = vweird.f32 %v3476
    %vm3494 = vweird.f32 %v3487
    %vm3495 = vmor %vm3493, %vm3494
    %v3496 = vsel %vm3495, %v3487, %v3492
    %v3499 = vrot.slane %v3496, 7
    %v3500 = vsel %vm324, %v3486, %v3499
    %v3502 = vmul.f32 %v3436, %v3500
    %v3504 = vperm.slane %v3502, 0
    %v3505 = vperm.slane %v3502, 1
    %v3508 = vmul.f32 %v3451, %v3504
    %v3509 = vmul.f32 %v3452, %v3505
    %v3512 = vrot.slane %v3509, 7
    %v3513 = vsel %vm324, %v3508, %v3512
    %v3515 = vsub.f32 %v3438, %v3513
    %v3516 = vmul.f32 %v3406, %v3504
    %v3517 = vmul.f32 %v3432, %v3505
    %v3519 = vperm.slane %v3515, 0
    %v3520 = vperm.slane %v3515, 1
    %v3523 = vadd.f32 %v3516, %v3519
    %v3524 = vadd.f32 %v3517, %v3520
    %v3525 = vmul.f32 %v3523, 0.01
    %v3526 = vmul.f32 %v3524, 0.01
    %v3527 = vmax.f32 %v3523, %v3525
    %v3528 = vmax.f32 %v3524, %v3526
    %v3529 = vpack.c.bf16 %v3527, %v3527
    %v3530 = vpack.c.bf16 %v3528, %v3528
    %s3531 = scalar_lea.vmem %s12, 128
    %v3532 = vld [vmem:[%s3531] sm:$0xf]
    %v3533 = vld [vmem:[%s3531 + $0x4] sm:$0xf]
    %v3534 = vld [vmem:[%s3531 + $0x8] sm:$0xf]
    %v3535 = vld [vmem:[%s3531 + $0xc] sm:$0xf]
    %v3536 = vld [vmem:[%s3531 + $0x10] sm:$0xf]
    %v3537 = vld [vmem:[%s3531 + $0x14] sm:$0xf]
    %v3538 = vld [vmem:[%s3531 + $0x18] sm:$0xf]
    %v3539 = vld [vmem:[%s3531 + $0x1c] sm:$0xf]
    %v3540 = vld [vmem:[%s3531 + $0x20] sm:$0xf]
    %v3541 = vld [vmem:[%s3531 + $0x24] sm:$0xf]
    %v3542 = vld [vmem:[%s3531 + $0x28] sm:$0xf]
    %v3543 = vld [vmem:[%s3531 + $0x2c] sm:$0xf]
    %v3544 = vld [vmem:[%s3531 + $0x30] sm:$0xf]
    %v3545 = vld [vmem:[%s3531 + $0x34] sm:$0xf]
    %v3546 = vld [vmem:[%s3531 + $0x38] sm:$0xf]
    %v3547 = vld [vmem:[%s3531 + $0x3c] sm:$0xf]
    %v3548 = vld [vmem:[%s3531 + $0x40] sm:$0xf]
    %v3549 = vld [vmem:[%s3531 + $0x44] sm:$0xf]
    %v3550 = vld [vmem:[%s3531 + $0x48] sm:$0xf]
    %v3551 = vld [vmem:[%s3531 + $0x4c] sm:$0xf]
    %v3552 = vld [vmem:[%s3531 + $0x50] sm:$0xf]
    %v3553 = vld [vmem:[%s3531 + $0x54] sm:$0xf]
    %v3554 = vld [vmem:[%s3531 + $0x58] sm:$0xf]
    %v3555 = vld [vmem:[%s3531 + $0x5c] sm:$0xf]
    %v3556 = vld [vmem:[%s3531 + $0x60] sm:$0xf]
    %v3557 = vld [vmem:[%s3531 + $0x64] sm:$0xf]
    %v3558 = vld [vmem:[%s3531 + $0x68] sm:$0xf]
    %v3559 = vld [vmem:[%s3531 + $0x6c] sm:$0xf]
    %v3560 = vld [vmem:[%s3531 + $0x70] sm:$0xf]
    %v3561 = vld [vmem:[%s3531 + $0x74] sm:$0xf]
    %v3562 = vld [vmem:[%s3531 + $0x78] sm:$0xf]
    %v3563 = vld [vmem:[%s3531 + $0x7c] sm:$0xf]
    %s3564 = scalar_lea.vmem %s13, 1
    %v3565 = vld [vmem:[%s3564] sm:$0x1]
    %v3567 = vperm.slane %v3565, 0
    %v3601 = vunpack.c.l.b16 %v3532
    %v3602 = vunpack.c.l.b16 %v3533
    %v3603 = vunpack.c.l.b16 %v3534
    %v3604 = vunpack.c.l.b16 %v3535
    %v3605 = vunpack.c.l.b16 %v3536
    %v3606 = vunpack.c.l.b16 %v3537
    %v3607 = vunpack.c.l.b16 %v3538
    %v3608 = vunpack.c.l.b16 %v3539
    %v3609 = vunpack.c.l.b16 %v3540
    %v3610 = vunpack.c.l.b16 %v3541
    %v3611 = vunpack.c.l.b16 %v3542
    %v3612 = vunpack.c.l.b16 %v3543
    %v3613 = vunpack.c.l.b16 %v3544
    %v3614 = vunpack.c.l.b16 %v3545
    %v3615 = vunpack.c.l.b16 %v3546
    %v3616 = vunpack.c.l.b16 %v3547
    %v3617 = vunpack.c.l.b16 %v3548
    %v3618 = vunpack.c.l.b16 %v3549
    %v3619 = vunpack.c.l.b16 %v3550
    %v3620 = vunpack.c.l.b16 %v3551
    %v3621 = vunpack.c.l.b16 %v3552
    %v3622 = vunpack.c.l.b16 %v3553
    %v3623 = vunpack.c.l.b16 %v3554
    %v3624 = vunpack.c.l.b16 %v3555
    %v3625 = vunpack.c.l.b16 %v3556
    %v3626 = vunpack.c.l.b16 %v3557
    %v3627 = vunpack.c.l.b16 %v3558
    %v3628 = vunpack.c.l.b16 %v3559
    %v3629 = vunpack.c.l.b16 %v3560
    %v3630 = vunpack.c.l.b16 %v3561
    %v3631 = vunpack.c.l.b16 %v3562
    %v3632 = vunpack.c.l.b16 %v3563
    %v3633 = vpack.c.b16 %v3602, %v3601
    %v3634 = vpack.c.b16 %v3604, %v3603
    %v3635 = vpack.c.b16 %v3606, %v3605
    %v3636 = vpack.c.b16 %v3608, %v3607
    %v3637 = vpack.c.b16 %v3610, %v3609
    %v3638 = vpack.c.b16 %v3612, %v3611
    %v3639 = vpack.c.b16 %v3614, %v3613
    %v3640 = vpack.c.b16 %v3616, %v3615
    %v3641 = vpack.c.b16 %v3618, %v3617
    %v3642 = vpack.c.b16 %v3620, %v3619
    %v3643 = vpack.c.b16 %v3622, %v3621
    %v3644 = vpack.c.b16 %v3624, %v3623
    %v3645 = vpack.c.b16 %v3626, %v3625
    %v3646 = vpack.c.b16 %v3628, %v3627
    %v3647 = vpack.c.b16 %v3630, %v3629
    %v3648 = vpack.c.b16 %v3632, %v3631
    %3665 = vmatpush.bf16.msra.mxu0 %v3640
    %3666 = vmatpush.bf16.msra.mxu0 %v3639
    %3667 = vmatpush.bf16.msra.mxu0 %v3638
    %3668 = vmatpush.bf16.msra.mxu0 %v3637
    %3669 = vmatpush.bf16.msra.mxu0 %v3636
    %3670 = vmatpush.bf16.msra.mxu0 %v3635
    %3671 = vmatpush.bf16.msra.mxu0 %v3634
    %3672 = vmatpush.bf16.msra.mxu0 %v3633
    %3673 = vmatmul.bf16.gmra.mxu0 %v3529
    %v3674 = vpop.f32.mrf.mxu0
    %v3675 = vadd.f32 %v3567, %v3674
    %v3676 = vpop.f32.mrf.mxu0
    %3677 = vdwg.mxu0
    %3678 = vmatpush.bf16.msra.mxu0 %v3648
    %3679 = vmatpush.bf16.msra.mxu0 %v3647
    %3680 = vmatpush.bf16.msra.mxu0 %v3646
    %3681 = vmatpush.bf16.msra.mxu0 %v3645
    %3682 = vmatpush.bf16.msra.mxu0 %v3644
    %3683 = vmatpush.bf16.msra.mxu0 %v3643
    %3684 = vmatpush.bf16.msra.mxu0 %v3642
    %3685 = vmatpush.bf16.msra.mxu0 %v3641
    %3686 = vmatmul.bf16.gmra.mxu0 %v3530
    %v3687 = vpop.f32.mrf.mxu0
    %v3688 = vadd.f32 %v3675, %v3687
    %v3689 = vpop.f32.mrf.mxu0
    %3690 = vdwg.mxu0
    %v3691 = vtanh.pop %v1899
    %v3692 = vmul.f32 %v3691, 3.1415
    %v3693 = vmul.f32 %v3688, %v3688
    %vm3694 = vcmask 15360
    %v3695 = vsel %vm3694, %v3688, %v3693
    %v3696 = vmul.f32 %v3692, %v3692
    %3698 = vrot.lane.b32.xlu0 %v3696, 127
    %v3699 = vpop.permute.xlu0 %3698
    %v3701 = vadd.f32 %v3696, %v3699
    %3702 = vrot.lane.b32.xlu0 %v3696, 126
    %v3703 = vpop.permute.xlu0 %3702
    %v3705 = vadd.f32 %v3701, %v3703
    %v3706 = vrsqrt.pop %v3705
    %v3707 = vmul.f32 %v3706, %v3705
    %v3708 = vmul.f32 %v3707, %v3706
    %v3709 = vmul.f32 0.5, %v3708
    %v3710 = vsub.f32 1.5, %v3709
    %v3711 = vmul.f32 %v3706, %v3710
    %v3712 = vmul.f32 %v3705, %v3711
    %vm3713 = vcmp.eq.f32.partialorder %v3705, inf
    %v3714 = vsel %vm3713, %v3705, %v3712
    %vm3715 = vcmp.eq.f32.partialorder %v3705, 0.0
    %v3716 = vand.u32 %v3705, 2147483648
    %v3717 = vsel %vm3715, %v3716, %v3714
    %v3718 = vadd.f32 %v3717, 1e-06
    %v3719 = vrcp.pop %v3718
    %v3720 = vmul.f32 %v3718, %v3719
    %v3721 = vsub.f32 1.0, %v3720
    %v3722 = vmul.f32 %v3719, %v3721
    %v3723 = vadd.f32 %v3719, %v3722
    %vm3724 = vweird.f32 %v3718
    %vm3725 = vweird.f32 %v3719
    %vm3726 = vmor %vm3724, %vm3725
    %v3727 = vsel %vm3726, %v3719, %v3723
    %v3728 = vand.u32 2147483647, %v3718
    %vm3729 = vcmp.eq.f32.partialorder %v3728, 8.507059e+37
    %v3730 = vand.u32 %v3718, 2147483648
    %v3731 = vor.u32 1.1754944e-38, %v3730
    %v3732 = vsel %vm3729, %v3731, %v3727
    %v3733 = vmul.f32 1.0, %v3732
    %v3734 = vmul.f32 %v3692, %v3733
    %3736 = vrot.lane.b32.xlu0 %v3733, 1
    %v3737 = vpop.permute.xlu0 %3736
    %v3739 = vmul.f32 %v3692, %v3737
    %3740 = vrot.lane.b32.xlu0 %v3733, 2
    %v3741 = vpop.permute.xlu0 %3740
    %v3743 = vmul.f32 %v3692, %v3741
    %v3744 = vand.u32 2147483647, %v3717
    %vm3745 = vcmp.le.f32.partialorder %v3744, 0.7853982
    %vm3746 = vcmp.lt.s32.totalorder %v3717, 0
    %v3747 = vand.u32 %v3717, 2139095040
    %v3748 = vshrl.u32 %v3747, 23
    %v3749 = vsub.s32 %v3748, 127
    %v3750 = vand.u32 2147483647, %v3717
    %v3751 = vand.u32 %v3750, 8388607
    %v3752 = vor.u32 %v3751, 8388608
    %v3753 = vsub.s32 0, %v3752
    %v3754 = vadd.s32 %v3749, 1
    %vm3755 = vcmp.gt.s32.totalorder %v3754, 0
    %v3756 = vsel %vm3755, %v3754, 0
    %v3757 = vshrl.u32 %v3756, 5
    %v3758 = vand.u32 %v3756, 31
    %v3759 = vsub.s32 32, %v3758
    %v3760 = vshrl.u32 683565275, %v3759
    %v3761 = vshll.u32 683565275, %v3758
    %v3762 = vshrl.u32 2475754826, %v3759
    %v3763 = vor.u32 %v3761, %v3762
    %v3764 = vshll.u32 2475754826, %v3758
    %v3765 = vshrl.u32 2131351028, %v3759
    %v3766 = vor.u32 %v3764, %v3765
    %v3767 = vshll.u32 2131351028, %v3758
    %v3768 = vshrl.u32 2102212464, %v3759
    %v3769 = vor.u32 %v3767, %v3768
    %v3770 = vshll.u32 2102212464, %v3758
    %v3771 = vshrl.u32 920167782, %v3759
    %v3772 = vor.u32 %v3770, %v3771
    %v3773 = vshll.u32 920167782, %v3758
    %v3774 = vshrl.u32 1326507024, %v3759
    %v3775 = vor.u32 %v3773, %v3774
    %vm3776 = vcmp.lt.s32.totalorder %v3757, 1
    %vm3777 = vcmp.lt.s32.totalorder %v3757, 2
    %vm3778 = vcmp.lt.s32.totalorder %v3757, 3
    %vm3779 = vcmp.lt.s32.totalorder %v3757, 4
    %v3780 = vsel %vm3776, %v3760, %v3763
    %v3781 = vsel %vm3779, %v3769, 2102212464
    %v3782 = vsel %vm3778, %v3766, %v3781
    %v3783 = vsel %vm3777, %v3780, %v3782
    %v3784 = vsel %vm3776, %v3763, %v3766
    %v3785 = vsel %vm3779, %v3772, 920167782
    %v3786 = vsel %vm3778, %v3769, %v3785
    %v3787 = vsel %vm3777, %v3784, %v3786
    %v3788 = vsel %vm3776, %v3766, %v3769
    %v3789 = vsel %vm3779, %v3775, 1326507024
    %v3790 = vsel %vm3778, %v3772, %v3789
    %v3791 = vsel %vm3777, %v3788, %v3790
    %v3792 = vshll.u32 %v3752, 8
    %v3793 = vand.u32 %v3792, 65535
    %v3794 = vshrl.u32 %v3792, 16
    %v3795 = vand.u32 %v3791, 65535
    %v3796 = vshrl.u32 %v3791, 16
    %v3797 = vmul.u32 %v3793, %v3795
    %v3798 = vmul.u32 %v3793, %v3796
    %v3799 = vmul.u32 %v3794, %v3795
    %v3800 = vmul.u32 %v3794, %v3796
    %v3801 = vshll.u32 %v3798, 16
    %v3802 = vshrl.u32 %v3798, 16
    %v3803 = vshll.u32 %v3799, 16
    %v3804 = vshrl.u32 %v3799, 16
    %vm3805 = vc.u32 %v3797, %v3801
    %v3806 = vsel %vm3805, 1, 0
    %v3807 = vadd.s32 %v3797, %v3801
    %v3808 = vadd.s32 %v3800, %v3806
    %vm3809 = vc.u32 %v3807, %v3803
    %v3810 = vsel %vm3809, 1, 0
    %v3811 = vadd.s32 %v3807, %v3803
    %v3812 = vadd.s32 %v3808, %v3810
    %v3813 = vadd.s32 %v3812, %v3802
    %v3814 = vadd.s32 %v3813, %v3804
    %v3815 = vand.u32 %v3792, 65535
    %v3816 = vshrl.u32 %v3792, 16
    %v3817 = vand.u32 %v3787, 65535
    %v3818 = vshrl.u32 %v3787, 16
    %v3819 = vmul.u32 %v3815, %v3817
    %v3820 = vmul.u32 %v3815, %v3818
    %v3821 = vmul.u32 %v3816, %v3817
    %v3822 = vmul.u32 %v3816, %v3818
    %v3823 = vshll.u32 %v3820, 16
    %v3824 = vshrl.u32 %v3820, 16
    %v3825 = vshll.u32 %v3821, 16
    %v3826 = vshrl.u32 %v3821, 16
    %vm3827 = vc.u32 %v3819, %v3823
    %v3828 = vsel %vm3827, 1, 0
    %v3829 = vadd.s32 %v3819, %v3823
    %v3830 = vadd.s32 %v3822, %v3828
    %vm3831 = vc.u32 %v3829, %v3825
    %v3832 = vsel %vm3831, 1, 0
    %v3833 = vadd.s32 %v3829, %v3825
    %v3834 = vadd.s32 %v3830, %v3832
    %v3835 = vadd.s32 %v3834, %v3824
    %v3836 = vadd.s32 %v3835, %v3826
    %v3837 = vmul.u32 %v3792, %v3783
    %v3838 = vadd.s32 %v3814, %v3833
    %vm3839 = vc.u32 %v3814, %v3833
    %v3840 = vadd.s32 %v3836, 1
    %v3841 = vsel %vm3839, %v3840, %v3836
    %v3842 = vadd.s32 %v3837, %v3841
    %v3843 = vadd.s32 %v3842, 536870912
    %v3844 = vshrl.u32 %v3843, 30
    %v3845 = vshll.u32 %v3844, 30
    %v3846 = vsub.s32 %v3842, %v3845
    %vm3847 = vcmp.lt.s32.totalorder %v3846, 0
    %v3848 = vsub.s32 0, %v3846
    %v3849 = vsel %vm3847, %v3848, %v3846
    %v3850 = vclz %v3849
    %v3851 = vsub.s32 %v3850, 2
    %vm3852 = vcmp.gt.s32.totalorder 0, %v3851
    %v3853 = vsel %vm3852, 0, %v3851
    %v3854 = vsub.s32 32, %v3853
    %v3855 = vshll.u32 %v3846, %v3853
    %v3856 = vshrl.u32 %v3838, %v3854
    %v3857 = vor.u32 %v3855, %v3856
    %v3858 = vsub.s32 4294967266, %v3853
    %v3859 = vadd.s32 %v3858, 127
    %v3860 = vshll.u32 %v3859, 23
    %v3861 = vor.u32 4788187, %v3860
    %v3862 = vand.u32 2147483647, %v3861
    %v3864 = vcvt.s32.f32 %v3857
    %v3865 = vmul.f32 %v3864, %v3862
    %v3866 = vxor.u32 %v3865, 2147483648
    %v3867 = vsel %vm3746, %v3866, %v3865
    %v3868 = vsub.s32 4, %v3844
    %v3869 = vsel %vm3746, %v3868, %v3844
    %v3870 = vsel %vm3745, %v3717, %v3867
    %v3871 = vsel %vm3745, 0, %v3869
    %v3872 = vmul.f32 %v3870, %v3870
    %v3873 = vmul.f32 %v3872, -0.001358992
    %v3874 = vadd.f32 %v3873, 0.041655596
    %v3875 = vmul.f32 %v3872, %v3874
    %v3876 = vadd.f32 %v3875, -0.4999988
    %v3877 = vmul.f32 %v3872, %v3876
    %v3878 = vadd.f32 1.0, %v3877
    %v3879 = vmul.f32 %v3870, %v3870
    %v3880 = vmul.f32 %v3879, -0.00019511016
    %v3881 = vadd.f32 %v3880, 0.008332121
    %v3882 = vmul.f32 %v3879, %v3881
    %v3883 = vadd.f32 %v3882, -0.16666654
    %v3884 = vmul.f32 %v3879, %v3883
    %v3885 = vadd.f32 %v3884, 1.0
    %v3886 = vmul.f32 %v3885, %v3870
    %vm3887 = vweird.f32 %v3717
    %v3888 = vand.u32 %v3871, 3
    %vm3889 = vcmp.lt.s32.totalorder %v3888, 2
    %vm3890 = vcmp.eq.s32.totalorder %v3888, 0
    %v3891 = vxor.u32 %v3886, 2147483648
    %v3892 = vsel %vm3890, %v3878, %v3891
    %vm3893 = vcmp.eq.s32.totalorder %v3888, 2
    %v3894 = vxor.u32 %v3878, 2147483648
    %v3895 = vsel %vm3893, %v3894, %v3886
    %v3896 = vsel %vm3889, %v3892, %v3895
    %v3897 = vsel %vm3887, nan, %v3896
    %v3898 = vand.u32 2147483647, %v3717
    %vm3899 = vcmp.le.f32.partialorder %v3898, 0.7853982
    %vm3900 = vcmp.lt.s32.totalorder %v3717, 0
    %v3901 = vand.u32 %v3717, 2139095040
    %v3902 = vshrl.u32 %v3901, 23
    %v3903 = vsub.s32 %v3902, 127
    %v3904 = vand.u32 2147483647, %v3717
    %v3905 = vand.u32 %v3904, 8388607
    %v3906 = vor.u32 %v3905, 8388608
    %v3907 = vsub.s32 0, %v3906
    %v3908 = vadd.s32 %v3903, 1
    %vm3909 = vcmp.gt.s32.totalorder %v3908, 0
    %v3910 = vsel %vm3909, %v3908, 0
    %v3911 = vshrl.u32 %v3910, 5
    %v3912 = vand.u32 %v3910, 31
    %v3913 = vsub.s32 32, %v3912
    %v3914 = vshrl.u32 683565275, %v3913
    %v3915 = vshll.u32 683565275, %v3912
    %v3916 = vshrl.u32 2475754826, %v3913
    %v3917 = vor.u32 %v3915, %v3916
    %v3918 = vshll.u32 2475754826, %v3912
    %v3919 = vshrl.u32 2131351028, %v3913
    %v3920 = vor.u32 %v3918, %v3919
    %v3921 = vshll.u32 2131351028, %v3912
    %v3922 = vshrl.u32 2102212464, %v3913
    %v3923 = vor.u32 %v3921, %v3922
    %v3924 = vshll.u32 2102212464, %v3912
    %v3925 = vshrl.u32 920167782, %v3913
    %v3926 = vor.u32 %v3924, %v3925
    %v3927 = vshll.u32 920167782, %v3912
    %v3928 = vshrl.u32 1326507024, %v3913
    %v3929 = vor.u32 %v3927, %v3928
    %vm3930 = vcmp.lt.s32.totalorder %v3911, 1
    %vm3931 = vcmp.lt.s32.totalorder %v3911, 2
    %vm3932 = vcmp.lt.s32.totalorder %v3911, 3
    %vm3933 = vcmp.lt.s32.totalorder %v3911, 4
    %v3934 = vsel %vm3930, %v3914, %v3917
    %v3935 = vsel %vm3933, %v3923, 2102212464
    %v3936 = vsel %vm3932, %v3920, %v3935
    %v3937 = vsel %vm3931, %v3934, %v3936
    %v3938 = vsel %vm3930, %v3917, %v3920
    %v3939 = vsel %vm3933, %v3926, 920167782
    %v3940 = vsel %vm3932, %v3923, %v3939
    %v3941 = vsel %vm3931, %v3938, %v3940
    %v3942 = vsel %vm3930, %v3920, %v3923
    %v3943 = vsel %vm3933, %v3929, 1326507024
    %v3944 = vsel %vm3932, %v3926, %v3943
    %v3945 = vsel %vm3931, %v3942, %v3944
    %v3946 = vshll.u32 %v3906, 8
    %v3947 = vand.u32 %v3946, 65535
    %v3948 = vshrl.u32 %v3946, 16
    %v3949 = vand.u32 %v3945, 65535
    %v3950 = vshrl.u32 %v3945, 16
    %v3951 = vmul.u32 %v3947, %v3949
    %v3952 = vmul.u32 %v3947, %v3950
    %v3953 = vmul.u32 %v3948, %v3949
    %v3954 = vmul.u32 %v3948, %v3950
    %v3955 = vshll.u32 %v3952, 16
    %v3956 = vshrl.u32 %v3952, 16
    %v3957 = vshll.u32 %v3953, 16
    %v3958 = vshrl.u32 %v3953, 16
    %vm3959 = vc.u32 %v3951, %v3955
    %v3960 = vsel %vm3959, 1, 0
    %v3961 = vadd.s32 %v3951, %v3955
    %v3962 = vadd.s32 %v3954, %v3960
    %vm3963 = vc.u32 %v3961, %v3957
    %v3964 = vsel %vm3963, 1, 0
    %v3965 = vadd.s32 %v3961, %v3957
    %v3966 = vadd.s32 %v3962, %v3964
    %v3967 = vadd.s32 %v3966, %v3956
    %v3968 = vadd.s32 %v3967, %v3958
    %v3969 = vand.u32 %v3946, 65535
    %v3970 = vshrl.u32 %v3946, 16
    %v3971 = vand.u32 %v3941, 65535
    %v3972 = vshrl.u32 %v3941, 16
    %v3973 = vmul.u32 %v3969, %v3971
    %v3974 = vmul.u32 %v3969, %v3972
    %v3975 = vmul.u32 %v3970, %v3971
    %v3976 = vmul.u32 %v3970, %v3972
    %v3977 = vshll.u32 %v3974, 16
    %v3978 = vshrl.u32 %v3974, 16
    %v3979 = vshll.u32 %v3975, 16
    %v3980 = vshrl.u32 %v3975, 16
    %vm3981 = vc.u32 %v3973, %v3977
    %v3982 = vsel %vm3981, 1, 0
    %v3983 = vadd.s32 %v3973, %v3977
    %v3984 = vadd.s32 %v3976, %v3982
    %vm3985 = vc.u32 %v3983, %v3979
    %v3986 = vsel %vm3985, 1, 0
    %v3987 = vadd.s32 %v3983, %v3979
    %v3988 = vadd.s32 %v3984, %v3986
    %v3989 = vadd.s32 %v3988, %v3978
    %v3990 = vadd.s32 %v3989, %v3980
    %v3991 = vmul.u32 %v3946, %v3937
    %v3992 = vadd.s32 %v3968, %v3987
    %vm3993 = vc.u32 %v3968, %v3987
    %v3994 = vadd.s32 %v3990, 1
    %v3995 = vsel %vm3993, %v3994, %v3990
    %v3996 = vadd.s32 %v3991, %v3995
    %v3997 = vadd.s32 %v3996, 536870912
    %v3998 = vshrl.u32 %v3997, 30
    %v3999 = vshll.u32 %v3998, 30
    %v4000 = vsub.s32 %v3996, %v3999
    %vm4001 = vcmp.lt.s32.totalorder %v4000, 0
    %v4002 = vsub.s32 0, %v4000
    %v4003 = vsel %vm4001, %v4002, %v4000
    %v4004 = vclz %v4003
    %v4005 = vsub.s32 %v4004, 2
    %vm4006 = vcmp.gt.s32.totalorder 0, %v4005
    %v4007 = vsel %vm4006, 0, %v4005
    %v4008 = vsub.s32 32, %v4007
    %v4009 = vshll.u32 %v4000, %v4007
    %v4010 = vshrl.u32 %v3992, %v4008
    %v4011 = vor.u32 %v4009, %v4010
    %v4012 = vsub.s32 4294967266, %v4007
    %v4013 = vadd.s32 %v4012, 127
    %v4014 = vshll.u32 %v4013, 23
    %v4015 = vor.u32 4788187, %v4014
    %v4016 = vand.u32 2147483647, %v4015
    %v4018 = vcvt.s32.f32 %v4011
    %v4019 = vmul.f32 %v4018, %v4016
    %v4020 = vxor.u32 %v4019, 2147483648
    %v4021 = vsel %vm3900, %v4020, %v4019
    %v4022 = vsub.s32 4, %v3998
    %v4023 = vsel %vm3900, %v4022, %v3998
    %v4024 = vsel %vm3899, %v3717, %v4021
    %v4025 = vsel %vm3899, 0, %v4023
    %v4026 = vmul.f32 %v4024, %v4024
    %v4027 = vmul.f32 %v4026, -0.001358992
    %v4028 = vadd.f32 %v4027, 0.041655596
    %v4029 = vmul.f32 %v4026, %v4028
    %v4030 = vadd.f32 %v4029, -0.4999988
    %v4031 = vmul.f32 %v4026, %v4030
    %v4032 = vadd.f32 1.0, %v4031
    %v4033 = vmul.f32 %v4024, %v4024
    %v4034 = vmul.f32 %v4033, -0.00019511016
    %v4035 = vadd.f32 %v4034, 0.008332121
    %v4036 = vmul.f32 %v4033, %v4035
    %v4037 = vadd.f32 %v4036, -0.16666654
    %v4038 = vmul.f32 %v4033, %v4037
    %v4039 = vadd.f32 %v4038, 1.0
    %v4040 = vmul.f32 %v4039, %v4024
    %vm4041 = vweird.f32 %v3717
    %v4042 = vadd.s32 %v4025, 3
    %v4043 = vand.u32 %v4042, 3
    %vm4044 = vcmp.lt.s32.totalorder %v4043, 2
    %vm4045 = vcmp.eq.s32.totalorder %v4043, 0
    %v4046 = vxor.u32 %v4040, 2147483648
    %v4047 = vsel %vm4045, %v4032, %v4046
    %vm4048 = vcmp.eq.s32.totalorder %v4043, 2
    %v4049 = vxor.u32 %v4032, 2147483648
    %v4050 = vsel %vm4048, %v4049, %v4040
    %v4051 = vsel %vm4044, %v4047, %v4050
    %v4052 = vsel %vm4041, nan, %v4051
    %v4053 = vsub.f32 1.0, %v3897
    %v4054 = vmul.f32 %v3734, %v3734
    %v4055 = vmul.f32 %v4054, %v4053
    %v4056 = vadd.f32 %v3897, %v4055
    %4058 = vrot.lane.b32.xlu0 %v3739, 127
    %v4059 = vpop.permute.xlu0 %4058
    %v4061 = vmul.f32 %v3734, %v4059
    %v4062 = vmul.f32 %v4061, %v4053
    %4064 = vrot.lane.b32.xlu0 %v4052, 2
    %v4065 = vpop.permute.xlu0 %4064
    %v4067 = vmul.f32 %v3743, %v4065
    %4069 = vrot.lane.b32.xlu0 %v4067, 126
    %v4070 = vpop.permute.xlu0 %4069
    %v4072 = vsub.f32 %v4062, %v4070
    %4073 = vrot.lane.b32.xlu0 %v4052, 1
    %v4074 = vpop.permute.xlu0 %4073
    %v4076 = vmul.f32 %v3739, %v4074
    %4078 = vrot.lane.b32.xlu0 %v3743, 126
    %v4079 = vpop.permute.xlu0 %4078
    %v4081 = vmul.f32 %v3734, %v4079
    %v4082 = vmul.f32 %v4081, %v4053
    %4084 = vrot.lane.b32.xlu0 %v4082, 1
    %v4085 = vpop.permute.xlu0 %4084
    %v4087 = vadd.f32 %v4076, %v4085
    %4089 = vrot.lane.b32.xlu0 %v4062, 2
    %v4090 = vpop.permute.xlu0 %4089
    %v4092 = vadd.f32 %v4067, %v4090
    %v4093 = vmul.f32 %v3739, %v3739
    %4095 = vrot.lane.b32.xlu0 %v4053, 1
    %v4096 = vpop.permute.xlu0 %4095
    %v4098 = vmul.f32 %v4093, %v4096
    %4100 = vrot.lane.b32.xlu0 %v4098, 127
    %v4101 = vpop.permute.xlu0 %4100
    %v4103 = vadd.f32 %v3897, %v4101
    %v4104 = vsub.f32 0.0, %v3734
    %v4105 = vmul.f32 %v4104, %v4052
    %4106 = vrot.lane.b32.xlu0 %v3743, 127
    %v4107 = vpop.permute.xlu0 %4106
    %v4109 = vmul.f32 %v3739, %v4107
    %v4110 = vmul.f32 %v4109, %v4096
    %4112 = vrot.lane.b32.xlu0 %v4110, 127
    %v4113 = vpop.permute.xlu0 %4112
    %v4115 = vadd.f32 %v4105, %v4113
    %v4116 = vsub.f32 0.0, %v3739
    %v4117 = vmul.f32 %v4116, %v4074
    %v4118 = vadd.f32 %v4117, %v4085
    %v4119 = vmul.f32 %v3734, %v4052
    %v4120 = vadd.f32 %v4119, %v4113
    %v4121 = vmul.f32 %v3743, %v3743
    %4122 = vrot.lane.b32.xlu0 %v4053, 2
    %v4123 = vpop.permute.xlu0 %4122
    %v4125 = vmul.f32 %v4121, %v4123
    %4127 = vrot.lane.b32.xlu0 %v4125, 126
    %v4128 = vpop.permute.xlu0 %4127
    %v4130 = vadd.f32 %v3897, %v4128
    %vm4131 = vcmp.gt.f32.partialorder %v3705, 1e-06
    %v4132 = vsel %vm4131, %v4056, 1.0
    %v4133 = vsub.f32 0.0, %v3692
    %4135 = vrot.lane.b32.xlu0 %v4133, 126
    %v4136 = vpop.permute.xlu0 %4135
    %v4138 = vsel %vm4131, %v4072, %v4136
    %4140 = vrot.lane.b32.xlu0 %v4087, 127
    %v4141 = vpop.permute.xlu0 %4140
    %4144 = vrot.lane.b32.xlu0 %v3692, 127
    %v4145 = vpop.permute.xlu0 %4144
    %v4147 = vsel %vm4131, %v4141, %v4145
    %4149 = vrot.lane.b32.xlu0 %v4092, 126
    %v4150 = vpop.permute.xlu0 %4149
    %4152 = vrot.lane.b32.xlu0 %v3692, 126
    %v4153 = vpop.permute.xlu0 %4152
    %v4155 = vsel %vm4131, %v4150, %v4153
    %v4156 = vsel %vm4131, %v4103, 1.0
    %v4157 = vsel %vm4131, %v4115, %v4133
    %4159 = vrot.lane.b32.xlu0 %v4118, 127
    %v4160 = vpop.permute.xlu0 %4159
    %4162 = vrot.lane.b32.xlu0 %v4133, 127
    %v4163 = vpop.permute.xlu0 %4162
    %v4165 = vsel %vm4131, %v4160, %v4163
    %v4166 = vsel %vm4131, %v4120, %v3692
    %v4167 = vsel %vm4131, %v4130, 1.0
    %v4168 = vld [vmem:[#allocation5] sm:$0xff]
    %4170 = vset.pattern.permute.xlu0 0
    %4171 = vperm.xlu0 %4170, %v4132
    %v4172 = vpop.permute.xlu0 %4171
    %v4174 = vmul.f32 %v4172, %v4168
    %4176 = vset.pattern.permute.xlu0 0
    %4177 = vperm.xlu0 %4176, %v4138
    %v4178 = vpop.permute.xlu0 %4177
    %v4180 = vmul.f32 %v4178, %v4168
    %4182 = vrot.lane.b32.xlu0 %v4180, 112
    %v4183 = vpop.permute.xlu0 %4182
    %v4185 = vadd.f32 %v4174, %v4183
    %4187 = vset.pattern.permute.xlu0 0
    %4188 = vperm.xlu0 %4187, %v4147
    %v4189 = vpop.permute.xlu0 %4188
    %v4191 = vmul.f32 %v4189, %v4168
    %4193 = vrot.lane.b32.xlu0 %v4191, 96
    %v4194 = vpop.permute.xlu0 %4193
    %v4196 = vadd.f32 %v4185, %v4194
    %4198 = vset.pattern.permute.xlu0 0
    %4199 = vperm.xlu0 %4198, %v3695
    %v4200 = vpop.permute.xlu0 %4199
    %v4202 = vadd.f32 %v4196, %v4200
    %4204 = vset.pattern.permute.xlu0 0
    %4205 = vperm.xlu0 %4204, %v4155
    %v4206 = vpop.permute.xlu0 %4205
    %v4208 = vmul.f32 %v4206, %v4168
    %4210 = vset.pattern.permute.xlu0 0
    %4211 = vperm.xlu0 %4210, %v4156
    %v4212 = vpop.permute.xlu0 %4211
    %v4214 = vmul.f32 %v4212, %v4168
    %4216 = vrot.lane.b32.xlu0 %v4214, 112
    %v4217 = vpop.permute.xlu0 %4216
    %v4219 = vadd.f32 %v4208, %v4217
    %4221 = vset.pattern.permute.xlu0 0
    %4222 = vperm.xlu0 %4221, %v4157
    %v4223 = vpop.permute.xlu0 %4222
    %v4225 = vmul.f32 %v4223, %v4168
    %4227 = vrot.lane.b32.xlu0 %v4225, 96
    %v4228 = vpop.permute.xlu0 %4227
    %v4230 = vadd.f32 %v4219, %v4228
    %4231 = vset.pattern.permute.xlu0 1
    %4232 = vperm.xlu0 %4231, %v3695
    %v4233 = vpop.permute.xlu0 %4232
    %v4235 = vadd.f32 %v4230, %v4233
    %4237 = vset.pattern.permute.xlu0 0
    %4238 = vperm.xlu0 %4237, %v4165
    %v4239 = vpop.permute.xlu0 %4238
    %v4241 = vmul.f32 %v4239, %v4168
    %4243 = vset.pattern.permute.xlu0 0
    %4244 = vperm.xlu0 %4243, %v4166
    %v4245 = vpop.permute.xlu0 %4244
    %v4247 = vmul.f32 %v4245, %v4168
    %4249 = vrot.lane.b32.xlu0 %v4247, 112
    %v4250 = vpop.permute.xlu0 %4249
    %v4252 = vadd.f32 %v4241, %v4250
    %4254 = vset.pattern.permute.xlu0 0
    %4255 = vperm.xlu0 %4254, %v4167
    %v4256 = vpop.permute.xlu0 %4255
    %v4258 = vmul.f32 %v4256, %v4168
    %4260 = vrot.lane.b32.xlu0 %v4258, 96
    %v4261 = vpop.permute.xlu0 %4260
    %v4263 = vadd.f32 %v4252, %v4261
    %4264 = vset.pattern.permute.xlu0 2
    %4265 = vperm.xlu0 %4264, %v3695
    %v4266 = vpop.permute.xlu0 %4265
    %v4268 = vadd.f32 %v4263, %v4266
    %4270 = vrot.lane.b32.xlu0 %v4235, 16
    %v4271 = vpop.permute.xlu0 %4270
    %4274 = vrot.lane.b32.xlu0 %v4268, 32
    %v4275 = vpop.permute.xlu0 %4274
    %vm4277 = vcmask 130048
    %v4278 = vsel %vm4277, %v4202, %v4271
    %vm4279 = vcmask 261120
    %v4280 = vsel %vm4279, %v4278, %v4275
    %4281 = vst.msk [vmem:[#allocation10] sm:$0xff] %vm157, %v4280
    %4282 = vrot.lane.b32.xlu0 %v3695, 3
    %v4283 = vpop.permute.xlu0 %4282
    %vm4285 = vcmask 23552
    %v4286 = vsel %vm4285, %v3692, %v4283
    %vm4287 = vcmask 48128
    %4288 = vst.msk [vmem:[#allocation11] sm:$0xff] %vm4287, %v4286
    // Predicated region
    $region74: #{tpu_custom_call.1} parent=1 // pred_check
      _
    $region75: #{tpu_custom_call.1} parent=1 // pred_check_branch
      %4290 = sbr.rel (0) target = $region77
    $region76: #{tpu_custom_call.1} parent=1 // pred_region
      %4292 = vsyncadd [#allocation4], 0
      %s4294 = sshll.u32 [#allocation10], 4
      %s4295 = int_to_ptr.vmem [resolvable:$true] %s4294
      %s4296 = sshll.u32 %s14, 4
      %s4297 = int_to_ptr.hbm [resolvable:$true] %s4296
      %4299 = dma.vmem_to_hbm [thread:$0]  %s4295, 128, %s4297, [#allocation4]
    $region77: #{tpu_custom_call.1} parent=1 // pred_fallthru
      _
    // Predicated region
    $region78: #{tpu_custom_call.1} parent=1 // pred_check
      _
    $region79: #{tpu_custom_call.1} parent=1 // pred_check_branch
      %4301 = sbr.rel (0) target = $region81
    $region80: #{tpu_custom_call.1} parent=1 // pred_region
      %4303 = vsyncadd [#allocation12], 0
      %s4305 = sshll.u32 [#allocation11], 4
      %s4306 = int_to_ptr.vmem [resolvable:$true] %s4305
      %s4307 = sshll.u32 %s15, 4
      %s4308 = int_to_ptr.hbm [resolvable:$true] %s4307
      %4310 = dma.vmem_to_hbm [thread:$0]  %s4306, 128, %s4308, [#allocation12]
    $region81: #{tpu_custom_call.1} parent=1 // pred_fallthru
      _
    // Predicated region
    $region82: #{tpu_custom_call.1} parent=1 // pred_check
      _
    $region83: #{tpu_custom_call.1} parent=1 // pred_check_branch
      %4312 = sbr.rel (0) target = $region85
    $region84: #{tpu_custom_call.1} parent=1 // pred_region
      %4314 = dma.done [#allocation4], 128
    $region85: #{tpu_custom_call.1} parent=1 // pred_fallthru
      _
    // Predicated region
    $region86: #{tpu_custom_call.1} parent=1 // pred_check
      _
    $region87: #{tpu_custom_call.1} parent=1 // pred_check_branch
      %4316 = sbr.rel (0) target = $region89
    $region88: #{tpu_custom_call.1} parent=1 // pred_region
      %4318 = dma.done [#allocation12], 128
    $region89: #{tpu_custom_call.1} parent=1 // pred_fallthru
      _
    %4319 = vsyncpa [#allocation3], 1
    %4320 = vsyncpa [#allocation6], 1
    %4321 = vsyncpa [#allocation9], 1
    %4322 = vsyncpa [#allocation4], 1
    %4323 = vsyncpa [#allocation12], 1

</llo_original>
